<compile_context>
chip_gen: v7x
topology: tpu7x:2x2x1
jax: 0.10.0
libtpu: 0.0.40
codegen_flags: <defaults>
</compile_context>

<pallas_src>
import numpy as np
import jax
import jax.numpy as jnp
from jax.experimental import pallas as pl
from jax.experimental.pallas import tpu as pltpu

VMEM_SPEC = pl.BlockSpec(memory_space=pltpu.MemorySpace.VMEM)


# ----------------------------- in-kernel helpers -----------------------------

def _ln(z, gamma, beta, eps=1e-5):
    """LayerNorm over the last axis, all statistics in f32."""
    mean = jnp.mean(z, axis=-1, keepdims=True)
    var = jnp.mean((z - mean) ** 2, axis=-1, keepdims=True)
    return (z - mean) * jax.lax.rsqrt(var + eps) * gamma + beta


def _bf16(a):
    return a.astype(jnp.bfloat16)


# ----------------------------- fully fused BERT kernel -----------------------------

def _make_bert_kernel(num_heads, num_blks, B, S):
    def kernel(x_ref, vl_ref, idx_ref,
               wqkv_ref, bqkv_ref, wo_ref, bo_ref, ln1g_ref, ln1b_ref,
               w1_ref, b1_ref, w2_ref, b2_ref, ln2g_ref, ln2b_ref,
               mlm_w1_ref, mlm_b1_ref, mlm_g_ref, mlm_be_ref, mlm_w2_ref, mlm_b2_ref,
               hid_w_ref, hid_b_ref, nsp_w_ref, nsp_b_ref,
               enc_ref, mlm_ref, nsp_ref):
        x = x_ref[...].astype(jnp.float32)                       # (B*S, H)
        BS, H = x.shape
        d = H // num_heads
        scale = jnp.float32(1.0 / np.sqrt(d))

        # ---- per-batch key-validity mask (int32 compare, f32 fill later) ----
        vl = vl_ref[...].reshape(B, 1, 1)                        # (B,1,1) int32
        kv_idx = jax.lax.broadcasted_iota(jnp.int32, (B, 1, S), 2)
        mask = kv_idx < vl                                       # (B,1,S) bool

        # ---- encoder blocks: static loop, weights indexed by leading block dim ----
        for blk in range(num_blks):
            # fused Q|K|V projection: one (BS,H)x(H,3H) matmul, bf16 -> f32 acc
            qkv = jnp.dot(_bf16(x), wqkv_ref[blk],
                          preferred_element_type=jnp.float32) + bqkv_ref[blk]
            q = _bf16((qkv[:, :H] * scale).reshape(B, S, H))     # 1/sqrt(d) folded in
            k = _bf16(qkv[:, H:2 * H].reshape(B, S, H))
            v = _bf16(qkv[:, 2 * H:].reshape(B, S, H))

            heads = []
            for h in range(num_heads):
                sl = slice(h * d, (h + 1) * d)
                sc = jnp.einsum('bqd,bkd->bqk', q[:, :, sl], k[:, :, sl],
                                preferred_element_type=jnp.float32)   # (B,S,S) f32
                sc = jnp.where(mask, sc, jnp.float32(-1e6))           # f32 mask fill
                sc = sc - jnp.max(sc, axis=-1, keepdims=True)
                p = jnp.exp(sc)
                p = p * pl.reciprocal(jnp.sum(p, axis=-1, keepdims=True), approx=True)
                heads.append(jnp.einsum('bqk,bkd->bqd', _bf16(p), v[:, :, sl],
                                        preferred_element_type=jnp.float32))
            attn = jnp.concatenate(heads, axis=-1).reshape(BS, H)      # (BS,H) f32

            # output projection + AddNorm 1
            attn = jnp.dot(_bf16(attn), wo_ref[blk],
                           preferred_element_type=jnp.float32) + bo_ref[blk]
            y = _ln(x + attn, ln1g_ref[blk], ln1b_ref[blk])

            # FFN (relu linear + linear) + AddNorm 2
            hdn = jnp.dot(_bf16(y), w1_ref[blk],
                          preferred_element_type=jnp.float32) + b1_ref[blk]
            hdn = jnp.maximum(hdn, 0.0)
            ffn = jnp.dot(_bf16(hdn), w2_ref[blk],
                          preferred_element_type=jnp.float32) + b2_ref[blk]
            x = _ln(y + ffn, ln2g_ref[blk], ln2b_ref[blk])

        enc_ref[...] = x.astype(enc_ref.dtype)

        # ---- MaskLM head: exact one-hot matmul gather of masked rows ----
        idx = idx_ref[...]                                        # (M,1) int32 flat rows
        M = idx.shape[0]
        onehot = (jax.lax.broadcasted_iota(jnp.int32, (M, BS), 1) == idx)
        mx = jnp.dot(onehot.astype(jnp.float32), x,
                     preferred_element_type=jnp.float32)          # (M,H) exact gather
        hm = jnp.dot(_bf16(mx), mlm_w1_ref[...],
                     preferred_element_type=jnp.float32) + mlm_b1_ref[...]
        hm = jnp.maximum(hm, 0.0)
        hm = _ln(hm, mlm_g_ref[...], mlm_be_ref[...])
        mlm = jnp.dot(_bf16(hm), mlm_w2_ref[...],
                      preferred_element_type=jnp.float32) + mlm_b2_ref[...]
        mlm_ref[...] = mlm.astype(mlm_ref.dtype)

        # ---- NSP head on <cls> tokens (rows b*S), selected with a one-hot matmul ----
        row_b = jax.lax.broadcasted_iota(jnp.int32, (B, BS), 0)
        col = jax.lax.broadcasted_iota(jnp.int32, (B, BS), 1)
        cls_sel = (col == row_b * S).astype(jnp.float32)
        cls = jnp.dot(cls_sel, x, preferred_element_type=jnp.float32)  # (B,H)
        hc = jnp.tanh(jnp.dot(_bf16(cls), hid_w_ref[...],
                              preferred_element_type=jnp.float32) + hid_b_ref[...])
        nsp = jnp.dot(_bf16(hc), nsp_w_ref[...],
                      preferred_element_type=jnp.float32) + nsp_b_ref[...]
        nsp_ref[...] = nsp.astype(nsp_ref.dtype)

    return kernel


def _bert_fused_call(params, X2, vl, flat_idx, *, num_heads, num_blks, B, S):
    BS, H = X2.shape
    M = flat_idx.shape[0]
    V = params['mlm_W2'].shape[1]
    kernel = _make_bert_kernel(num_heads, num_blks, B, S)
    return pl.pallas_call(
        kernel,
        out_shape=(jax.ShapeDtypeStruct((BS, H), jnp.float32),
                   jax.ShapeDtypeStruct((M, V), jnp.float32),
                   jax.ShapeDtypeStruct((B, 2), jnp.float32)),
        in_specs=[VMEM_SPEC] * 25,
        out_specs=(VMEM_SPEC, VMEM_SPEC, VMEM_SPEC),
        compiler_params=pltpu.CompilerParams(vmem_limit_bytes=32 * 1024 * 1024),
    )(X2, vl, flat_idx,
      params['Wqkv'], params['bqkv'], params['Wo'], params['bo'],
      params['ln1_g'], params['ln1_b'],
      params['ffn_W1'], params['ffn_b1'], params['ffn_W2'], params['ffn_b2'],
      params['ln2_g'], params['ln2_b'],
      params['mlm_W1'], params['mlm_b1'], params['mlm_ln_g'], params['mlm_ln_b'],
      params['mlm_W2'], params['mlm_b2'],
      params['hid_W'], params['hid_b'], params['nsp_W'], params['nsp_b'])


# ----------------------------- model glue (plain JAX) -----------------------------

def bert_forward(params, tokens, segments, valid_lens, pred_positions, num_heads):
    # TODO(synk): dropout is treated as inference-mode identity (dropout=0.0).
    # TODO(synk): token/segment embedding lookups (data-dependent row gather)
    # stay in plain JAX; everything downstream runs in one fused Pallas kernel.
    B, S = tokens.shape
    H = params['token_emb'].shape[1]
    num_blks = params['Wqkv'].shape[0]

    X = params['token_emb'][tokens] + params['seg_emb'][segments]
    X = X + params['pos_emb'][:, :S, :]
    X2 = X.reshape(B * S, H).astype(jnp.float32)

    vl = valid_lens.astype(jnp.int32).reshape(B, 1)
    num_pred = pred_positions.shape[1]
    batch_idx = jnp.repeat(jnp.arange(B, dtype=jnp.int32), num_pred)
    flat_idx = (batch_idx * S + pred_positions.reshape(-1).astype(jnp.int32)).reshape(-1, 1)

    enc2, mlm_flat, nsp_Y_hat = _bert_fused_call(
        params, X2, vl, flat_idx,
        num_heads=num_heads, num_blks=num_blks, B=B, S=S)

    encoded_X = enc2.reshape(B, S, H)
    mlm_Y_hat = mlm_flat.reshape(B, num_pred, -1)
    return encoded_X, mlm_Y_hat, nsp_Y_hat


# ----------------------------- deterministic init -----------------------------

def _init_linear(key, fan_in, fan_out):
    k1, k2 = jax.random.split(key)
    bound = 1.0 / np.sqrt(fan_in)
    W = jax.random.uniform(k1, (fan_in, fan_out), jnp.float32, -bound, bound)
    b = jax.random.uniform(k2, (1, fan_out), jnp.float32, -bound, bound)
    return W, b


def init_params(key, vocab_size, H, ffn_H, num_blks, max_len):
    keys = jax.random.split(key, 8 + num_blks)
    params = {}
    params['token_emb'] = jax.random.normal(keys[0], (vocab_size, H), jnp.float32)
    params['seg_emb'] = jax.random.normal(keys[1], (2, H), jnp.float32)
    params['pos_emb'] = jax.random.normal(keys[2], (1, max_len, H), jnp.float32)

    Wqkv_l, bqkv_l, Wo_l, bo_l, W1_l, b1_l, W2_l, b2_l = ([] for _ in range(8))
    for i in range(num_blks):
        bk = jax.random.split(keys[3 + i], 6)
        Wq, bq = _init_linear(bk[0], H, H)
        Wk, bkb = _init_linear(bk[1], H, H)
        Wv, bv = _init_linear(bk[2], H, H)
        Wo, bo = _init_linear(bk[3], H, H)
        W1, b1 = _init_linear(bk[4], H, ffn_H)
        W2, b2 = _init_linear(bk[5], ffn_H, H)
        Wqkv_l.append(jnp.concatenate([Wq, Wk, Wv], axis=1))     # (H, 3H)
        bqkv_l.append(jnp.concatenate([bq, bkb, bv], axis=1))    # (1, 3H)
        Wo_l.append(Wo); bo_l.append(bo)
        W1_l.append(W1); b1_l.append(b1)
        W2_l.append(W2); b2_l.append(b2)

    # Stacked per-block weights: matmul operands stored bf16 (MXU-native,
    # half the VMEM residency / DMA bytes); biases & LN params stay f32.
    params['Wqkv'] = jnp.stack(Wqkv_l).astype(jnp.bfloat16)      # (nb, H, 3H)
    params['bqkv'] = jnp.stack(bqkv_l)                           # (nb, 1, 3H)
    params['Wo'] = jnp.stack(Wo_l).astype(jnp.bfloat16)
    params['bo'] = jnp.stack(bo_l)
    params['ffn_W1'] = jnp.stack(W1_l).astype(jnp.bfloat16)
    params['ffn_b1'] = jnp.stack(b1_l)
    params['ffn_W2'] = jnp.stack(W2_l).astype(jnp.bfloat16)
    params['ffn_b2'] = jnp.stack(b2_l)
    params['ln1_g'] = jnp.ones((num_blks, 1, H), jnp.float32)
    params['ln1_b'] = jnp.zeros((num_blks, 1, H), jnp.float32)
    params['ln2_g'] = jnp.ones((num_blks, 1, H), jnp.float32)
    params['ln2_b'] = jnp.zeros((num_blks, 1, H), jnp.float32)

    i0 = 3 + num_blks
    mlm_W1, mlm_b1 = _init_linear(keys[i0], H, H)
    mlm_W2, mlm_b2 = _init_linear(keys[i0 + 1], H, vocab_size)
    hid_W, hid_b = _init_linear(keys[i0 + 2], H, H)
    nsp_W, nsp_b = _init_linear(keys[i0 + 3], H, 2)
    params['mlm_W1'] = mlm_W1.astype(jnp.bfloat16); params['mlm_b1'] = mlm_b1
    params['mlm_ln_g'] = jnp.ones((1, H), jnp.float32)
    params['mlm_ln_b'] = jnp.zeros((1, H), jnp.float32)
    params['mlm_W2'] = mlm_W2.astype(jnp.bfloat16); params['mlm_b2'] = mlm_b2
    params['hid_W'] = hid_W.astype(jnp.bfloat16); params['hid_b'] = hid_b
    params['nsp_W'] = nsp_W.astype(jnp.bfloat16); params['nsp_b'] = nsp_b
    return params


# ----------------------------- main -----------------------------

if __name__ == "__main__":
    vocab_size, num_hiddens, ffn_num_hiddens = 128, 32, 64
    num_heads, num_blks, dropout = 2, 2, 0.0
    max_len, B, S, num_pred = 64, 2, 8, 3

    key = jax.random.PRNGKey(0)
    pkey, dkey = jax.random.split(key)
    params = init_params(pkey, vocab_size, num_hiddens, ffn_num_hiddens, num_blks, max_len)

    k1, k2, k3 = jax.random.split(dkey, 3)
    tokens = jax.random.randint(k1, (B, S), 0, vocab_size, dtype=jnp.int32)
    segments = jnp.concatenate(
        [jnp.zeros((B, S // 2), jnp.int32), jnp.ones((B, S // 2), jnp.int32)], axis=1)
    valid_lens = jnp.array([8.0, 6.0], jnp.float32)
    pred_positions = jax.random.randint(k3, (B, num_pred), 0, S, dtype=jnp.int32)

    encoded_X, mlm_Y_hat, nsp_Y_hat = bert_forward(
        params, tokens, segments, valid_lens, pred_positions, num_heads)
    jax.block_until_ready((encoded_X, mlm_Y_hat, nsp_Y_hat))

    assert encoded_X.shape == (B, S, num_hiddens)
    assert mlm_Y_hat.shape == (B, num_pred, vocab_size)
    assert nsp_Y_hat.shape == (B, 2)
    print("KERNEL_OK")
</pallas_src>

<mosaic_0001>
module attributes {stable_mosaic.version = 11 : i64} {
  func.func @kernel(%arg0: memref<16x32xf32, #tpu.memory_space<vmem>>, %arg1: memref<2x1xi32, #tpu.memory_space<vmem>>, %arg2: memref<6x1xi32, #tpu.memory_space<vmem>>, %arg3: memref<2x32x96xbf16, #tpu.memory_space<vmem>>, %arg4: memref<2x1x96xf32, #tpu.memory_space<vmem>>, %arg5: memref<2x32x32xbf16, #tpu.memory_space<vmem>>, %arg6: memref<2x1x32xf32, #tpu.memory_space<vmem>>, %arg7: memref<2x1x32xf32, #tpu.memory_space<vmem>>, %arg8: memref<2x1x32xf32, #tpu.memory_space<vmem>>, %arg9: memref<2x32x64xbf16, #tpu.memory_space<vmem>>, %arg10: memref<2x1x64xf32, #tpu.memory_space<vmem>>, %arg11: memref<2x64x32xbf16, #tpu.memory_space<vmem>>, %arg12: memref<2x1x32xf32, #tpu.memory_space<vmem>>, %arg13: memref<2x1x32xf32, #tpu.memory_space<vmem>>, %arg14: memref<2x1x32xf32, #tpu.memory_space<vmem>>, %arg15: memref<32x32xbf16, #tpu.memory_space<vmem>>, %arg16: memref<1x32xf32, #tpu.memory_space<vmem>>, %arg17: memref<1x32xf32, #tpu.memory_space<vmem>>, %arg18: memref<1x32xf32, #tpu.memory_space<vmem>>, %arg19: memref<32x128xbf16, #tpu.memory_space<vmem>>, %arg20: memref<1x128xf32, #tpu.memory_space<vmem>>, %arg21: memref<32x32xbf16, #tpu.memory_space<vmem>>, %arg22: memref<1x32xf32, #tpu.memory_space<vmem>>, %arg23: memref<32x2xbf16, #tpu.memory_space<vmem>>, %arg24: memref<1x2xf32, #tpu.memory_space<vmem>>, %arg25: memref<16x32xf32, #tpu.memory_space<vmem>>, %arg26: memref<6x128xf32, #tpu.memory_space<vmem>>, %arg27: memref<2x2xf32, #tpu.memory_space<vmem>>) attributes {dimension_semantics = [], scalar_prefetch = 0 : i64, scratch_operands = 0 : i64, tpu.core_type = #tpu.core_type<tc>} {
    %c0 = arith.constant 0 : index
    %c0_0 = arith.constant 0 : index
    %0 = vector.load %arg0[%c0, %c0_0] : memref<16x32xf32, #tpu.memory_space<vmem>>, vector<16x32xf32>
    %c0_1 = arith.constant 0 : index
    %c0_2 = arith.constant 0 : index
    %1 = vector.load %arg1[%c0_1, %c0_2] : memref<2x1xi32, #tpu.memory_space<vmem>>, vector<2x1xi32>
    %2 = vector.shape_cast %1 : vector<2x1xi32> to vector<2x1x1xi32>
    %3 = tpu.iota {dimensions = array<i32: 2>} : vector<2x1x8xi32>
    %4 = vector.broadcast %2 : vector<2x1x1xi32> to vector<2x1x8xi32>
    %5 = arith.cmpi slt, %3, %4 : vector<2x1x8xi32>
    %6 = arith.truncf %0 : vector<16x32xf32> to vector<16x32xbf16>
    %c0_3 = arith.constant 0 : index
    %c0_4 = arith.constant 0 : index
    %c0_5 = arith.constant 0 : index
    %7 = vector.load %arg3[%c0_3, %c0_4, %c0_5] : memref<2x32x96xbf16, #tpu.memory_space<vmem>>, vector<1x32x96xbf16>
    %8 = vector.shape_cast %7 : vector<1x32x96xbf16> to vector<32x96xbf16>
    %cst = arith.constant dense<0.000000e+00> : vector<16x96xf32>
    %9 = tpu.matmul %6, %8, %cst {dimension_numbers = #tpu.dot_dimension_numbers<[1], [0], [0], [1], [0, 0, 1, 1], [], []>} : vector<16x32xbf16>, vector<32x96xbf16>, vector<16x96xf32> -> vector<16x96xf32>
    %c0_6 = arith.constant 0 : index
    %c0_7 = arith.constant 0 : index
    %c0_8 = arith.constant 0 : index
    %10 = vector.load %arg4[%c0_6, %c0_7, %c0_8] : memref<2x1x96xf32, #tpu.memory_space<vmem>>, vector<1x1x96xf32>
    %11 = vector.shape_cast %10 : vector<1x1x96xf32> to vector<1x96xf32>
    %12 = vector.broadcast %11 : vector<1x96xf32> to vector<16x96xf32>
    %13 = arith.addf %9, %12 : vector<16x96xf32>
    %14 = vector.extract_strided_slice %13 {offsets = [0, 0], sizes = [16, 32], strides = [1, 1]} : vector<16x96xf32> to vector<16x32xf32>
    %cst_9 = arith.constant 2.500000e-01 : f32
    %15 = vector.broadcast %cst_9 : f32 to vector<16x32xf32>
    %16 = arith.mulf %14, %15 : vector<16x32xf32>
    %17 = vector.shape_cast %16 : vector<16x32xf32> to vector<2x8x32xf32>
    %18 = arith.truncf %17 : vector<2x8x32xf32> to vector<2x8x32xbf16>
    %19 = vector.extract_strided_slice %13 {offsets = [0, 32], sizes = [16, 32], strides = [1, 1]} : vector<16x96xf32> to vector<16x32xf32>
    %20 = vector.shape_cast %19 : vector<16x32xf32> to vector<2x8x32xf32>
    %21 = arith.truncf %20 : vector<2x8x32xf32> to vector<2x8x32xbf16>
    %22 = vector.extract_strided_slice %13 {offsets = [0, 64], sizes = [16, 32], strides = [1, 1]} : vector<16x96xf32> to vector<16x32xf32>
    %23 = vector.shape_cast %22 : vector<16x32xf32> to vector<2x8x32xf32>
    %24 = arith.truncf %23 : vector<2x8x32xf32> to vector<2x8x32xbf16>
    %25 = vector.extract_strided_slice %18 {offsets = [0, 0, 0], sizes = [2, 8, 16], strides = [1, 1, 1]} : vector<2x8x32xbf16> to vector<2x8x16xbf16>
    %26 = vector.extract_strided_slice %21 {offsets = [0, 0, 0], sizes = [2, 8, 16], strides = [1, 1, 1]} : vector<2x8x32xbf16> to vector<2x8x16xbf16>
    "tpu.trace_start"() <{level = 10 : i32, message = "bqd,bkd->bqk"}> : () -> ()
    %cst_10 = arith.constant dense<0.000000e+00> : vector<2x8x8xf32>
    %27 = tpu.matmul %25, %26, %cst_10 {dimension_numbers = #tpu.dot_dimension_numbers<[2], [2], [1], [1], [0, 0, 0, 1, 1, 1], [0], [0]>} : vector<2x8x16xbf16>, vector<2x8x16xbf16>, vector<2x8x8xf32> -> vector<2x8x8xf32>
    %cst_11 = arith.constant -1.000000e+06 : f32
    "tpu.trace_stop"() : () -> ()
    %28 = vector.shape_cast %5 : vector<2x1x8xi1> to vector<2x1x8xi1>
    %29 = vector.broadcast %28 : vector<2x1x8xi1> to vector<2x8x8xi1>
    %30 = vector.broadcast %cst_11 : f32 to vector<2x8x8xf32>
    %31 = arith.select %29, %27, %30 : vector<2x8x8xi1>, vector<2x8x8xf32>
    %cst_12 = arith.constant dense<0xFF800000> : vector<2x8xf32>
    %32 = vector.multi_reduction <maximumf>, %31, %cst_12 [2] : vector<2x8x8xf32> to vector<2x8xf32>
    %33 = vector.shape_cast %32 : vector<2x8xf32> to vector<2x8x1xf32>
    %34 = vector.broadcast %33 : vector<2x8x1xf32> to vector<2x8x8xf32>
    %35 = arith.subf %31, %34 : vector<2x8x8xf32>
    %36 = math.exp %35 : vector<2x8x8xf32>
    %cst_13 = arith.constant dense<0.000000e+00> : vector<2x8xf32>
    %37 = vector.multi_reduction <add>, %36, %cst_13 [2] : vector<2x8x8xf32> to vector<2x8xf32>
    %38 = vector.shape_cast %37 : vector<2x8xf32> to vector<2x8x1xf32>
    %39 = tpu.reciprocal %38 {approx = true} : vector<2x8x1xf32> -> vector<2x8x1xf32>
    %40 = vector.broadcast %39 : vector<2x8x1xf32> to vector<2x8x8xf32>
    %41 = arith.mulf %36, %40 : vector<2x8x8xf32>
    %42 = arith.truncf %41 : vector<2x8x8xf32> to vector<2x8x8xbf16>
    %43 = vector.extract_strided_slice %24 {offsets = [0, 0, 0], sizes = [2, 8, 16], strides = [1, 1, 1]} : vector<2x8x32xbf16> to vector<2x8x16xbf16>
    "tpu.trace_start"() <{level = 10 : i32, message = "bqk,bkd->bqd"}> : () -> ()
    %cst_14 = arith.constant dense<0.000000e+00> : vector<2x8x16xf32>
    %44 = tpu.matmul %42, %43, %cst_14 {dimension_numbers = #tpu.dot_dimension_numbers<[2], [1], [1], [2], [0, 0, 0, 1, 1, 2], [0], [0]>} : vector<2x8x8xbf16>, vector<2x8x16xbf16>, vector<2x8x16xf32> -> vector<2x8x16xf32>
    "tpu.trace_stop"() : () -> ()
    %45 = vector.extract_strided_slice %18 {offsets = [0, 0, 16], sizes = [2, 8, 16], strides = [1, 1, 1]} : vector<2x8x32xbf16> to vector<2x8x16xbf16>
    %46 = vector.extract_strided_slice %21 {offsets = [0, 0, 16], sizes = [2, 8, 16], strides = [1, 1, 1]} : vector<2x8x32xbf16> to vector<2x8x16xbf16>
    "tpu.trace_start"() <{level = 10 : i32, message = "bqd,bkd->bqk"}> : () -> ()
    %cst_15 = arith.constant dense<0.000000e+00> : vector<2x8x8xf32>
    %47 = tpu.matmul %45, %46, %cst_15 {dimension_numbers = #tpu.dot_dimension_numbers<[2], [2], [1], [1], [0, 0, 0, 1, 1, 1], [0], [0]>} : vector<2x8x16xbf16>, vector<2x8x16xbf16>, vector<2x8x8xf32> -> vector<2x8x8xf32>
    %cst_16 = arith.constant -1.000000e+06 : f32
    "tpu.trace_stop"() : () -> ()
    %48 = vector.shape_cast %5 : vector<2x1x8xi1> to vector<2x1x8xi1>
    %49 = vector.broadcast %48 : vector<2x1x8xi1> to vector<2x8x8xi1>
    %50 = vector.broadcast %cst_16 : f32 to vector<2x8x8xf32>
    %51 = arith.select %49, %47, %50 : vector<2x8x8xi1>, vector<2x8x8xf32>
    %cst_17 = arith.constant dense<0xFF800000> : vector<2x8xf32>
    %52 = vector.multi_reduction <maximumf>, %51, %cst_17 [2] : vector<2x8x8xf32> to vector<2x8xf32>
    %53 = vector.shape_cast %52 : vector<2x8xf32> to vector<2x8x1xf32>
    %54 = vector.broadcast %53 : vector<2x8x1xf32> to vector<2x8x8xf32>
    %55 = arith.subf %51, %54 : vector<2x8x8xf32>
    %56 = math.exp %55 : vector<2x8x8xf32>
    %cst_18 = arith.constant dense<0.000000e+00> : vector<2x8xf32>
    %57 = vector.multi_reduction <add>, %56, %cst_18 [2] : vector<2x8x8xf32> to vector<2x8xf32>
    %58 = vector.shape_cast %57 : vector<2x8xf32> to vector<2x8x1xf32>
    %59 = tpu.reciprocal %58 {approx = true} : vector<2x8x1xf32> -> vector<2x8x1xf32>
    %60 = vector.broadcast %59 : vector<2x8x1xf32> to vector<2x8x8xf32>
    %61 = arith.mulf %56, %60 : vector<2x8x8xf32>
    %62 = arith.truncf %61 : vector<2x8x8xf32> to vector<2x8x8xbf16>
    %63 = vector.extract_strided_slice %24 {offsets = [0, 0, 16], sizes = [2, 8, 16], strides = [1, 1, 1]} : vector<2x8x32xbf16> to vector<2x8x16xbf16>
    "tpu.trace_start"() <{level = 10 : i32, message = "bqk,bkd->bqd"}> : () -> ()
    %cst_19 = arith.constant dense<0.000000e+00> : vector<2x8x16xf32>
    %64 = tpu.matmul %62, %63, %cst_19 {dimension_numbers = #tpu.dot_dimension_numbers<[2], [1], [1], [2], [0, 0, 0, 1, 1, 2], [0], [0]>} : vector<2x8x8xbf16>, vector<2x8x16xbf16>, vector<2x8x16xf32> -> vector<2x8x16xf32>
    "tpu.trace_stop"() : () -> ()
    %65 = tpu.concatenate %44, %64 in 2 : vector<2x8x16xf32>, vector<2x8x16xf32> -> vector<2x8x32xf32>
    %66 = vector.shape_cast %65 : vector<2x8x32xf32> to vector<16x32xf32>
    %67 = arith.truncf %66 : vector<16x32xf32> to vector<16x32xbf16>
    %c0_20 = arith.constant 0 : index
    %c0_21 = arith.constant 0 : index
    %c0_22 = arith.constant 0 : index
    %68 = vector.load %arg5[%c0_20, %c0_21, %c0_22] : memref<2x32x32xbf16, #tpu.memory_space<vmem>>, vector<1x32x32xbf16>
    %69 = vector.shape_cast %68 : vector<1x32x32xbf16> to vector<32x32xbf16>
    %cst_23 = arith.constant dense<0.000000e+00> : vector<16x32xf32>
    %70 = tpu.matmul %67, %69, %cst_23 {dimension_numbers = #tpu.dot_dimension_numbers<[1], [0], [0], [1], [0, 0, 1, 1], [], []>} : vector<16x32xbf16>, vector<32x32xbf16>, vector<16x32xf32> -> vector<16x32xf32>
    %c0_24 = arith.constant 0 : index
    %c0_25 = arith.constant 0 : index
    %c0_26 = arith.constant 0 : index
    %71 = vector.load %arg6[%c0_24, %c0_25, %c0_26] : memref<2x1x32xf32, #tpu.memory_space<vmem>>, vector<1x1x32xf32>
    %72 = vector.shape_cast %71 : vector<1x1x32xf32> to vector<1x32xf32>
    %73 = vector.broadcast %72 : vector<1x32xf32> to vector<16x32xf32>
    %74 = arith.addf %70, %73 : vector<16x32xf32>
    %75 = arith.addf %0, %74 : vector<16x32xf32>
    %c0_27 = arith.constant 0 : index
    %c0_28 = arith.constant 0 : index
    %c0_29 = arith.constant 0 : index
    %76 = vector.load %arg7[%c0_27, %c0_28, %c0_29] : memref<2x1x32xf32, #tpu.memory_space<vmem>>, vector<1x1x32xf32>
    %77 = vector.shape_cast %76 : vector<1x1x32xf32> to vector<1x32xf32>
    %c0_30 = arith.constant 0 : index
    %c0_31 = arith.constant 0 : index
    %c0_32 = arith.constant 0 : index
    %78 = vector.load %arg8[%c0_30, %c0_31, %c0_32] : memref<2x1x32xf32, #tpu.memory_space<vmem>>, vector<1x1x32xf32>
    %79 = vector.shape_cast %78 : vector<1x1x32xf32> to vector<1x32xf32>
    %cst_33 = arith.constant dense<0.000000e+00> : vector<16xf32>
    %80 = vector.multi_reduction <add>, %75, %cst_33 [1] : vector<16x32xf32> to vector<16xf32>
    %81 = vector.shape_cast %80 : vector<16xf32> to vector<16x1xf32>
    %cst_34 = arith.constant 3.200000e+01 : f32
    %82 = vector.broadcast %cst_34 : f32 to vector<16x1xf32>
    %83 = arith.divf %81, %82 : vector<16x1xf32>
    %84 = vector.broadcast %83 : vector<16x1xf32> to vector<16x32xf32>
    %85 = arith.subf %75, %84 : vector<16x32xf32>
    %86 = arith.mulf %85, %85 : vector<16x32xf32>
    %cst_35 = arith.constant dense<0.000000e+00> : vector<16xf32>
    %87 = vector.multi_reduction <add>, %86, %cst_35 [1] : vector<16x32xf32> to vector<16xf32>
    %88 = vector.shape_cast %87 : vector<16xf32> to vector<16x1xf32>
    %cst_36 = arith.constant 3.200000e+01 : f32
    %89 = vector.broadcast %cst_36 : f32 to vector<16x1xf32>
    %90 = arith.divf %88, %89 : vector<16x1xf32>
    %91 = vector.broadcast %83 : vector<16x1xf32> to vector<16x32xf32>
    %92 = arith.subf %75, %91 : vector<16x32xf32>
    %cst_37 = arith.constant 9.99999974E-6 : f32
    %93 = vector.broadcast %cst_37 : f32 to vector<16x1xf32>
    %94 = arith.addf %90, %93 : vector<16x1xf32>
    %95 = math.rsqrt %94 : vector<16x1xf32>
    %96 = vector.broadcast %95 : vector<16x1xf32> to vector<16x32xf32>
    %97 = arith.mulf %92, %96 : vector<16x32xf32>
    %98 = vector.broadcast %77 : vector<1x32xf32> to vector<16x32xf32>
    %99 = arith.mulf %97, %98 : vector<16x32xf32>
    %100 = vector.broadcast %79 : vector<1x32xf32> to vector<16x32xf32>
    %101 = arith.addf %99, %100 : vector<16x32xf32>
    %102 = arith.truncf %101 : vector<16x32xf32> to vector<16x32xbf16>
    %c0_38 = arith.constant 0 : index
    %c0_39 = arith.constant 0 : index
    %c0_40 = arith.constant 0 : index
    %103 = vector.load %arg9[%c0_38, %c0_39, %c0_40] : memref<2x32x64xbf16, #tpu.memory_space<vmem>>, vector<1x32x64xbf16>
    %104 = vector.shape_cast %103 : vector<1x32x64xbf16> to vector<32x64xbf16>
    %cst_41 = arith.constant dense<0.000000e+00> : vector<16x64xf32>
    %105 = tpu.matmul %102, %104, %cst_41 {dimension_numbers = #tpu.dot_dimension_numbers<[1], [0], [0], [1], [0, 0, 1, 1], [], []>} : vector<16x32xbf16>, vector<32x64xbf16>, vector<16x64xf32> -> vector<16x64xf32>
    %c0_42 = arith.constant 0 : index
    %c0_43 = arith.constant 0 : index
    %c0_44 = arith.constant 0 : index
    %106 = vector.load %arg10[%c0_42, %c0_43, %c0_44] : memref<2x1x64xf32, #tpu.memory_space<vmem>>, vector<1x1x64xf32>
    %107 = vector.shape_cast %106 : vector<1x1x64xf32> to vector<1x64xf32>
    %108 = vector.broadcast %107 : vector<1x64xf32> to vector<16x64xf32>
    %109 = arith.addf %105, %108 : vector<16x64xf32>
    %cst_45 = arith.constant 0.000000e+00 : f32
    %110 = vector.broadcast %cst_45 : f32 to vector<16x64xf32>
    %111 = arith.maximumf %109, %110 : vector<16x64xf32>
    %112 = arith.truncf %111 : vector<16x64xf32> to vector<16x64xbf16>
    %c0_46 = arith.constant 0 : index
    %c0_47 = arith.constant 0 : index
    %c0_48 = arith.constant 0 : index
    %113 = vector.load %arg11[%c0_46, %c0_47, %c0_48] : memref<2x64x32xbf16, #tpu.memory_space<vmem>>, vector<1x64x32xbf16>
    %114 = vector.shape_cast %113 : vector<1x64x32xbf16> to vector<64x32xbf16>
    %cst_49 = arith.constant dense<0.000000e+00> : vector<16x32xf32>
    %115 = tpu.matmul %112, %114, %cst_49 {dimension_numbers = #tpu.dot_dimension_numbers<[1], [0], [0], [1], [0, 0, 1, 1], [], []>} : vector<16x64xbf16>, vector<64x32xbf16>, vector<16x32xf32> -> vector<16x32xf32>
    %c0_50 = arith.constant 0 : index
    %c0_51 = arith.constant 0 : index
    %c0_52 = arith.constant 0 : index
    %116 = vector.load %arg12[%c0_50, %c0_51, %c0_52] : memref<2x1x32xf32, #tpu.memory_space<vmem>>, vector<1x1x32xf32>
    %117 = vector.shape_cast %116 : vector<1x1x32xf32> to vector<1x32xf32>
    %118 = vector.broadcast %117 : vector<1x32xf32> to vector<16x32xf32>
    %119 = arith.addf %115, %118 : vector<16x32xf32>
    %120 = arith.addf %101, %119 : vector<16x32xf32>
    %c0_53 = arith.constant 0 : index
    %c0_54 = arith.constant 0 : index
    %c0_55 = arith.constant 0 : index
    %121 = vector.load %arg13[%c0_53, %c0_54, %c0_55] : memref<2x1x32xf32, #tpu.memory_space<vmem>>, vector<1x1x32xf32>
    %122 = vector.shape_cast %121 : vector<1x1x32xf32> to vector<1x32xf32>
    %c0_56 = arith.constant 0 : index
    %c0_57 = arith.constant 0 : index
    %c0_58 = arith.constant 0 : index
    %123 = vector.load %arg14[%c0_56, %c0_57, %c0_58] : memref<2x1x32xf32, #tpu.memory_space<vmem>>, vector<1x1x32xf32>
    %124 = vector.shape_cast %123 : vector<1x1x32xf32> to vector<1x32xf32>
    %cst_59 = arith.constant dense<0.000000e+00> : vector<16xf32>
    %125 = vector.multi_reduction <add>, %120, %cst_59 [1] : vector<16x32xf32> to vector<16xf32>
    %126 = vector.shape_cast %125 : vector<16xf32> to vector<16x1xf32>
    %cst_60 = arith.constant 3.200000e+01 : f32
    %127 = vector.broadcast %cst_60 : f32 to vector<16x1xf32>
    %128 = arith.divf %126, %127 : vector<16x1xf32>
    %129 = vector.broadcast %128 : vector<16x1xf32> to vector<16x32xf32>
    %130 = arith.subf %120, %129 : vector<16x32xf32>
    %131 = arith.mulf %130, %130 : vector<16x32xf32>
    %cst_61 = arith.constant dense<0.000000e+00> : vector<16xf32>
    %132 = vector.multi_reduction <add>, %131, %cst_61 [1] : vector<16x32xf32> to vector<16xf32>
    %133 = vector.shape_cast %132 : vector<16xf32> to vector<16x1xf32>
    %cst_62 = arith.constant 3.200000e+01 : f32
    %134 = vector.broadcast %cst_62 : f32 to vector<16x1xf32>
    %135 = arith.divf %133, %134 : vector<16x1xf32>
    %136 = vector.broadcast %128 : vector<16x1xf32> to vector<16x32xf32>
    %137 = arith.subf %120, %136 : vector<16x32xf32>
    %cst_63 = arith.constant 9.99999974E-6 : f32
    %138 = vector.broadcast %cst_63 : f32 to vector<16x1xf32>
    %139 = arith.addf %135, %138 : vector<16x1xf32>
    %140 = math.rsqrt %139 : vector<16x1xf32>
    %141 = vector.broadcast %140 : vector<16x1xf32> to vector<16x32xf32>
    %142 = arith.mulf %137, %141 : vector<16x32xf32>
    %143 = vector.broadcast %122 : vector<1x32xf32> to vector<16x32xf32>
    %144 = arith.mulf %142, %143 : vector<16x32xf32>
    %145 = vector.broadcast %124 : vector<1x32xf32> to vector<16x32xf32>
    %146 = arith.addf %144, %145 : vector<16x32xf32>
    %147 = arith.truncf %146 : vector<16x32xf32> to vector<16x32xbf16>
    %c1 = arith.constant 1 : index
    %c0_64 = arith.constant 0 : index
    %c0_65 = arith.constant 0 : index
    %148 = vector.load %arg3[%c1, %c0_64, %c0_65] : memref<2x32x96xbf16, #tpu.memory_space<vmem>>, vector<1x32x96xbf16>
    %149 = vector.shape_cast %148 : vector<1x32x96xbf16> to vector<32x96xbf16>
    %cst_66 = arith.constant dense<0.000000e+00> : vector<16x96xf32>
    %150 = tpu.matmul %147, %149, %cst_66 {dimension_numbers = #tpu.dot_dimension_numbers<[1], [0], [0], [1], [0, 0, 1, 1], [], []>} : vector<16x32xbf16>, vector<32x96xbf16>, vector<16x96xf32> -> vector<16x96xf32>
    %c1_67 = arith.constant 1 : index
    %c0_68 = arith.constant 0 : index
    %c0_69 = arith.constant 0 : index
    %151 = vector.load %arg4[%c1_67, %c0_68, %c0_69] : memref<2x1x96xf32, #tpu.memory_space<vmem>>, vector<1x1x96xf32>
    %152 = vector.shape_cast %151 : vector<1x1x96xf32> to vector<1x96xf32>
    %153 = vector.broadcast %152 : vector<1x96xf32> to vector<16x96xf32>
    %154 = arith.addf %150, %153 : vector<16x96xf32>
    %155 = vector.extract_strided_slice %154 {offsets = [0, 0], sizes = [16, 32], strides = [1, 1]} : vector<16x96xf32> to vector<16x32xf32>
    %cst_70 = arith.constant 2.500000e-01 : f32
    %156 = vector.broadcast %cst_70 : f32 to vector<16x32xf32>
    %157 = arith.mulf %155, %156 : vector<16x32xf32>
    %158 = vector.shape_cast %157 : vector<16x32xf32> to vector<2x8x32xf32>
    %159 = arith.truncf %158 : vector<2x8x32xf32> to vector<2x8x32xbf16>
    %160 = vector.extract_strided_slice %154 {offsets = [0, 32], sizes = [16, 32], strides = [1, 1]} : vector<16x96xf32> to vector<16x32xf32>
    %161 = vector.shape_cast %160 : vector<16x32xf32> to vector<2x8x32xf32>
    %162 = arith.truncf %161 : vector<2x8x32xf32> to vector<2x8x32xbf16>
    %163 = vector.extract_strided_slice %154 {offsets = [0, 64], sizes = [16, 32], strides = [1, 1]} : vector<16x96xf32> to vector<16x32xf32>
    %164 = vector.shape_cast %163 : vector<16x32xf32> to vector<2x8x32xf32>
    %165 = arith.truncf %164 : vector<2x8x32xf32> to vector<2x8x32xbf16>
    %166 = vector.extract_strided_slice %159 {offsets = [0, 0, 0], sizes = [2, 8, 16], strides = [1, 1, 1]} : vector<2x8x32xbf16> to vector<2x8x16xbf16>
    %167 = vector.extract_strided_slice %162 {offsets = [0, 0, 0], sizes = [2, 8, 16], strides = [1, 1, 1]} : vector<2x8x32xbf16> to vector<2x8x16xbf16>
    "tpu.trace_start"() <{level = 10 : i32, message = "bqd,bkd->bqk"}> : () -> ()
    %cst_71 = arith.constant dense<0.000000e+00> : vector<2x8x8xf32>
    %168 = tpu.matmul %166, %167, %cst_71 {dimension_numbers = #tpu.dot_dimension_numbers<[2], [2], [1], [1], [0, 0, 0, 1, 1, 1], [0], [0]>} : vector<2x8x16xbf16>, vector<2x8x16xbf16>, vector<2x8x8xf32> -> vector<2x8x8xf32>
    %cst_72 = arith.constant -1.000000e+06 : f32
    "tpu.trace_stop"() : () -> ()
    %169 = vector.shape_cast %5 : vector<2x1x8xi1> to vector<2x1x8xi1>
    %170 = vector.broadcast %169 : vector<2x1x8xi1> to vector<2x8x8xi1>
    %171 = vector.broadcast %cst_72 : f32 to vector<2x8x8xf32>
    %172 = arith.select %170, %168, %171 : vector<2x8x8xi1>, vector<2x8x8xf32>
    %cst_73 = arith.constant dense<0xFF800000> : vector<2x8xf32>
    %173 = vector.multi_reduction <maximumf>, %172, %cst_73 [2] : vector<2x8x8xf32> to vector<2x8xf32>
    %174 = vector.shape_cast %173 : vector<2x8xf32> to vector<2x8x1xf32>
    %175 = vector.broadcast %174 : vector<2x8x1xf32> to vector<2x8x8xf32>
    %176 = arith.subf %172, %175 : vector<2x8x8xf32>
    %177 = math.exp %176 : vector<2x8x8xf32>
    %cst_74 = arith.constant dense<0.000000e+00> : vector<2x8xf32>
    %178 = vector.multi_reduction <add>, %177, %cst_74 [2] : vector<2x8x8xf32> to vector<2x8xf32>
    %179 = vector.shape_cast %178 : vector<2x8xf32> to vector<2x8x1xf32>
    %180 = tpu.reciprocal %179 {approx = true} : vector<2x8x1xf32> -> vector<2x8x1xf32>
    %181 = vector.broadcast %180 : vector<2x8x1xf32> to vector<2x8x8xf32>
    %182 = arith.mulf %177, %181 : vector<2x8x8xf32>
    %183 = arith.truncf %182 : vector<2x8x8xf32> to vector<2x8x8xbf16>
    %184 = vector.extract_strided_slice %165 {offsets = [0, 0, 0], sizes = [2, 8, 16], strides = [1, 1, 1]} : vector<2x8x32xbf16> to vector<2x8x16xbf16>
    "tpu.trace_start"() <{level = 10 : i32, message = "bqk,bkd->bqd"}> : () -> ()
    %cst_75 = arith.constant dense<0.000000e+00> : vector<2x8x16xf32>
    %185 = tpu.matmul %183, %184, %cst_75 {dimension_numbers = #tpu.dot_dimension_numbers<[2], [1], [1], [2], [0, 0, 0, 1, 1, 2], [0], [0]>} : vector<2x8x8xbf16>, vector<2x8x16xbf16>, vector<2x8x16xf32> -> vector<2x8x16xf32>
    "tpu.trace_stop"() : () -> ()
    %186 = vector.extract_strided_slice %159 {offsets = [0, 0, 16], sizes = [2, 8, 16], strides = [1, 1, 1]} : vector<2x8x32xbf16> to vector<2x8x16xbf16>
    %187 = vector.extract_strided_slice %162 {offsets = [0, 0, 16], sizes = [2, 8, 16], strides = [1, 1, 1]} : vector<2x8x32xbf16> to vector<2x8x16xbf16>
    "tpu.trace_start"() <{level = 10 : i32, message = "bqd,bkd->bqk"}> : () -> ()
    %cst_76 = arith.constant dense<0.000000e+00> : vector<2x8x8xf32>
    %188 = tpu.matmul %186, %187, %cst_76 {dimension_numbers = #tpu.dot_dimension_numbers<[2], [2], [1], [1], [0, 0, 0, 1, 1, 1], [0], [0]>} : vector<2x8x16xbf16>, vector<2x8x16xbf16>, vector<2x8x8xf32> -> vector<2x8x8xf32>
    %cst_77 = arith.constant -1.000000e+06 : f32
    "tpu.trace_stop"() : () -> ()
    %189 = vector.shape_cast %5 : vector<2x1x8xi1> to vector<2x1x8xi1>
    %190 = vector.broadcast %189 : vector<2x1x8xi1> to vector<2x8x8xi1>
    %191 = vector.broadcast %cst_77 : f32 to vector<2x8x8xf32>
    %192 = arith.select %190, %188, %191 : vector<2x8x8xi1>, vector<2x8x8xf32>
    %cst_78 = arith.constant dense<0xFF800000> : vector<2x8xf32>
    %193 = vector.multi_reduction <maximumf>, %192, %cst_78 [2] : vector<2x8x8xf32> to vector<2x8xf32>
    %194 = vector.shape_cast %193 : vector<2x8xf32> to vector<2x8x1xf32>
    %195 = vector.broadcast %194 : vector<2x8x1xf32> to vector<2x8x8xf32>
    %196 = arith.subf %192, %195 : vector<2x8x8xf32>
    %197 = math.exp %196 : vector<2x8x8xf32>
    %cst_79 = arith.constant dense<0.000000e+00> : vector<2x8xf32>
    %198 = vector.multi_reduction <add>, %197, %cst_79 [2] : vector<2x8x8xf32> to vector<2x8xf32>
    %199 = vector.shape_cast %198 : vector<2x8xf32> to vector<2x8x1xf32>
    %200 = tpu.reciprocal %199 {approx = true} : vector<2x8x1xf32> -> vector<2x8x1xf32>
    %201 = vector.broadcast %200 : vector<2x8x1xf32> to vector<2x8x8xf32>
    %202 = arith.mulf %197, %201 : vector<2x8x8xf32>
    %203 = arith.truncf %202 : vector<2x8x8xf32> to vector<2x8x8xbf16>
    %204 = vector.extract_strided_slice %165 {offsets = [0, 0, 16], sizes = [2, 8, 16], strides = [1, 1, 1]} : vector<2x8x32xbf16> to vector<2x8x16xbf16>
    "tpu.trace_start"() <{level = 10 : i32, message = "bqk,bkd->bqd"}> : () -> ()
    %cst_80 = arith.constant dense<0.000000e+00> : vector<2x8x16xf32>
    %205 = tpu.matmul %203, %204, %cst_80 {dimension_numbers = #tpu.dot_dimension_numbers<[2], [1], [1], [2], [0, 0, 0, 1, 1, 2], [0], [0]>} : vector<2x8x8xbf16>, vector<2x8x16xbf16>, vector<2x8x16xf32> -> vector<2x8x16xf32>
    "tpu.trace_stop"() : () -> ()
    %206 = tpu.concatenate %185, %205 in 2 : vector<2x8x16xf32>, vector<2x8x16xf32> -> vector<2x8x32xf32>
    %207 = vector.shape_cast %206 : vector<2x8x32xf32> to vector<16x32xf32>
    %208 = arith.truncf %207 : vector<16x32xf32> to vector<16x32xbf16>
    %c1_81 = arith.constant 1 : index
    %c0_82 = arith.constant 0 : index
    %c0_83 = arith.constant 0 : index
    %209 = vector.load %arg5[%c1_81, %c0_82, %c0_83] : memref<2x32x32xbf16, #tpu.memory_space<vmem>>, vector<1x32x32xbf16>
    %210 = vector.shape_cast %209 : vector<1x32x32xbf16> to vector<32x32xbf16>
    %cst_84 = arith.constant dense<0.000000e+00> : vector<16x32xf32>
    %211 = tpu.matmul %208, %210, %cst_84 {dimension_numbers = #tpu.dot_dimension_numbers<[1], [0], [0], [1], [0, 0, 1, 1], [], []>} : vector<16x32xbf16>, vector<32x32xbf16>, vector<16x32xf32> -> vector<16x32xf32>
    %c1_85 = arith.constant 1 : index
    %c0_86 = arith.constant 0 : index
    %c0_87 = arith.constant 0 : index
    %212 = vector.load %arg6[%c1_85, %c0_86, %c0_87] : memref<2x1x32xf32, #tpu.memory_space<vmem>>, vector<1x1x32xf32>
    %213 = vector.shape_cast %212 : vector<1x1x32xf32> to vector<1x32xf32>
    %214 = vector.broadcast %213 : vector<1x32xf32> to vector<16x32xf32>
    %215 = arith.addf %211, %214 : vector<16x32xf32>
    %216 = arith.addf %146, %215 : vector<16x32xf32>
    %c1_88 = arith.constant 1 : index
    %c0_89 = arith.constant 0 : index
    %c0_90 = arith.constant 0 : index
    %217 = vector.load %arg7[%c1_88, %c0_89, %c0_90] : memref<2x1x32xf32, #tpu.memory_space<vmem>>, vector<1x1x32xf32>
    %218 = vector.shape_cast %217 : vector<1x1x32xf32> to vector<1x32xf32>
    %c1_91 = arith.constant 1 : index
    %c0_92 = arith.constant 0 : index
    %c0_93 = arith.constant 0 : index
    %219 = vector.load %arg8[%c1_91, %c0_92, %c0_93] : memref<2x1x32xf32, #tpu.memory_space<vmem>>, vector<1x1x32xf32>
    %220 = vector.shape_cast %219 : vector<1x1x32xf32> to vector<1x32xf32>
    %cst_94 = arith.constant dense<0.000000e+00> : vector<16xf32>
    %221 = vector.multi_reduction <add>, %216, %cst_94 [1] : vector<16x32xf32> to vector<16xf32>
    %222 = vector.shape_cast %221 : vector<16xf32> to vector<16x1xf32>
    %cst_95 = arith.constant 3.200000e+01 : f32
    %223 = vector.broadcast %cst_95 : f32 to vector<16x1xf32>
    %224 = arith.divf %222, %223 : vector<16x1xf32>
    %225 = vector.broadcast %224 : vector<16x1xf32> to vector<16x32xf32>
    %226 = arith.subf %216, %225 : vector<16x32xf32>
    %227 = arith.mulf %226, %226 : vector<16x32xf32>
    %cst_96 = arith.constant dense<0.000000e+00> : vector<16xf32>
    %228 = vector.multi_reduction <add>, %227, %cst_96 [1] : vector<16x32xf32> to vector<16xf32>
    %229 = vector.shape_cast %228 : vector<16xf32> to vector<16x1xf32>
    %cst_97 = arith.constant 3.200000e+01 : f32
    %230 = vector.broadcast %cst_97 : f32 to vector<16x1xf32>
    %231 = arith.divf %229, %230 : vector<16x1xf32>
    %232 = vector.broadcast %224 : vector<16x1xf32> to vector<16x32xf32>
    %233 = arith.subf %216, %232 : vector<16x32xf32>
    %cst_98 = arith.constant 9.99999974E-6 : f32
    %234 = vector.broadcast %cst_98 : f32 to vector<16x1xf32>
    %235 = arith.addf %231, %234 : vector<16x1xf32>
    %236 = math.rsqrt %235 : vector<16x1xf32>
    %237 = vector.broadcast %236 : vector<16x1xf32> to vector<16x32xf32>
    %238 = arith.mulf %233, %237 : vector<16x32xf32>
    %239 = vector.broadcast %218 : vector<1x32xf32> to vector<16x32xf32>
    %240 = arith.mulf %238, %239 : vector<16x32xf32>
    %241 = vector.broadcast %220 : vector<1x32xf32> to vector<16x32xf32>
    %242 = arith.addf %240, %241 : vector<16x32xf32>
    %243 = arith.truncf %242 : vector<16x32xf32> to vector<16x32xbf16>
    %c1_99 = arith.constant 1 : index
    %c0_100 = arith.constant 0 : index
    %c0_101 = arith.constant 0 : index
    %244 = vector.load %arg9[%c1_99, %c0_100, %c0_101] : memref<2x32x64xbf16, #tpu.memory_space<vmem>>, vector<1x32x64xbf16>
    %245 = vector.shape_cast %244 : vector<1x32x64xbf16> to vector<32x64xbf16>
    %cst_102 = arith.constant dense<0.000000e+00> : vector<16x64xf32>
    %246 = tpu.matmul %243, %245, %cst_102 {dimension_numbers = #tpu.dot_dimension_numbers<[1], [0], [0], [1], [0, 0, 1, 1], [], []>} : vector<16x32xbf16>, vector<32x64xbf16>, vector<16x64xf32> -> vector<16x64xf32>
    %c1_103 = arith.constant 1 : index
    %c0_104 = arith.constant 0 : index
    %c0_105 = arith.constant 0 : index
    %247 = vector.load %arg10[%c1_103, %c0_104, %c0_105] : memref<2x1x64xf32, #tpu.memory_space<vmem>>, vector<1x1x64xf32>
    %248 = vector.shape_cast %247 : vector<1x1x64xf32> to vector<1x64xf32>
    %249 = vector.broadcast %248 : vector<1x64xf32> to vector<16x64xf32>
    %250 = arith.addf %246, %249 : vector<16x64xf32>
    %cst_106 = arith.constant 0.000000e+00 : f32
    %251 = vector.broadcast %cst_106 : f32 to vector<16x64xf32>
    %252 = arith.maximumf %250, %251 : vector<16x64xf32>
    %253 = arith.truncf %252 : vector<16x64xf32> to vector<16x64xbf16>
    %c1_107 = arith.constant 1 : index
    %c0_108 = arith.constant 0 : index
    %c0_109 = arith.constant 0 : index
    %254 = vector.load %arg11[%c1_107, %c0_108, %c0_109] : memref<2x64x32xbf16, #tpu.memory_space<vmem>>, vector<1x64x32xbf16>
    %255 = vector.shape_cast %254 : vector<1x64x32xbf16> to vector<64x32xbf16>
    %cst_110 = arith.constant dense<0.000000e+00> : vector<16x32xf32>
    %256 = tpu.matmul %253, %255, %cst_110 {dimension_numbers = #tpu.dot_dimension_numbers<[1], [0], [0], [1], [0, 0, 1, 1], [], []>} : vector<16x64xbf16>, vector<64x32xbf16>, vector<16x32xf32> -> vector<16x32xf32>
    %c1_111 = arith.constant 1 : index
    %c0_112 = arith.constant 0 : index
    %c0_113 = arith.constant 0 : index
    %257 = vector.load %arg12[%c1_111, %c0_112, %c0_113] : memref<2x1x32xf32, #tpu.memory_space<vmem>>, vector<1x1x32xf32>
    %258 = vector.shape_cast %257 : vector<1x1x32xf32> to vector<1x32xf32>
    %259 = vector.broadcast %258 : vector<1x32xf32> to vector<16x32xf32>
    %260 = arith.addf %256, %259 : vector<16x32xf32>
    %261 = arith.addf %242, %260 : vector<16x32xf32>
    %c1_114 = arith.constant 1 : index
    %c0_115 = arith.constant 0 : index
    %c0_116 = arith.constant 0 : index
    %262 = vector.load %arg13[%c1_114, %c0_115, %c0_116] : memref<2x1x32xf32, #tpu.memory_space<vmem>>, vector<1x1x32xf32>
    %263 = vector.shape_cast %262 : vector<1x1x32xf32> to vector<1x32xf32>
    %c1_117 = arith.constant 1 : index
    %c0_118 = arith.constant 0 : index
    %c0_119 = arith.constant 0 : index
    %264 = vector.load %arg14[%c1_117, %c0_118, %c0_119] : memref<2x1x32xf32, #tpu.memory_space<vmem>>, vector<1x1x32xf32>
    %265 = vector.shape_cast %264 : vector<1x1x32xf32> to vector<1x32xf32>
    %cst_120 = arith.constant dense<0.000000e+00> : vector<16xf32>
    %266 = vector.multi_reduction <add>, %261, %cst_120 [1] : vector<16x32xf32> to vector<16xf32>
    %267 = vector.shape_cast %266 : vector<16xf32> to vector<16x1xf32>
    %cst_121 = arith.constant 3.200000e+01 : f32
    %268 = vector.broadcast %cst_121 : f32 to vector<16x1xf32>
    %269 = arith.divf %267, %268 : vector<16x1xf32>
    %270 = vector.broadcast %269 : vector<16x1xf32> to vector<16x32xf32>
    %271 = arith.subf %261, %270 : vector<16x32xf32>
    %272 = arith.mulf %271, %271 : vector<16x32xf32>
    %cst_122 = arith.constant dense<0.000000e+00> : vector<16xf32>
    %273 = vector.multi_reduction <add>, %272, %cst_122 [1] : vector<16x32xf32> to vector<16xf32>
    %274 = vector.shape_cast %273 : vector<16xf32> to vector<16x1xf32>
    %cst_123 = arith.constant 3.200000e+01 : f32
    %275 = vector.broadcast %cst_123 : f32 to vector<16x1xf32>
    %276 = arith.divf %274, %275 : vector<16x1xf32>
    %277 = vector.broadcast %269 : vector<16x1xf32> to vector<16x32xf32>
    %278 = arith.subf %261, %277 : vector<16x32xf32>
    %cst_124 = arith.constant 9.99999974E-6 : f32
    %279 = vector.broadcast %cst_124 : f32 to vector<16x1xf32>
    %280 = arith.addf %276, %279 : vector<16x1xf32>
    %281 = math.rsqrt %280 : vector<16x1xf32>
    %282 = vector.broadcast %281 : vector<16x1xf32> to vector<16x32xf32>
    %283 = arith.mulf %278, %282 : vector<16x32xf32>
    %284 = vector.broadcast %263 : vector<1x32xf32> to vector<16x32xf32>
    %285 = arith.mulf %283, %284 : vector<16x32xf32>
    %286 = vector.broadcast %265 : vector<1x32xf32> to vector<16x32xf32>
    %287 = arith.addf %285, %286 : vector<16x32xf32>
    %c0_125 = arith.constant 0 : index
    %c0_126 = arith.constant 0 : index
    %288 = vector.load %arg25[%c0_125, %c0_126] : memref<16x32xf32, #tpu.memory_space<vmem>>, vector<16x32xf32>
    tpu.vector_store %arg25[%c0_125, %c0_126], %287 {strides = array<i32>} : memref<16x32xf32, #tpu.memory_space<vmem>>, vector<16x32xf32>,
    %c0_127 = arith.constant 0 : index
    %c0_128 = arith.constant 0 : index
    %289 = vector.load %arg2[%c0_127, %c0_128] : memref<6x1xi32, #tpu.memory_space<vmem>>, vector<6x1xi32>
    %290 = tpu.iota {dimensions = array<i32: 1>} : vector<6x16xi32>
    %291 = vector.broadcast %289 : vector<6x1xi32> to vector<6x16xi32>
    %292 = arith.cmpi eq, %290, %291 : vector<6x16xi32>
    %293 = arith.extui %292 : vector<6x16xi1> to vector<6x16xi32>
    %294 = arith.sitofp %293 : vector<6x16xi32> to vector<6x16xf32>
    %cst_129 = arith.constant dense<0.000000e+00> : vector<6x32xf32>
    %295 = tpu.matmul %294, %287, %cst_129 {dimension_numbers = #tpu.dot_dimension_numbers<[1], [0], [0], [1], [0, 0, 1, 1], [], []>} : vector<6x16xf32>, vector<16x32xf32>, vector<6x32xf32> -> vector<6x32xf32>
    %296 = arith.truncf %295 : vector<6x32xf32> to vector<6x32xbf16>
    %c0_130 = arith.constant 0 : index
    %c0_131 = arith.constant 0 : index
    %297 = vector.load %arg15[%c0_130, %c0_131] : memref<32x32xbf16, #tpu.memory_space<vmem>>, vector<32x32xbf16>
    %cst_132 = arith.constant dense<0.000000e+00> : vector<6x32xf32>
    %298 = tpu.matmul %296, %297, %cst_132 {dimension_numbers = #tpu.dot_dimension_numbers<[1], [0], [0], [1], [0, 0, 1, 1], [], []>} : vector<6x32xbf16>, vector<32x32xbf16>, vector<6x32xf32> -> vector<6x32xf32>
    %c0_133 = arith.constant 0 : index
    %c0_134 = arith.constant 0 : index
    %299 = vector.load %arg16[%c0_133, %c0_134] : memref<1x32xf32, #tpu.memory_space<vmem>>, vector<1x32xf32>
    %300 = vector.broadcast %299 : vector<1x32xf32> to vector<6x32xf32>
    %301 = arith.addf %298, %300 : vector<6x32xf32>
    %cst_135 = arith.constant 0.000000e+00 : f32
    %302 = vector.broadcast %cst_135 : f32 to vector<6x32xf32>
    %303 = arith.maximumf %301, %302 : vector<6x32xf32>
    %c0_136 = arith.constant 0 : index
    %c0_137 = arith.constant 0 : index
    %304 = vector.load %arg17[%c0_136, %c0_137] : memref<1x32xf32, #tpu.memory_space<vmem>>, vector<1x32xf32>
    %c0_138 = arith.constant 0 : index
    %c0_139 = arith.constant 0 : index
    %305 = vector.load %arg18[%c0_138, %c0_139] : memref<1x32xf32, #tpu.memory_space<vmem>>, vector<1x32xf32>
    %cst_140 = arith.constant dense<0.000000e+00> : vector<6xf32>
    %306 = vector.multi_reduction <add>, %303, %cst_140 [1] : vector<6x32xf32> to vector<6xf32>
    %307 = vector.shape_cast %306 : vector<6xf32> to vector<6x1xf32>
    %cst_141 = arith.constant 3.200000e+01 : f32
    %308 = vector.broadcast %cst_141 : f32 to vector<6x1xf32>
    %309 = arith.divf %307, %308 : vector<6x1xf32>
    %310 = vector.broadcast %309 : vector<6x1xf32> to vector<6x32xf32>
    %311 = arith.subf %303, %310 : vector<6x32xf32>
    %312 = arith.mulf %311, %311 : vector<6x32xf32>
    %cst_142 = arith.constant dense<0.000000e+00> : vector<6xf32>
    %313 = vector.multi_reduction <add>, %312, %cst_142 [1] : vector<6x32xf32> to vector<6xf32>
    %314 = vector.shape_cast %313 : vector<6xf32> to vector<6x1xf32>
    %cst_143 = arith.constant 3.200000e+01 : f32
    %315 = vector.broadcast %cst_143 : f32 to vector<6x1xf32>
    %316 = arith.divf %314, %315 : vector<6x1xf32>
    %317 = vector.broadcast %309 : vector<6x1xf32> to vector<6x32xf32>
    %318 = arith.subf %303, %317 : vector<6x32xf32>
    %cst_144 = arith.constant 9.99999974E-6 : f32
    %319 = vector.broadcast %cst_144 : f32 to vector<6x1xf32>
    %320 = arith.addf %316, %319 : vector<6x1xf32>
    %321 = math.rsqrt %320 : vector<6x1xf32>
    %322 = vector.broadcast %321 : vector<6x1xf32> to vector<6x32xf32>
    %323 = arith.mulf %318, %322 : vector<6x32xf32>
    %324 = vector.broadcast %304 : vector<1x32xf32> to vector<6x32xf32>
    %325 = arith.mulf %323, %324 : vector<6x32xf32>
    %326 = vector.broadcast %305 : vector<1x32xf32> to vector<6x32xf32>
    %327 = arith.addf %325, %326 : vector<6x32xf32>
    %328 = arith.truncf %327 : vector<6x32xf32> to vector<6x32xbf16>
    %c0_145 = arith.constant 0 : index
    %c0_146 = arith.constant 0 : index
    %329 = vector.load %arg19[%c0_145, %c0_146] : memref<32x128xbf16, #tpu.memory_space<vmem>>, vector<32x128xbf16>
    %cst_147 = arith.constant dense<0.000000e+00> : vector<6x128xf32>
    %330 = tpu.matmul %328, %329, %cst_147 {dimension_numbers = #tpu.dot_dimension_numbers<[1], [0], [0], [1], [0, 0, 1, 1], [], []>} : vector<6x32xbf16>, vector<32x128xbf16>, vector<6x128xf32> -> vector<6x128xf32>
    %c0_148 = arith.constant 0 : index
    %c0_149 = arith.constant 0 : index
    %331 = vector.load %arg20[%c0_148, %c0_149] : memref<1x128xf32, #tpu.memory_space<vmem>>, vector<1x128xf32>
    %332 = vector.broadcast %331 : vector<1x128xf32> to vector<6x128xf32>
    %333 = arith.addf %330, %332 : vector<6x128xf32>
    %c0_150 = arith.constant 0 : index
    %c0_151 = arith.constant 0 : index
    %334 = vector.load %arg26[%c0_150, %c0_151] : memref<6x128xf32, #tpu.memory_space<vmem>>, vector<6x128xf32>
    tpu.vector_store %arg26[%c0_150, %c0_151], %333 {strides = array<i32>} : memref<6x128xf32, #tpu.memory_space<vmem>>, vector<6x128xf32>,
    %335 = tpu.iota {dimensions = array<i32: 0>} : vector<2x16xi32>
    %336 = tpu.iota {dimensions = array<i32: 1>} : vector<2x16xi32>
    %c8_i32 = arith.constant 8 : i32
    %337 = vector.broadcast %c8_i32 : i32 to vector<2x16xi32>
    %338 = arith.muli %335, %337 : vector<2x16xi32>
    %339 = arith.cmpi eq, %336, %338 : vector<2x16xi32>
    %340 = arith.extui %339 : vector<2x16xi1> to vector<2x16xi32>
    %341 = arith.sitofp %340 : vector<2x16xi32> to vector<2x16xf32>
    %cst_152 = arith.constant dense<0.000000e+00> : vector<2x32xf32>
    %342 = tpu.matmul %341, %287, %cst_152 {dimension_numbers = #tpu.dot_dimension_numbers<[1], [0], [0], [1], [0, 0, 1, 1], [], []>} : vector<2x16xf32>, vector<16x32xf32>, vector<2x32xf32> -> vector<2x32xf32>
    %343 = arith.truncf %342 : vector<2x32xf32> to vector<2x32xbf16>
    %c0_153 = arith.constant 0 : index
    %c0_154 = arith.constant 0 : index
    %344 = vector.load %arg21[%c0_153, %c0_154] : memref<32x32xbf16, #tpu.memory_space<vmem>>, vector<32x32xbf16>
    %cst_155 = arith.constant dense<0.000000e+00> : vector<2x32xf32>
    %345 = tpu.matmul %343, %344, %cst_155 {dimension_numbers = #tpu.dot_dimension_numbers<[1], [0], [0], [1], [0, 0, 1, 1], [], []>} : vector<2x32xbf16>, vector<32x32xbf16>, vector<2x32xf32> -> vector<2x32xf32>
    %c0_156 = arith.constant 0 : index
    %c0_157 = arith.constant 0 : index
    %346 = vector.load %arg22[%c0_156, %c0_157] : memref<1x32xf32, #tpu.memory_space<vmem>>, vector<1x32xf32>
    %347 = vector.broadcast %346 : vector<1x32xf32> to vector<2x32xf32>
    %348 = arith.addf %345, %347 : vector<2x32xf32>
    %349 = math.tanh %348 : vector<2x32xf32>
    %350 = arith.truncf %349 : vector<2x32xf32> to vector<2x32xbf16>
    %c0_158 = arith.constant 0 : index
    %c0_159 = arith.constant 0 : index
    %351 = vector.load %arg23[%c0_158, %c0_159] : memref<32x2xbf16, #tpu.memory_space<vmem>>, vector<32x2xbf16>
    %cst_160 = arith.constant dense<0.000000e+00> : vector<2x2xf32>
    %352 = tpu.matmul %350, %351, %cst_160 {dimension_numbers = #tpu.dot_dimension_numbers<[1], [0], [0], [1], [0, 0, 1, 1], [], []>} : vector<2x32xbf16>, vector<32x2xbf16>, vector<2x2xf32> -> vector<2x2xf32>
    %c0_161 = arith.constant 0 : index
    %c0_162 = arith.constant 0 : index
    %353 = vector.load %arg24[%c0_161, %c0_162] : memref<1x2xf32, #tpu.memory_space<vmem>>, vector<1x2xf32>
    %354 = vector.broadcast %353 : vector<1x2xf32> to vector<2x2xf32>
    %355 = arith.addf %352, %354 : vector<2x2xf32>
    %c0_163 = arith.constant 0 : index
    %c0_164 = arith.constant 0 : index
    %356 = vector.load %arg27[%c0_163, %c0_164] : memref<2x2xf32, #tpu.memory_space<vmem>>, vector<2x2xf32>
    tpu.vector_store %arg27[%c0_163, %c0_164], %355 {strides = array<i32>} : memref<2x2xf32, #tpu.memory_space<vmem>>, vector<2x2xf32>,
    return
  }
}

</mosaic_0001>

<llo_original>
// kernel: tpu_custom_call.1
$region0: #{tpu_custom_call.1}
  #allocation0 [shape = 'u32[]', space=smem, size = 0x4, offset = 0x4, fixed_abs, tag = 'smem constant byte address 0x4 - core index']
  #allocation1 [shape = 'u32[144,128]{1,0:T(1,128)}', space=vmem, size = 0x12000, scoped, tag = 'internal scratch']
  %s0 = inlined_call_operand.vmem [shape: f32[16,32], index: 0, kind: input, shape index: {}]
  %s1 = inlined_call_operand.vmem [shape: s32[2,1], index: 1, kind: input, shape index: {}]
  %s2 = inlined_call_operand.vmem [shape: s32[6,1], index: 2, kind: input, shape index: {}]
  %s3 = inlined_call_operand.vmem [shape: bf16[2,32,96], index: 3, kind: input, shape index: {}]
  %s4 = inlined_call_operand.hbm [shape: f32[2,1,96], index: 4, kind: input, shape index: {}]
  %s5 = inlined_call_operand.vmem [shape: bf16[2,32,32], index: 5, kind: input, shape index: {}]
  %s6 = inlined_call_operand.hbm [shape: f32[2,1,32], index: 6, kind: input, shape index: {}]
  %s7 = inlined_call_operand.hbm [shape: f32[2,1,32], index: 7, kind: input, shape index: {}]
  %s8 = inlined_call_operand.hbm [shape: f32[2,1,32], index: 8, kind: input, shape index: {}]
  %s9 = inlined_call_operand.vmem [shape: bf16[2,32,64], index: 9, kind: input, shape index: {}]
  %s10 = inlined_call_operand.hbm [shape: f32[2,1,64], index: 10, kind: input, shape index: {}]
  %s11 = inlined_call_operand.vmem [shape: bf16[2,64,32], index: 11, kind: input, shape index: {}]
  %s12 = inlined_call_operand.hbm [shape: f32[2,1,32], index: 12, kind: input, shape index: {}]
  %s13 = inlined_call_operand.hbm [shape: f32[2,1,32], index: 13, kind: input, shape index: {}]
  %s14 = inlined_call_operand.hbm [shape: f32[2,1,32], index: 14, kind: input, shape index: {}]
  %s15 = inlined_call_operand.vmem [shape: bf16[32,32], index: 15, kind: input, shape index: {}]
  %s16 = inlined_call_operand.vmem [shape: f32[1,32], index: 16, kind: input, shape index: {}]
  %s17 = inlined_call_operand.hbm [shape: f32[1,32], index: 17, kind: input, shape index: {}]
  %s18 = inlined_call_operand.hbm [shape: f32[1,32], index: 18, kind: input, shape index: {}]
  %s19 = inlined_call_operand.vmem [shape: bf16[32,128], index: 19, kind: input, shape index: {}]
  %s20 = inlined_call_operand.vmem [shape: f32[1,128], index: 20, kind: input, shape index: {}]
  %s21 = inlined_call_operand.vmem [shape: bf16[32,32], index: 21, kind: input, shape index: {}]
  %s22 = inlined_call_operand.vmem [shape: f32[1,32], index: 22, kind: input, shape index: {}]
  %s23 = inlined_call_operand.vmem [shape: bf16[32,2], index: 23, kind: input, shape index: {}]
  %s24 = inlined_call_operand.vmem [shape: f32[1,2], index: 24, kind: input, shape index: {}]
  %s25 = inlined_call_operand.hbm [shape: f32[16,32], index: 25, kind: output, shape index: {0}]
  %s26 = inlined_call_operand.hbm [shape: f32[6,128], index: 26, kind: output, shape index: {1}]
  %s27 = inlined_call_operand.hbm [shape: f32[2,2], index: 27, kind: output, shape index: {2}]
  %28 = xla_tuple %s25, %s26, %s27
  %s29 = sld [smem:[#allocation0]]
  $region166: #{tpu_custom_call.1} parent=0
    _
  %s31 = ssub.s32 1, %s29
  %s32 = scalar_select 0, %s31, %s29
  $region1: #{tpu_custom_call.1} parent=0
    #allocation2 [shape = 'u8[1024]{0}', space=vmem, size = 0x400, scoped, tag = 'input window, operand 4, single buffered']
    #allocation3 [shape = 's32[1]{0}', space=sflag, size = 0x4, scoped, tag = 'scoped memory for tpu_custom_call.1']
    #allocation4 [shape = 's32[1]{0}', space=sflag, size = 0x4, scoped, tag = 'scoped memory for tpu_custom_call.1']
    #allocation5 [shape = 'u8[1024]{0}', space=vmem, size = 0x400, scoped, tag = 'input window, operand 6, single buffered']
    #allocation6 [shape = 's32[1]{0}', space=sflag, size = 0x4, scoped, tag = 'scoped memory for tpu_custom_call.1']
    #allocation7 [shape = 'u8[1024]{0}', space=vmem, size = 0x400, scoped, tag = 'input window, operand 7, single buffered']
    #allocation8 [shape = 'u8[1024]{0}', space=vmem, size = 0x400, scoped, tag = 'input window, operand 8, single buffered']
    #allocation9 [shape = 's32[1]{0}', space=sflag, size = 0x4, scoped, tag = 'scoped memory for tpu_custom_call.1']
    #allocation10 [shape = 'u8[1024]{0}', space=vmem, size = 0x400, scoped, tag = 'input window, operand 10, single buffered']
    #allocation11 [shape = 'u8[1024]{0}', space=vmem, size = 0x400, scoped, tag = 'input window, operand 12, single buffered']
    #allocation12 [shape = 's32[1]{0}', space=sflag, size = 0x4, scoped, tag = 'scoped memory for tpu_custom_call.1']
    #allocation13 [shape = 'u8[1024]{0}', space=vmem, size = 0x400, scoped, tag = 'input window, operand 13, single buffered']
    #allocation14 [shape = 'u8[1024]{0}', space=vmem, size = 0x400, scoped, tag = 'input window, operand 14, single buffered']
    #allocation15 [shape = 's32[1]{0}', space=sflag, size = 0x4, scoped, tag = 'scoped memory for tpu_custom_call.1']
    #allocation16 [shape = 'u8[512]{0}', space=vmem, size = 0x400, scoped, tag = 'input window, operand 17, single buffered']
    #allocation17 [shape = 'u8[512]{0}', space=vmem, size = 0x400, scoped, tag = 'input window, operand 18, single buffered']
    #allocation18 [shape = 's32[1]{0}', space=sflag, size = 0x4, scoped, tag = 'scoped memory for tpu_custom_call.1']
    #allocation19 [shape = 'u8[8192]{0}', space=vmem, size = 0x2000, scoped, tag = 'output window, operand 0, single buffered']
    #allocation20 [shape = 'u8[4096]{0}', space=vmem, size = 0x1000, scoped, tag = 'output window, operand 1, single buffered']
    #allocation21 [shape = 's32[1]{0}', space=sflag, size = 0x4, scoped, tag = 'scoped memory for tpu_custom_call.1']
    #allocation22 [shape = 'u8[1024]{0}', space=vmem, size = 0x400, scoped, tag = 'output window, operand 2, single buffered']
    %33 = vsyncpa [#allocation3], 0
    %34 = vsyncpa [#allocation6], 0
    %35 = vsyncpa [#allocation9], 0
    %36 = vsyncpa [#allocation12], 0
    %37 = vsyncpa [#allocation15], 0
    %38 = vsyncpa [#allocation18], 0
    %39 = vsyncpa [#allocation4], 0
    %40 = vsyncpa [#allocation21], 0
    // Predicated region
    $region2: #{tpu_custom_call.1} parent=1 // pred_check
      _
    $region3: #{tpu_custom_call.1} parent=1 // pred_check_branch
      %42 = sbr.rel (0) target = $region5
    $region4: #{tpu_custom_call.1} parent=1 // pred_region
      _
    $region5: #{tpu_custom_call.1} parent=1 // pred_fallthru
      _
    // Predicated region
    $region6: #{tpu_custom_call.1} parent=1 // pred_check
      _
    $region7: #{tpu_custom_call.1} parent=1 // pred_check_branch
      %44 = sbr.rel (0) target = $region9
    $region8: #{tpu_custom_call.1} parent=1 // pred_region
      _
    $region9: #{tpu_custom_call.1} parent=1 // pred_fallthru
      _
    // Predicated region
    $region10: #{tpu_custom_call.1} parent=1 // pred_check
      _
    $region11: #{tpu_custom_call.1} parent=1 // pred_check_branch
      %46 = sbr.rel (0) target = $region13
    $region12: #{tpu_custom_call.1} parent=1 // pred_region
      _
    $region13: #{tpu_custom_call.1} parent=1 // pred_fallthru
      _
    // Predicated region
    $region14: #{tpu_custom_call.1} parent=1 // pred_check
      _
    $region15: #{tpu_custom_call.1} parent=1 // pred_check_branch
      %48 = sbr.rel (0) target = $region17
    $region16: #{tpu_custom_call.1} parent=1 // pred_region
      _
    $region17: #{tpu_custom_call.1} parent=1 // pred_fallthru
      _
    // Predicated region
    $region18: #{tpu_custom_call.1} parent=1 // pred_check
      _
    $region19: #{tpu_custom_call.1} parent=1 // pred_check_branch
      %50 = sbr.rel (0) target = $region21
    $region20: #{tpu_custom_call.1} parent=1 // pred_region
      %s52 = ssub.s32 32, 32
      %53 = vsyncadd [#allocation3], %s52
      %s54 = sshll.u32 [#allocation2], 4
      %s55 = int_to_ptr.vmem [resolvable:$true] %s54
      %60 = dma.hbm_to_vmem [thread:$0]  %s4, 32, %s55, [#allocation3], 16, 16, 1
    $region21: #{tpu_custom_call.1} parent=1 // pred_fallthru
      _
    // Predicated region
    $region22: #{tpu_custom_call.1} parent=1 // pred_check
      _
    $region23: #{tpu_custom_call.1} parent=1 // pred_check_branch
      %62 = sbr.rel (0) target = $region25
    $region24: #{tpu_custom_call.1} parent=1 // pred_region
      _
    $region25: #{tpu_custom_call.1} parent=1 // pred_fallthru
      _
    // Predicated region
    $region26: #{tpu_custom_call.1} parent=1 // pred_check
      _
    $region27: #{tpu_custom_call.1} parent=1 // pred_check_branch
      %64 = sbr.rel (0) target = $region29
    $region28: #{tpu_custom_call.1} parent=1 // pred_region
      %s66 = ssub.s32 32, 32
      %67 = vsyncadd [#allocation6], %s66
      %s68 = sshll.u32 [#allocation5], 4
      %s69 = int_to_ptr.vmem [resolvable:$true] %s68
      %74 = dma.hbm_to_vmem [thread:$0]  %s6, 32, %s69, [#allocation6], 16, 16, 1
    $region29: #{tpu_custom_call.1} parent=1 // pred_fallthru
      _
    // Predicated region
    $region30: #{tpu_custom_call.1} parent=1 // pred_check
      _
    $region31: #{tpu_custom_call.1} parent=1 // pred_check_branch
      %76 = sbr.rel (0) target = $region33
    $region32: #{tpu_custom_call.1} parent=1 // pred_region
      %s78 = ssub.s32 32, 32
      %79 = vsyncadd [#allocation6], %s78
      %s80 = sshll.u32 [#allocation7], 4
      %s81 = int_to_ptr.vmem [resolvable:$true] %s80
      %86 = dma.hbm_to_vmem [thread:$0]  %s7, 32, %s81, [#allocation6], 16, 16, 1
    $region33: #{tpu_custom_call.1} parent=1 // pred_fallthru
      _
    // Predicated region
    $region34: #{tpu_custom_call.1} parent=1 // pred_check
      _
    $region35: #{tpu_custom_call.1} parent=1 // pred_check_branch
      %88 = sbr.rel (0) target = $region37
    $region36: #{tpu_custom_call.1} parent=1 // pred_region
      %s90 = ssub.s32 32, 32
      %91 = vsyncadd [#allocation9], %s90
      %s92 = sshll.u32 [#allocation8], 4
      %s93 = int_to_ptr.vmem [resolvable:$true] %s92
      %98 = dma.hbm_to_vmem [thread:$0]  %s8, 32, %s93, [#allocation9], 16, 16, 1
    $region37: #{tpu_custom_call.1} parent=1 // pred_fallthru
      _
    // Predicated region
    $region38: #{tpu_custom_call.1} parent=1 // pred_check
      _
    $region39: #{tpu_custom_call.1} parent=1 // pred_check_branch
      %100 = sbr.rel (0) target = $region41
    $region40: #{tpu_custom_call.1} parent=1 // pred_region
      _
    $region41: #{tpu_custom_call.1} parent=1 // pred_fallthru
      _
    // Predicated region
    $region42: #{tpu_custom_call.1} parent=1 // pred_check
      _
    $region43: #{tpu_custom_call.1} parent=1 // pred_check_branch
      %102 = sbr.rel (0) target = $region45
    $region44: #{tpu_custom_call.1} parent=1 // pred_region
      %s104 = ssub.s32 32, 32
      %105 = vsyncadd [#allocation9], %s104
      %s106 = sshll.u32 [#allocation10], 4
      %s107 = int_to_ptr.vmem [resolvable:$true] %s106
      %112 = dma.hbm_to_vmem [thread:$0]  %s10, 32, %s107, [#allocation9], 16, 16, 1
    $region45: #{tpu_custom_call.1} parent=1 // pred_fallthru
      _
    // Predicated region
    $region46: #{tpu_custom_call.1} parent=1 // pred_check
      _
    $region47: #{tpu_custom_call.1} parent=1 // pred_check_branch
      %114 = sbr.rel (0) target = $region49
    $region48: #{tpu_custom_call.1} parent=1 // pred_region
      _
    $region49: #{tpu_custom_call.1} parent=1 // pred_fallthru
      _
    // Predicated region
    $region50: #{tpu_custom_call.1} parent=1 // pred_check
      _
    $region51: #{tpu_custom_call.1} parent=1 // pred_check_branch
      %116 = sbr.rel (0) target = $region53
    $region52: #{tpu_custom_call.1} parent=1 // pred_region
      %s118 = ssub.s32 32, 32
      %119 = vsyncadd [#allocation12], %s118
      %s120 = sshll.u32 [#allocation11], 4
      %s121 = int_to_ptr.vmem [resolvable:$true] %s120
      %126 = dma.hbm_to_vmem [thread:$0]  %s12, 32, %s121, [#allocation12], 16, 16, 1
    $region53: #{tpu_custom_call.1} parent=1 // pred_fallthru
      _
    // Predicated region
    $region54: #{tpu_custom_call.1} parent=1 // pred_check
      _
    $region55: #{tpu_custom_call.1} parent=1 // pred_check_branch
      %128 = sbr.rel (0) target = $region57
    $region56: #{tpu_custom_call.1} parent=1 // pred_region
      %s130 = ssub.s32 32, 32
      %131 = vsyncadd [#allocation12], %s130
      %s132 = sshll.u32 [#allocation13], 4
      %s133 = int_to_ptr.vmem [resolvable:$true] %s132
      %138 = dma.hbm_to_vmem [thread:$0]  %s13, 32, %s133, [#allocation12], 16, 16, 1
    $region57: #{tpu_custom_call.1} parent=1 // pred_fallthru
      _
    // Predicated region
    $region58: #{tpu_custom_call.1} parent=1 // pred_check
      _
    $region59: #{tpu_custom_call.1} parent=1 // pred_check_branch
      %140 = sbr.rel (0) target = $region61
    $region60: #{tpu_custom_call.1} parent=1 // pred_region
      %s142 = ssub.s32 32, 32
      %143 = vsyncadd [#allocation15], %s142
      %s144 = sshll.u32 [#allocation14], 4
      %s145 = int_to_ptr.vmem [resolvable:$true] %s144
      %150 = dma.hbm_to_vmem [thread:$0]  %s14, 32, %s145, [#allocation15], 16, 16, 1
    $region61: #{tpu_custom_call.1} parent=1 // pred_fallthru
      _
    // Predicated region
    $region62: #{tpu_custom_call.1} parent=1 // pred_check
      _
    $region63: #{tpu_custom_call.1} parent=1 // pred_check_branch
      %152 = sbr.rel (0) target = $region65
    $region64: #{tpu_custom_call.1} parent=1 // pred_region
      _
    $region65: #{tpu_custom_call.1} parent=1 // pred_fallthru
      _
    // Predicated region
    $region66: #{tpu_custom_call.1} parent=1 // pred_check
      _
    $region67: #{tpu_custom_call.1} parent=1 // pred_check_branch
      %154 = sbr.rel (0) target = $region69
    $region68: #{tpu_custom_call.1} parent=1 // pred_region
      _
    $region69: #{tpu_custom_call.1} parent=1 // pred_fallthru
      _
    // Predicated region
    $region70: #{tpu_custom_call.1} parent=1 // pred_check
      _
    $region71: #{tpu_custom_call.1} parent=1 // pred_check_branch
      %156 = sbr.rel (0) target = $region73
    $region72: #{tpu_custom_call.1} parent=1 // pred_region
      %s158 = ssub.s32 16, 16
      %159 = vsyncadd [#allocation15], %s158
      %s161 = sshll.u32 [#allocation16], 4
      %s162 = int_to_ptr.vmem [resolvable:$true] %s161
      %164 = dma.hbm_to_vmem [thread:$0]  %s17, 16, %s162, [#allocation15]
    $region73: #{tpu_custom_call.1} parent=1 // pred_fallthru
      _
    // Predicated region
    $region74: #{tpu_custom_call.1} parent=1 // pred_check
      _
    $region75: #{tpu_custom_call.1} parent=1 // pred_check_branch
      %166 = sbr.rel (0) target = $region77
    $region76: #{tpu_custom_call.1} parent=1 // pred_region
      %s168 = ssub.s32 16, 16
      %169 = vsyncadd [#allocation18], %s168
      %s171 = sshll.u32 [#allocation17], 4
      %s172 = int_to_ptr.vmem [resolvable:$true] %s171
      %174 = dma.hbm_to_vmem [thread:$0]  %s18, 16, %s172, [#allocation18]
    $region77: #{tpu_custom_call.1} parent=1 // pred_fallthru
      _
    // Predicated region
    $region78: #{tpu_custom_call.1} parent=1 // pred_check
      _
    $region79: #{tpu_custom_call.1} parent=1 // pred_check_branch
      %176 = sbr.rel (0) target = $region81
    $region80: #{tpu_custom_call.1} parent=1 // pred_region
      _
    $region81: #{tpu_custom_call.1} parent=1 // pred_fallthru
      _
    // Predicated region
    $region82: #{tpu_custom_call.1} parent=1 // pred_check
      _
    $region83: #{tpu_custom_call.1} parent=1 // pred_check_branch
      %178 = sbr.rel (0) target = $region85
    $region84: #{tpu_custom_call.1} parent=1 // pred_region
      _
    $region85: #{tpu_custom_call.1} parent=1 // pred_fallthru
      _
    // Predicated region
    $region86: #{tpu_custom_call.1} parent=1 // pred_check
      _
    $region87: #{tpu_custom_call.1} parent=1 // pred_check_branch
      %180 = sbr.rel (0) target = $region89
    $region88: #{tpu_custom_call.1} parent=1 // pred_region
      _
    $region89: #{tpu_custom_call.1} parent=1 // pred_fallthru
      _
    // Predicated region
    $region90: #{tpu_custom_call.1} parent=1 // pred_check
      _
    $region91: #{tpu_custom_call.1} parent=1 // pred_check_branch
      %182 = sbr.rel (0) target = $region93
    $region92: #{tpu_custom_call.1} parent=1 // pred_region
      _
    $region93: #{tpu_custom_call.1} parent=1 // pred_fallthru
      _
    // Predicated region
    $region94: #{tpu_custom_call.1} parent=1 // pred_check
      _
    $region95: #{tpu_custom_call.1} parent=1 // pred_check_branch
      %184 = sbr.rel (0) target = $region97
    $region96: #{tpu_custom_call.1} parent=1 // pred_region
      _
    $region97: #{tpu_custom_call.1} parent=1 // pred_fallthru
      _
    // Predicated region
    $region98: #{tpu_custom_call.1} parent=1 // pred_check
      _
    $region99: #{tpu_custom_call.1} parent=1 // pred_check_branch
      %186 = sbr.rel (0) target = $region101
    $region100: #{tpu_custom_call.1} parent=1 // pred_region
      _
    $region101: #{tpu_custom_call.1} parent=1 // pred_fallthru
      _
    // Predicated region
    $region102: #{tpu_custom_call.1} parent=1 // pred_check
      _
    $region103: #{tpu_custom_call.1} parent=1 // pred_check_branch
      %188 = sbr.rel (0) target = $region105
    $region104: #{tpu_custom_call.1} parent=1 // pred_region
      %189 = dma.done [#allocation3], 32
    $region105: #{tpu_custom_call.1} parent=1 // pred_fallthru
      _
    // Predicated region
    $region106: #{tpu_custom_call.1} parent=1 // pred_check
      _
    $region107: #{tpu_custom_call.1} parent=1 // pred_check_branch
      %191 = sbr.rel (0) target = $region109
    $region108: #{tpu_custom_call.1} parent=1 // pred_region
      %192 = dma.done [#allocation6], 32
    $region109: #{tpu_custom_call.1} parent=1 // pred_fallthru
      _
    // Predicated region
    $region110: #{tpu_custom_call.1} parent=1 // pred_check
      _
    $region111: #{tpu_custom_call.1} parent=1 // pred_check_branch
      %194 = sbr.rel (0) target = $region113
    $region112: #{tpu_custom_call.1} parent=1 // pred_region
      %195 = dma.done [#allocation6], 32
    $region113: #{tpu_custom_call.1} parent=1 // pred_fallthru
      _
    // Predicated region
    $region114: #{tpu_custom_call.1} parent=1 // pred_check
      _
    $region115: #{tpu_custom_call.1} parent=1 // pred_check_branch
      %197 = sbr.rel (0) target = $region117
    $region116: #{tpu_custom_call.1} parent=1 // pred_region
      %198 = dma.done [#allocation9], 32
    $region117: #{tpu_custom_call.1} parent=1 // pred_fallthru
      _
    // Predicated region
    $region118: #{tpu_custom_call.1} parent=1 // pred_check
      _
    $region119: #{tpu_custom_call.1} parent=1 // pred_check_branch
      %200 = sbr.rel (0) target = $region121
    $region120: #{tpu_custom_call.1} parent=1 // pred_region
      %201 = dma.done [#allocation9], 32
    $region121: #{tpu_custom_call.1} parent=1 // pred_fallthru
      _
    // Predicated region
    $region122: #{tpu_custom_call.1} parent=1 // pred_check
      _
    $region123: #{tpu_custom_call.1} parent=1 // pred_check_branch
      %203 = sbr.rel (0) target = $region125
    $region124: #{tpu_custom_call.1} parent=1 // pred_region
      %204 = dma.done [#allocation12], 32
    $region125: #{tpu_custom_call.1} parent=1 // pred_fallthru
      _
    // Predicated region
    $region126: #{tpu_custom_call.1} parent=1 // pred_check
      _
    $region127: #{tpu_custom_call.1} parent=1 // pred_check_branch
      %206 = sbr.rel (0) target = $region129
    $region128: #{tpu_custom_call.1} parent=1 // pred_region
      %207 = dma.done [#allocation12], 32
    $region129: #{tpu_custom_call.1} parent=1 // pred_fallthru
      _
    // Predicated region
    $region130: #{tpu_custom_call.1} parent=1 // pred_check
      _
    $region131: #{tpu_custom_call.1} parent=1 // pred_check_branch
      %209 = sbr.rel (0) target = $region133
    $region132: #{tpu_custom_call.1} parent=1 // pred_region
      %210 = dma.done [#allocation15], 32
    $region133: #{tpu_custom_call.1} parent=1 // pred_fallthru
      _
    // Predicated region
    $region134: #{tpu_custom_call.1} parent=1 // pred_check
      _
    $region135: #{tpu_custom_call.1} parent=1 // pred_check_branch
      %212 = sbr.rel (0) target = $region137
    $region136: #{tpu_custom_call.1} parent=1 // pred_region
      %213 = dma.done [#allocation15], 16
    $region137: #{tpu_custom_call.1} parent=1 // pred_fallthru
      _
    // Predicated region
    $region138: #{tpu_custom_call.1} parent=1 // pred_check
      _
    $region139: #{tpu_custom_call.1} parent=1 // pred_check_branch
      %215 = sbr.rel (0) target = $region141
    $region140: #{tpu_custom_call.1} parent=1 // pred_region
      %216 = dma.done [#allocation18], 16
    $region141: #{tpu_custom_call.1} parent=1 // pred_fallthru
      _
    %v218 = vld [vmem:[%s0] sm:$0xff]
    %v219 = vld [vmem:[%s0 + $0x8] sm:$0xff]
    %v220 = vld [vmem:[%s1] sm:$0x3]
    %v222 = vunpack.c.l.s4 1966171168
    %v223 = vunpack.c.0.s8 %v222
    %v224 = vlaneseq
    %v225 = vshrl.u32 %v224, 7
    %v226 = vsub.s32 %v223, %v225
    %v227 = vrot.slane %v220, %v226
    %v228 = vcombine.high %v227, %v227
    %v230 = vunpack.c.l.s4 1966171168
    %v231 = vunpack.c.0.s8 %v230
    %v232 = vlaneseq
    %v233 = vshrl.u32 %v232, 7
    %v234 = vsub.s32 %v231, %v233
    %v235 = vrot.slane %v227, %v234
    %v237 = vunpack.c.l.s4 1966171168
    %v238 = vunpack.c.0.s8 %v237
    %v239 = vlaneseq
    %v240 = vshrl.u32 %v239, 7
    %v241 = vsub.s32 %v238, %v240
    %v242 = vrot.slane %v228, %v241
    %v243 = vlaneseq
    %v244 = vand.u32 %v243, 127
    %245 = vset.pattern.permute.xlu0 0
    %246 = vperm.xlu0 %245, %v235
    %v247 = vpop.permute.xlu0 %246
    %v248 = vlaneseq
    %v249 = vshrl.u32 %v248, 7
    %v250 = vsub.s32 0, %v249
    %v251 = vrot.slane %v247, %v250
    %252 = vset.pattern.permute.xlu0 0
    %253 = vperm.xlu0 %252, %v242
    %v254 = vpop.permute.xlu0 %253
    %v255 = vlaneseq
    %v256 = vshrl.u32 %v255, 7
    %v257 = vsub.s32 0, %v256
    %v258 = vrot.slane %v254, %v257
    %vm259 = vcmp.lt.s32.totalorder %v244, %v251
    %vm260 = vcmp.lt.s32.totalorder %v244, %v258
    %v261 = vpack.c.bf16 %v219, %v218
    %v262 = vld [vmem:[%s3] sm:$0xf]
    %v263 = vld [vmem:[%s3 + $0x4] sm:$0xf]
    %v264 = vld [vmem:[%s3 + $0x8] sm:$0xf]
    %v265 = vld [vmem:[%s3 + $0xc] sm:$0xf]
    %v266 = vld [vmem:[#allocation2] sm:$0x1]
    %v268 = vlaneseq
    %v269 = vshrl.u32 %v268, 7
    %v270 = vsub.s32 0, %v269
    %v271 = vrot.slane %v266, %v270
    %v277 = vunpack.c.l.b16 %v262
    %v278 = vunpack.c.l.b16 %v263
    %v279 = vunpack.c.l.b16 %v264
    %v280 = vunpack.c.l.b16 %v265
    %v281 = vpack.c.b16 %v278, %v277
    %v282 = vpack.c.b16 %v280, %v279
    %vm285 = vcmask 261120
    %v287 = vsel %vm285, %v261, 0
    %289 = vmatprep.subr.bf16.mxu0 0
    %290 = vmatpush1.bf16.msra.mxu0 %v281
    %291 = vmatprep.subr.bf16.mxu0 0
    %292 = vmatpush1.bf16.msra.mxu0 %v282
    %293 = vmatprep.subr.bf16.mxu0 0
    %294 = vmatpush1.bf16.msra.mxu0 0
    %295 = vmatprep.subr.bf16.mxu0 0
    %296 = vmatpush1.bf16.msra.mxu0 0
    %297 = vmatprep.subr.bf16.mxu0 0
    %298 = vmatpush1.bf16.msra.mxu0 0
    %299 = vmatprep.subr.bf16.mxu0 0
    %300 = vmatpush1.bf16.msra.mxu0 0
    %301 = vmatprep.subr.bf16.mxu0 0
    %302 = vmatpush1.bf16.msra.mxu0 0
    %303 = vmatprep.subr.bf16.mxu0 0
    %304 = vmatpush1.bf16.msra.mxu0 0
    %305 = vmatprep.subr.bf16.mxu0 0
    %306 = vmatpush1.bf16.msra.mxu0 0
    %307 = vmatprep.subr.bf16.mxu0 0
    %308 = vmatpush1.bf16.msra.mxu0 0
    %309 = vmatprep.subr.bf16.mxu0 0
    %310 = vmatpush1.bf16.msra.mxu0 0
    %311 = vmatprep.subr.bf16.mxu0 0
    %312 = vmatpush1.bf16.msra.mxu0 0
    %313 = vmatprep.subr.bf16.mxu0 0
    %314 = vmatpush1.bf16.msra.mxu0 0
    %315 = vmatprep.subr.bf16.mxu0 0
    %316 = vmatpush1.bf16.msra.mxu0 0
    %317 = vmatprep.subr.bf16.mxu0 0
    %318 = vmatpush1.bf16.msra.mxu0 0
    %319 = vmatprep.subr.bf16.mxu0 0
    %320 = vmatpush1.bf16.msra.mxu0 0
    %321 = vmatprep.mubr.bf16.mxu0 0
    %322 = vmatmul.mubr.bf16.gmra.mrb[0].mxu0 %v287
    %v323 = vpop.f32.mrb[0].mxu0
    %v324 = vadd.f32 %v271, %v323
    %v325 = vpop.f32.mrb[0].mxu0
    %v326 = vpop.f32.mrb[0].mxu0
    %v327 = vadd.f32 %v271, %v326
    %v328 = vpop.f32.mrb[0].mxu0
    %329 = vdwg.mxu0
    %v330 = vmul.f32 %v324, 0.25
    %v331 = vmul.f32 %v327, 0.25
    %v332 = vpack.c.bf16 %v330, %v330
    %v333 = vpack.c.bf16 %v331, %v331
    %v334 = vpack.c.bf16 %v324, %v324
    %v335 = vpack.c.bf16 %v327, %v327
    %337 = vrot.lane.b32.xlu0 %v334, 96
    %v338 = vpop.permute.xlu0 %337
    %vm339 = vcmask 130048
    %v341 = vsel %vm339, %v332, 0
    %v344 = vsel %vm339, %v338, 0
    %346 = vmatprep.subr.bf16.mxu0 0
    %347 = vmatpush1.bf16.xpose.msra.mxu0 %v344
    %348 = vmatprep.subr.bf16.mxu0 0
    %349 = vmatpush1.bf16.xpose.msra.mxu0 0
    %350 = vmatprep.subr.bf16.mxu0 0
    %351 = vmatpush1.bf16.xpose.msra.mxu0 0
    %352 = vmatprep.subr.bf16.mxu0 0
    %353 = vmatpush1.bf16.xpose.msra.mxu0 0
    %354 = vmatprep.subr.bf16.mxu0 0
    %355 = vmatpush1.bf16.xpose.msra.mxu0 0
    %356 = vmatprep.subr.bf16.mxu0 0
    %357 = vmatpush1.bf16.xpose.msra.mxu0 0
    %358 = vmatprep.subr.bf16.mxu0 0
    %359 = vmatpush1.bf16.xpose.msra.mxu0 0
    %360 = vmatprep.subr.bf16.mxu0 0
    %361 = vmatpush1.bf16.xpose.msra.mxu0 0
    %362 = vmatprep.subr.bf16.mxu0 0
    %363 = vmatpush1.bf16.xpose.msra.mxu0 0
    %364 = vmatprep.subr.bf16.mxu0 0
    %365 = vmatpush1.bf16.xpose.msra.mxu0 0
    %366 = vmatprep.subr.bf16.mxu0 0
    %367 = vmatpush1.bf16.xpose.msra.mxu0 0
    %368 = vmatprep.subr.bf16.mxu0 0
    %369 = vmatpush1.bf16.xpose.msra.mxu0 0
    %370 = vmatprep.subr.bf16.mxu0 0
    %371 = vmatpush1.bf16.xpose.msra.mxu0 0
    %372 = vmatprep.subr.bf16.mxu0 0
    %373 = vmatpush1.bf16.xpose.msra.mxu0 0
    %374 = vmatprep.subr.bf16.mxu0 0
    %375 = vmatpush1.bf16.xpose.msra.mxu0 0
    %376 = vmatprep.subr.bf16.mxu0 0
    %377 = vmatpush1.bf16.xpose.msra.mxu0 0
    %378 = vmatprep.mubr.bf16.mxu0 0
    %379 = vmatmul.mubr.bf16.gmra.mrb[0].mxu0 %v341
    %v380 = vpop.f32.mrb[0].mxu0
    %v381 = vadd.f32 0.0, %v380
    %v382 = vpop.f32.mrb[0].mxu0
    %v383 = vpop.f32.mrb[0].mxu0
    %v384 = vpop.f32.mrb[0].mxu0
    %385 = vdwg.mxu0
    %387 = vrot.lane.b32.xlu0 %v335, 96
    %v388 = vpop.permute.xlu0 %387
    %v390 = vsel %vm339, %v333, 0
    %v393 = vsel %vm339, %v388, 0
    %395 = vmatprep.subr.bf16.mxu0 0
    %396 = vmatpush1.bf16.xpose.msra.mxu0 %v393
    %397 = vmatprep.subr.bf16.mxu0 0
    %398 = vmatpush1.bf16.xpose.msra.mxu0 0
    %399 = vmatprep.subr.bf16.mxu0 0
    %400 = vmatpush1.bf16.xpose.msra.mxu0 0
    %401 = vmatprep.subr.bf16.mxu0 0
    %402 = vmatpush1.bf16.xpose.msra.mxu0 0
    %403 = vmatprep.subr.bf16.mxu0 0
    %404 = vmatpush1.bf16.xpose.msra.mxu0 0
    %405 = vmatprep.subr.bf16.mxu0 0
    %406 = vmatpush1.bf16.xpose.msra.mxu0 0
    %407 = vmatprep.subr.bf16.mxu0 0
    %408 = vmatpush1.bf16.xpose.msra.mxu0 0
    %409 = vmatprep.subr.bf16.mxu0 0
    %410 = vmatpush1.bf16.xpose.msra.mxu0 0
    %411 = vmatprep.subr.bf16.mxu0 0
    %412 = vmatpush1.bf16.xpose.msra.mxu0 0
    %413 = vmatprep.subr.bf16.mxu0 0
    %414 = vmatpush1.bf16.xpose.msra.mxu0 0
    %415 = vmatprep.subr.bf16.mxu0 0
    %416 = vmatpush1.bf16.xpose.msra.mxu0 0
    %417 = vmatprep.subr.bf16.mxu0 0
    %418 = vmatpush1.bf16.xpose.msra.mxu0 0
    %419 = vmatprep.subr.bf16.mxu0 0
    %420 = vmatpush1.bf16.xpose.msra.mxu0 0
    %421 = vmatprep.subr.bf16.mxu0 0
    %422 = vmatpush1.bf16.xpose.msra.mxu0 0
    %423 = vmatprep.subr.bf16.mxu0 0
    %424 = vmatpush1.bf16.xpose.msra.mxu0 0
    %425 = vmatprep.subr.bf16.mxu0 0
    %426 = vmatpush1.bf16.xpose.msra.mxu0 0
    %427 = vmatprep.mubr.bf16.mxu0 0
    %428 = vmatmul.mubr.bf16.gmra.mrb[0].mxu0 %v390
    %v429 = vpop.f32.mrb[0].mxu0
    %v430 = vadd.f32 0.0, %v429
    %v431 = vpop.f32.mrb[0].mxu0
    %v432 = vpop.f32.mrb[0].mxu0
    %v433 = vpop.f32.mrb[0].mxu0
    %434 = vdwg.mxu0
    %v435 = vsel %vm259, 1, 0
    %v436 = vsel %vm260, 1, 0
    %vm437 = vcmp.eq.s32.totalorder %v435, 1
    %vm438 = vcmp.eq.s32.totalorder %v436, 1
    %v439 = vsel %vm437, %v381, -1000000.0
    %v440 = vsel %vm438, %v430, -1000000.0
    %vm441 = vcmask 64512
    %v442 = vsel %vm441, %v439, -inf
    %443 = vmax.xlane.f32.xlu0 %v442
    %v444 = vpop.xlane.xlu0 %443
    %v445 = vsel %vm441, %v440, -inf
    %446 = vmax.xlane.f32.xlu0 %v445
    %v447 = vpop.xlane.xlu0 %446
    %v448 = vsub.f32 %v439, %v444
    %v449 = vsub.f32 %v440, %v447
    %v450 = vmul.f32 %v448, 1.442695
    %v451 = vpow.pop %v450
    %v452 = vmul.f32 %v449, 1.442695
    %v453 = vpow.pop %v452
    %v454 = vsel %vm441, %v451, 0.0
    %455 = vadd.xlane.f32.xlu0 %v454
    %v456 = vpop.xlane.xlu0 %455
    %v457 = vsel %vm441, %v453, 0.0
    %458 = vadd.xlane.f32.xlu0 %v457
    %v459 = vpop.xlane.xlu0 %458
    %v460 = vrcp.pop %v456
    %v461 = vrcp.pop %v459
    %v462 = vmul.f32 %v451, %v460
    %v463 = vmul.f32 %v453, %v461
    %v464 = vpack.c.bf16 %v462, %v462
    %v465 = vpack.c.bf16 %v463, %v463
    %466 = vrot.lane.b32.xlu0 %v334, 64
    %v467 = vpop.permute.xlu0 %466
    %v469 = vsel %vm441, %v464, 0
    %vm471 = vcmask 1043456
    %v473 = vsel %vm471, %v467, 0
    %475 = vmatprep.subr.bf16.mxu0 0
    %476 = vmatpush1.bf16.msra.mxu0 %v473
    %477 = vmatprep.subr.bf16.mxu0 0
    %478 = vmatpush1.bf16.msra.mxu0 0
    %479 = vmatprep.subr.bf16.mxu0 0
    %480 = vmatpush1.bf16.msra.mxu0 0
    %481 = vmatprep.subr.bf16.mxu0 0
    %482 = vmatpush1.bf16.msra.mxu0 0
    %483 = vmatprep.subr.bf16.mxu0 0
    %484 = vmatpush1.bf16.msra.mxu0 0
    %485 = vmatprep.subr.bf16.mxu0 0
    %486 = vmatpush1.bf16.msra.mxu0 0
    %487 = vmatprep.subr.bf16.mxu0 0
    %488 = vmatpush1.bf16.msra.mxu0 0
    %489 = vmatprep.subr.bf16.mxu0 0
    %490 = vmatpush1.bf16.msra.mxu0 0
    %491 = vmatprep.subr.bf16.mxu0 0
    %492 = vmatpush1.bf16.msra.mxu0 0
    %493 = vmatprep.subr.bf16.mxu0 0
    %494 = vmatpush1.bf16.msra.mxu0 0
    %495 = vmatprep.subr.bf16.mxu0 0
    %496 = vmatpush1.bf16.msra.mxu0 0
    %497 = vmatprep.subr.bf16.mxu0 0
    %498 = vmatpush1.bf16.msra.mxu0 0
    %499 = vmatprep.subr.bf16.mxu0 0
    %500 = vmatpush1.bf16.msra.mxu0 0
    %501 = vmatprep.subr.bf16.mxu0 0
    %502 = vmatpush1.bf16.msra.mxu0 0
    %503 = vmatprep.subr.bf16.mxu0 0
    %504 = vmatpush1.bf16.msra.mxu0 0
    %505 = vmatprep.subr.bf16.mxu0 0
    %506 = vmatpush1.bf16.msra.mxu0 0
    %507 = vmatprep.mubr.bf16.mxu0 0
    %508 = vmatmul.mubr.bf16.gmra.mrb[0].mxu0 %v469
    %v509 = vpop.f32.mrb[0].mxu0
    %v510 = vadd.f32 0.0, %v509
    %v511 = vpop.f32.mrb[0].mxu0
    %v512 = vpop.f32.mrb[0].mxu0
    %v513 = vpop.f32.mrb[0].mxu0
    %514 = vdwg.mxu0
    %515 = vrot.lane.b32.xlu0 %v335, 64
    %v516 = vpop.permute.xlu0 %515
    %v518 = vsel %vm441, %v465, 0
    %v521 = vsel %vm471, %v516, 0
    %523 = vmatprep.subr.bf16.mxu0 0
    %524 = vmatpush1.bf16.msra.mxu0 %v521
    %525 = vmatprep.subr.bf16.mxu0 0
    %526 = vmatpush1.bf16.msra.mxu0 0
    %527 = vmatprep.subr.bf16.mxu0 0
    %528 = vmatpush1.bf16.msra.mxu0 0
    %529 = vmatprep.subr.bf16.mxu0 0
    %530 = vmatpush1.bf16.msra.mxu0 0
    %531 = vmatprep.subr.bf16.mxu0 0
    %532 = vmatpush1.bf16.msra.mxu0 0
    %533 = vmatprep.subr.bf16.mxu0 0
    %534 = vmatpush1.bf16.msra.mxu0 0
    %535 = vmatprep.subr.bf16.mxu0 0
    %536 = vmatpush1.bf16.msra.mxu0 0
    %537 = vmatprep.subr.bf16.mxu0 0
    %538 = vmatpush1.bf16.msra.mxu0 0
    %539 = vmatprep.subr.bf16.mxu0 0
    %540 = vmatpush1.bf16.msra.mxu0 0
    %541 = vmatprep.subr.bf16.mxu0 0
    %542 = vmatpush1.bf16.msra.mxu0 0
    %543 = vmatprep.subr.bf16.mxu0 0
    %544 = vmatpush1.bf16.msra.mxu0 0
    %545 = vmatprep.subr.bf16.mxu0 0
    %546 = vmatpush1.bf16.msra.mxu0 0
    %547 = vmatprep.subr.bf16.mxu0 0
    %548 = vmatpush1.bf16.msra.mxu0 0
    %549 = vmatprep.subr.bf16.mxu0 0
    %550 = vmatpush1.bf16.msra.mxu0 0
    %551 = vmatprep.subr.bf16.mxu0 0
    %552 = vmatpush1.bf16.msra.mxu0 0
    %553 = vmatprep.subr.bf16.mxu0 0
    %554 = vmatpush1.bf16.msra.mxu0 0
    %555 = vmatprep.mubr.bf16.mxu0 0
    %556 = vmatmul.mubr.bf16.gmra.mrb[0].mxu0 %v518
    %v557 = vpop.f32.mrb[0].mxu0
    %v558 = vadd.f32 0.0, %v557
    %v559 = vpop.f32.mrb[0].mxu0
    %v560 = vpop.f32.mrb[0].mxu0
    %v561 = vpop.f32.mrb[0].mxu0
    %562 = vdwg.mxu0
    %564 = vrot.lane.b32.xlu0 %v332, 112
    %v565 = vpop.permute.xlu0 %564
    %566 = vrot.lane.b32.xlu0 %v334, 80
    %v567 = vpop.permute.xlu0 %566
    %v569 = vsel %vm339, %v565, 0
    %v572 = vsel %vm339, %v567, 0
    %574 = vmatprep.subr.bf16.mxu0 0
    %575 = vmatpush1.bf16.xpose.msra.mxu0 %v572
    %576 = vmatprep.subr.bf16.mxu0 0
    %577 = vmatpush1.bf16.xpose.msra.mxu0 0
    %578 = vmatprep.subr.bf16.mxu0 0
    %579 = vmatpush1.bf16.xpose.msra.mxu0 0
    %580 = vmatprep.subr.bf16.mxu0 0
    %581 = vmatpush1.bf16.xpose.msra.mxu0 0
    %582 = vmatprep.subr.bf16.mxu0 0
    %583 = vmatpush1.bf16.xpose.msra.mxu0 0
    %584 = vmatprep.subr.bf16.mxu0 0
    %585 = vmatpush1.bf16.xpose.msra.mxu0 0
    %586 = vmatprep.subr.bf16.mxu0 0
    %587 = vmatpush1.bf16.xpose.msra.mxu0 0
    %588 = vmatprep.subr.bf16.mxu0 0
    %589 = vmatpush1.bf16.xpose.msra.mxu0 0
    %590 = vmatprep.subr.bf16.mxu0 0
    %591 = vmatpush1.bf16.xpose.msra.mxu0 0
    %592 = vmatprep.subr.bf16.mxu0 0
    %593 = vmatpush1.bf16.xpose.msra.mxu0 0
    %594 = vmatprep.subr.bf16.mxu0 0
    %595 = vmatpush1.bf16.xpose.msra.mxu0 0
    %596 = vmatprep.subr.bf16.mxu0 0
    %597 = vmatpush1.bf16.xpose.msra.mxu0 0
    %598 = vmatprep.subr.bf16.mxu0 0
    %599 = vmatpush1.bf16.xpose.msra.mxu0 0
    %600 = vmatprep.subr.bf16.mxu0 0
    %601 = vmatpush1.bf16.xpose.msra.mxu0 0
    %602 = vmatprep.subr.bf16.mxu0 0
    %603 = vmatpush1.bf16.xpose.msra.mxu0 0
    %604 = vmatprep.subr.bf16.mxu0 0
    %605 = vmatpush1.bf16.xpose.msra.mxu0 0
    %606 = vmatprep.mubr.bf16.mxu0 0
    %607 = vmatmul.mubr.bf16.gmra.mrb[0].mxu0 %v569
    %v608 = vpop.f32.mrb[0].mxu0
    %v609 = vadd.f32 0.0, %v608
    %v610 = vpop.f32.mrb[0].mxu0
    %v611 = vpop.f32.mrb[0].mxu0
    %v612 = vpop.f32.mrb[0].mxu0
    %613 = vdwg.mxu0
    %615 = vrot.lane.b32.xlu0 %v333, 112
    %v616 = vpop.permute.xlu0 %615
    %617 = vrot.lane.b32.xlu0 %v335, 80
    %v618 = vpop.permute.xlu0 %617
    %v620 = vsel %vm339, %v616, 0
    %v623 = vsel %vm339, %v618, 0
    %625 = vmatprep.subr.bf16.mxu0 0
    %626 = vmatpush1.bf16.xpose.msra.mxu0 %v623
    %627 = vmatprep.subr.bf16.mxu0 0
    %628 = vmatpush1.bf16.xpose.msra.mxu0 0
    %629 = vmatprep.subr.bf16.mxu0 0
    %630 = vmatpush1.bf16.xpose.msra.mxu0 0
    %631 = vmatprep.subr.bf16.mxu0 0
    %632 = vmatpush1.bf16.xpose.msra.mxu0 0
    %633 = vmatprep.subr.bf16.mxu0 0
    %634 = vmatpush1.bf16.xpose.msra.mxu0 0
    %635 = vmatprep.subr.bf16.mxu0 0
    %636 = vmatpush1.bf16.xpose.msra.mxu0 0
    %637 = vmatprep.subr.bf16.mxu0 0
    %638 = vmatpush1.bf16.xpose.msra.mxu0 0
    %639 = vmatprep.subr.bf16.mxu0 0
    %640 = vmatpush1.bf16.xpose.msra.mxu0 0
    %641 = vmatprep.subr.bf16.mxu0 0
    %642 = vmatpush1.bf16.xpose.msra.mxu0 0
    %643 = vmatprep.subr.bf16.mxu0 0
    %644 = vmatpush1.bf16.xpose.msra.mxu0 0
    %645 = vmatprep.subr.bf16.mxu0 0
    %646 = vmatpush1.bf16.xpose.msra.mxu0 0
    %647 = vmatprep.subr.bf16.mxu0 0
    %648 = vmatpush1.bf16.xpose.msra.mxu0 0
    %649 = vmatprep.subr.bf16.mxu0 0
    %650 = vmatpush1.bf16.xpose.msra.mxu0 0
    %651 = vmatprep.subr.bf16.mxu0 0
    %652 = vmatpush1.bf16.xpose.msra.mxu0 0
    %653 = vmatprep.subr.bf16.mxu0 0
    %654 = vmatpush1.bf16.xpose.msra.mxu0 0
    %655 = vmatprep.subr.bf16.mxu0 0
    %656 = vmatpush1.bf16.xpose.msra.mxu0 0
    %657 = vmatprep.mubr.bf16.mxu0 0
    %658 = vmatmul.mubr.bf16.gmra.mrb[0].mxu0 %v620
    %v659 = vpop.f32.mrb[0].mxu0
    %v660 = vadd.f32 0.0, %v659
    %v661 = vpop.f32.mrb[0].mxu0
    %v662 = vpop.f32.mrb[0].mxu0
    %v663 = vpop.f32.mrb[0].mxu0
    %664 = vdwg.mxu0
    %v665 = vsel %vm437, %v609, -1000000.0
    %v666 = vsel %vm438, %v660, -1000000.0
    %v667 = vsel %vm441, %v665, -inf
    %668 = vmax.xlane.f32.xlu0 %v667
    %v669 = vpop.xlane.xlu0 %668
    %v670 = vsel %vm441, %v666, -inf
    %671 = vmax.xlane.f32.xlu0 %v670
    %v672 = vpop.xlane.xlu0 %671
    %v673 = vsub.f32 %v665, %v669
    %v674 = vsub.f32 %v666, %v672
    %v675 = vmul.f32 %v673, 1.442695
    %v676 = vpow.pop %v675
    %v677 = vmul.f32 %v674, 1.442695
    %v678 = vpow.pop %v677
    %v679 = vsel %vm441, %v676, 0.0
    %680 = vadd.xlane.f32.xlu0 %v679
    %v681 = vpop.xlane.xlu0 %680
    %v682 = vsel %vm441, %v678, 0.0
    %683 = vadd.xlane.f32.xlu0 %v682
    %v684 = vpop.xlane.xlu0 %683
    %v685 = vrcp.pop %v681
    %v686 = vrcp.pop %v684
    %v687 = vmul.f32 %v676, %v685
    %v688 = vmul.f32 %v678, %v686
    %v689 = vpack.c.bf16 %v687, %v687
    %v690 = vpack.c.bf16 %v688, %v688
    %691 = vrot.lane.b32.xlu0 %v334, 48
    %v692 = vpop.permute.xlu0 %691
    %v694 = vsel %vm441, %v689, 0
    %v697 = vsel %vm471, %v692, 0
    %699 = vmatprep.subr.bf16.mxu0 0
    %700 = vmatpush1.bf16.msra.mxu0 %v697
    %701 = vmatprep.subr.bf16.mxu0 0
    %702 = vmatpush1.bf16.msra.mxu0 0
    %703 = vmatprep.subr.bf16.mxu0 0
    %704 = vmatpush1.bf16.msra.mxu0 0
    %705 = vmatprep.subr.bf16.mxu0 0
    %706 = vmatpush1.bf16.msra.mxu0 0
    %707 = vmatprep.subr.bf16.mxu0 0
    %708 = vmatpush1.bf16.msra.mxu0 0
    %709 = vmatprep.subr.bf16.mxu0 0
    %710 = vmatpush1.bf16.msra.mxu0 0
    %711 = vmatprep.subr.bf16.mxu0 0
    %712 = vmatpush1.bf16.msra.mxu0 0
    %713 = vmatprep.subr.bf16.mxu0 0
    %714 = vmatpush1.bf16.msra.mxu0 0
    %715 = vmatprep.subr.bf16.mxu0 0
    %716 = vmatpush1.bf16.msra.mxu0 0
    %717 = vmatprep.subr.bf16.mxu0 0
    %718 = vmatpush1.bf16.msra.mxu0 0
    %719 = vmatprep.subr.bf16.mxu0 0
    %720 = vmatpush1.bf16.msra.mxu0 0
    %721 = vmatprep.subr.bf16.mxu0 0
    %722 = vmatpush1.bf16.msra.mxu0 0
    %723 = vmatprep.subr.bf16.mxu0 0
    %724 = vmatpush1.bf16.msra.mxu0 0
    %725 = vmatprep.subr.bf16.mxu0 0
    %726 = vmatpush1.bf16.msra.mxu0 0
    %727 = vmatprep.subr.bf16.mxu0 0
    %728 = vmatpush1.bf16.msra.mxu0 0
    %729 = vmatprep.subr.bf16.mxu0 0
    %730 = vmatpush1.bf16.msra.mxu0 0
    %731 = vmatprep.mubr.bf16.mxu0 0
    %732 = vmatmul.mubr.bf16.gmra.mrb[0].mxu0 %v694
    %v733 = vpop.f32.mrb[0].mxu0
    %v734 = vadd.f32 0.0, %v733
    %v735 = vpop.f32.mrb[0].mxu0
    %v736 = vpop.f32.mrb[0].mxu0
    %v737 = vpop.f32.mrb[0].mxu0
    %738 = vdwg.mxu0
    %739 = vrot.lane.b32.xlu0 %v335, 48
    %v740 = vpop.permute.xlu0 %739
    %v742 = vsel %vm441, %v690, 0
    %v745 = vsel %vm471, %v740, 0
    %747 = vmatprep.subr.bf16.mxu0 0
    %748 = vmatpush1.bf16.msra.mxu0 %v745
    %749 = vmatprep.subr.bf16.mxu0 0
    %750 = vmatpush1.bf16.msra.mxu0 0
    %751 = vmatprep.subr.bf16.mxu0 0
    %752 = vmatpush1.bf16.msra.mxu0 0
    %753 = vmatprep.subr.bf16.mxu0 0
    %754 = vmatpush1.bf16.msra.mxu0 0
    %755 = vmatprep.subr.bf16.mxu0 0
    %756 = vmatpush1.bf16.msra.mxu0 0
    %757 = vmatprep.subr.bf16.mxu0 0
    %758 = vmatpush1.bf16.msra.mxu0 0
    %759 = vmatprep.subr.bf16.mxu0 0
    %760 = vmatpush1.bf16.msra.mxu0 0
    %761 = vmatprep.subr.bf16.mxu0 0
    %762 = vmatpush1.bf16.msra.mxu0 0
    %763 = vmatprep.subr.bf16.mxu0 0
    %764 = vmatpush1.bf16.msra.mxu0 0
    %765 = vmatprep.subr.bf16.mxu0 0
    %766 = vmatpush1.bf16.msra.mxu0 0
    %767 = vmatprep.subr.bf16.mxu0 0
    %768 = vmatpush1.bf16.msra.mxu0 0
    %769 = vmatprep.subr.bf16.mxu0 0
    %770 = vmatpush1.bf16.msra.mxu0 0
    %771 = vmatprep.subr.bf16.mxu0 0
    %772 = vmatpush1.bf16.msra.mxu0 0
    %773 = vmatprep.subr.bf16.mxu0 0
    %774 = vmatpush1.bf16.msra.mxu0 0
    %775 = vmatprep.subr.bf16.mxu0 0
    %776 = vmatpush1.bf16.msra.mxu0 0
    %777 = vmatprep.subr.bf16.mxu0 0
    %778 = vmatpush1.bf16.msra.mxu0 0
    %779 = vmatprep.mubr.bf16.mxu0 0
    %780 = vmatmul.mubr.bf16.gmra.mrb[0].mxu0 %v742
    %v781 = vpop.f32.mrb[0].mxu0
    %v782 = vadd.f32 0.0, %v781
    %v783 = vpop.f32.mrb[0].mxu0
    %v784 = vpop.f32.mrb[0].mxu0
    %v785 = vpop.f32.mrb[0].mxu0
    %786 = vdwg.mxu0
    %789 = vrot.lane.b32.xlu0 %v734, 16
    %v790 = vpop.permute.xlu0 %789
    %791 = vrot.lane.b32.xlu0 %v782, 16
    %v792 = vpop.permute.xlu0 %791
    %v795 = vsel %vm339, %v510, %v790
    %v796 = vsel %vm339, %v558, %v792
    %v797 = vpack.c.bf16 %v796, %v795
    %v798 = vld [vmem:[%s5] sm:$0xf]
    %v799 = vld [vmem:[%s5 + $0x4] sm:$0xf]
    %v800 = vld [vmem:[%s5 + $0x8] sm:$0xf]
    %v801 = vld [vmem:[%s5 + $0xc] sm:$0xf]
    %v802 = vld [vmem:[#allocation5] sm:$0x1]
    %v804 = vlaneseq
    %v805 = vshrl.u32 %v804, 7
    %v806 = vsub.s32 0, %v805
    %v807 = vrot.slane %v802, %v806
    %v813 = vunpack.c.l.b16 %v798
    %v814 = vunpack.c.l.b16 %v799
    %v815 = vunpack.c.l.b16 %v800
    %v816 = vunpack.c.l.b16 %v801
    %v817 = vpack.c.b16 %v814, %v813
    %v818 = vpack.c.b16 %v816, %v815
    %v822 = vsel %vm285, %v797, 0
    %824 = vmatprep.subr.bf16.mxu0 0
    %825 = vmatpush1.bf16.msra.mxu0 %v817
    %826 = vmatprep.subr.bf16.mxu0 0
    %827 = vmatpush1.bf16.msra.mxu0 %v818
    %828 = vmatprep.subr.bf16.mxu0 0
    %829 = vmatpush1.bf16.msra.mxu0 0
    %830 = vmatprep.subr.bf16.mxu0 0
    %831 = vmatpush1.bf16.msra.mxu0 0
    %832 = vmatprep.subr.bf16.mxu0 0
    %833 = vmatpush1.bf16.msra.mxu0 0
    %834 = vmatprep.subr.bf16.mxu0 0
    %835 = vmatpush1.bf16.msra.mxu0 0
    %836 = vmatprep.subr.bf16.mxu0 0
    %837 = vmatpush1.bf16.msra.mxu0 0
    %838 = vmatprep.subr.bf16.mxu0 0
    %839 = vmatpush1.bf16.msra.mxu0 0
    %840 = vmatprep.subr.bf16.mxu0 0
    %841 = vmatpush1.bf16.msra.mxu0 0
    %842 = vmatprep.subr.bf16.mxu0 0
    %843 = vmatpush1.bf16.msra.mxu0 0
    %844 = vmatprep.subr.bf16.mxu0 0
    %845 = vmatpush1.bf16.msra.mxu0 0
    %846 = vmatprep.subr.bf16.mxu0 0
    %847 = vmatpush1.bf16.msra.mxu0 0
    %848 = vmatprep.subr.bf16.mxu0 0
    %849 = vmatpush1.bf16.msra.mxu0 0
    %850 = vmatprep.subr.bf16.mxu0 0
    %851 = vmatpush1.bf16.msra.mxu0 0
    %852 = vmatprep.subr.bf16.mxu0 0
    %853 = vmatpush1.bf16.msra.mxu0 0
    %854 = vmatprep.subr.bf16.mxu0 0
    %855 = vmatpush1.bf16.msra.mxu0 0
    %856 = vmatprep.mubr.bf16.mxu0 0
    %857 = vmatmul.mubr.bf16.gmra.mrb[0].mxu0 %v822
    %v858 = vpop.f32.mrb[0].mxu0
    %v859 = vadd.f32 %v807, %v858
    %v860 = vpop.f32.mrb[0].mxu0
    %v861 = vpop.f32.mrb[0].mxu0
    %v862 = vadd.f32 %v807, %v861
    %v863 = vpop.f32.mrb[0].mxu0
    %864 = vdwg.mxu0
    %v865 = vadd.f32 %v218, %v859
    %v866 = vadd.f32 %v219, %v862
    %v867 = vld [vmem:[#allocation7] sm:$0x1]
    %v868 = vld [vmem:[#allocation8] sm:$0x1]
    %v869 = vsel %vm285, %v865, 0.0
    %870 = vadd.xlane.f32.xlu0 %v869
    %v871 = vpop.xlane.xlu0 %870
    %v872 = vsel %vm285, %v866, 0.0
    %873 = vadd.xlane.f32.xlu0 %v872
    %v874 = vpop.xlane.xlu0 %873
    %v875 = vrcp.pop 32.0
    %v876 = vmul.f32 %v871, %v875
    %v877 = vmul.f32 %v874, %v875
    %v878 = vsub.f32 %v865, %v876
    %v879 = vsub.f32 %v866, %v877
    %v880 = vmul.f32 %v878, %v878
    %v881 = vmul.f32 %v879, %v879
    %v882 = vsel %vm285, %v880, 0.0
    %883 = vadd.xlane.f32.xlu0 %v882
    %v884 = vpop.xlane.xlu0 %883
    %v885 = vsel %vm285, %v881, 0.0
    %886 = vadd.xlane.f32.xlu0 %v885
    %v887 = vpop.xlane.xlu0 %886
    %v888 = vmul.f32 %v884, %v875
    %v889 = vmul.f32 %v887, %v875
    %v890 = vadd.f32 %v888, 1e-05
    %v891 = vadd.f32 %v889, 1e-05
    %v892 = vrsqrt.pop %v890
    %v893 = vrsqrt.pop %v891
    %v894 = vmul.f32 %v878, %v892
    %v895 = vmul.f32 %v879, %v893
    %v897 = vlaneseq
    %v898 = vshrl.u32 %v897, 7
    %v899 = vsub.s32 0, %v898
    %v900 = vrot.slane %v867, %v899
    %v902 = vmul.f32 %v894, %v900
    %v903 = vmul.f32 %v895, %v900
    %v905 = vlaneseq
    %v906 = vshrl.u32 %v905, 7
    %v907 = vsub.s32 0, %v906
    %v908 = vrot.slane %v868, %v907
    %v910 = vadd.f32 %v902, %v908
    %v911 = vadd.f32 %v903, %v908
    %v912 = vpack.c.bf16 %v911, %v910
    %v913 = vld [vmem:[%s9] sm:$0xf]
    %v914 = vld [vmem:[%s9 + $0x4] sm:$0xf]
    %v915 = vld [vmem:[%s9 + $0x8] sm:$0xf]
    %v916 = vld [vmem:[%s9 + $0xc] sm:$0xf]
    %v917 = vld [vmem:[#allocation10] sm:$0x1]
    %v919 = vlaneseq
    %v920 = vshrl.u32 %v919, 7
    %v921 = vsub.s32 0, %v920
    %v922 = vrot.slane %v917, %v921
    %v928 = vunpack.c.l.b16 %v913
    %v929 = vunpack.c.l.b16 %v914
    %v930 = vunpack.c.l.b16 %v915
    %v931 = vunpack.c.l.b16 %v916
    %v932 = vpack.c.b16 %v929, %v928
    %v933 = vpack.c.b16 %v931, %v930
    %v937 = vsel %vm285, %v912, 0
    %939 = vmatprep.subr.bf16.mxu0 0
    %940 = vmatpush1.bf16.msra.mxu0 %v932
    %941 = vmatprep.subr.bf16.mxu0 0
    %942 = vmatpush1.bf16.msra.mxu0 %v933
    %943 = vmatprep.subr.bf16.mxu0 0
    %944 = vmatpush1.bf16.msra.mxu0 0
    %945 = vmatprep.subr.bf16.mxu0 0
    %946 = vmatpush1.bf16.msra.mxu0 0
    %947 = vmatprep.subr.bf16.mxu0 0
    %948 = vmatpush1.bf16.msra.mxu0 0
    %949 = vmatprep.subr.bf16.mxu0 0
    %950 = vmatpush1.bf16.msra.mxu0 0
    %951 = vmatprep.subr.bf16.mxu0 0
    %952 = vmatpush1.bf16.msra.mxu0 0
    %953 = vmatprep.subr.bf16.mxu0 0
    %954 = vmatpush1.bf16.msra.mxu0 0
    %955 = vmatprep.subr.bf16.mxu0 0
    %956 = vmatpush1.bf16.msra.mxu0 0
    %957 = vmatprep.subr.bf16.mxu0 0
    %958 = vmatpush1.bf16.msra.mxu0 0
    %959 = vmatprep.subr.bf16.mxu0 0
    %960 = vmatpush1.bf16.msra.mxu0 0
    %961 = vmatprep.subr.bf16.mxu0 0
    %962 = vmatpush1.bf16.msra.mxu0 0
    %963 = vmatprep.subr.bf16.mxu0 0
    %964 = vmatpush1.bf16.msra.mxu0 0
    %965 = vmatprep.subr.bf16.mxu0 0
    %966 = vmatpush1.bf16.msra.mxu0 0
    %967 = vmatprep.subr.bf16.mxu0 0
    %968 = vmatpush1.bf16.msra.mxu0 0
    %969 = vmatprep.subr.bf16.mxu0 0
    %970 = vmatpush1.bf16.msra.mxu0 0
    %971 = vmatprep.mubr.bf16.mxu0 0
    %972 = vmatmul.mubr.bf16.gmra.mrb[0].mxu0 %v937
    %v973 = vpop.f32.mrb[0].mxu0
    %v974 = vadd.f32 %v922, %v973
    %v975 = vpop.f32.mrb[0].mxu0
    %v976 = vpop.f32.mrb[0].mxu0
    %v977 = vadd.f32 %v922, %v976
    %v978 = vpop.f32.mrb[0].mxu0
    %979 = vdwg.mxu0
    %v980 = vmax.f32 %v974, 0.0
    %v981 = vmax.f32 %v977, 0.0
    %v982 = vpack.c.bf16 %v981, %v980
    %v983 = vld [vmem:[%s11] sm:$0xf]
    %v984 = vld [vmem:[%s11 + $0x4] sm:$0xf]
    %v985 = vld [vmem:[%s11 + $0x8] sm:$0xf]
    %v986 = vld [vmem:[%s11 + $0xc] sm:$0xf]
    %v987 = vld [vmem:[%s11 + $0x10] sm:$0xf]
    %v988 = vld [vmem:[%s11 + $0x14] sm:$0xf]
    %v989 = vld [vmem:[%s11 + $0x18] sm:$0xf]
    %v990 = vld [vmem:[%s11 + $0x1c] sm:$0xf]
    %v991 = vld [vmem:[#allocation11] sm:$0x1]
    %v993 = vlaneseq
    %v994 = vshrl.u32 %v993, 7
    %v995 = vsub.s32 0, %v994
    %v996 = vrot.slane %v991, %v995
    %v1006 = vunpack.c.l.b16 %v983
    %v1007 = vunpack.c.l.b16 %v984
    %v1008 = vunpack.c.l.b16 %v985
    %v1009 = vunpack.c.l.b16 %v986
    %v1010 = vunpack.c.l.b16 %v987
    %v1011 = vunpack.c.l.b16 %v988
    %v1012 = vunpack.c.l.b16 %v989
    %v1013 = vunpack.c.l.b16 %v990
    %v1014 = vpack.c.b16 %v1007, %v1006
    %v1015 = vpack.c.b16 %v1009, %v1008
    %v1016 = vpack.c.b16 %v1011, %v1010
    %v1017 = vpack.c.b16 %v1013, %v1012
    %vm1022 = vcmask 523264
    %v1024 = vsel %vm1022, %v982, 0
    %1026 = vmatprep.subr.bf16.mxu0 0
    %1027 = vmatpush1.bf16.msra.mxu0 %v1014
    %1028 = vmatprep.subr.bf16.mxu0 0
    %1029 = vmatpush1.bf16.msra.mxu0 %v1015
    %1030 = vmatprep.subr.bf16.mxu0 0
    %1031 = vmatpush1.bf16.msra.mxu0 %v1016
    %1032 = vmatprep.subr.bf16.mxu0 0
    %1033 = vmatpush1.bf16.msra.mxu0 %v1017
    %1034 = vmatprep.subr.bf16.mxu0 0
    %1035 = vmatpush1.bf16.msra.mxu0 0
    %1036 = vmatprep.subr.bf16.mxu0 0
    %1037 = vmatpush1.bf16.msra.mxu0 0
    %1038 = vmatprep.subr.bf16.mxu0 0
    %1039 = vmatpush1.bf16.msra.mxu0 0
    %1040 = vmatprep.subr.bf16.mxu0 0
    %1041 = vmatpush1.bf16.msra.mxu0 0
    %1042 = vmatprep.subr.bf16.mxu0 0
    %1043 = vmatpush1.bf16.msra.mxu0 0
    %1044 = vmatprep.subr.bf16.mxu0 0
    %1045 = vmatpush1.bf16.msra.mxu0 0
    %1046 = vmatprep.subr.bf16.mxu0 0
    %1047 = vmatpush1.bf16.msra.mxu0 0
    %1048 = vmatprep.subr.bf16.mxu0 0
    %1049 = vmatpush1.bf16.msra.mxu0 0
    %1050 = vmatprep.subr.bf16.mxu0 0
    %1051 = vmatpush1.bf16.msra.mxu0 0
    %1052 = vmatprep.subr.bf16.mxu0 0
    %1053 = vmatpush1.bf16.msra.mxu0 0
    %1054 = vmatprep.subr.bf16.mxu0 0
    %1055 = vmatpush1.bf16.msra.mxu0 0
    %1056 = vmatprep.subr.bf16.mxu0 0
    %1057 = vmatpush1.bf16.msra.mxu0 0
    %1058 = vmatprep.mubr.bf16.mxu0 0
    %1059 = vmatmul.mubr.bf16.gmra.mrb[0].mxu0 %v1024
    %v1060 = vpop.f32.mrb[0].mxu0
    %v1061 = vadd.f32 %v996, %v1060
    %v1062 = vpop.f32.mrb[0].mxu0
    %v1063 = vpop.f32.mrb[0].mxu0
    %v1064 = vadd.f32 %v996, %v1063
    %v1065 = vpop.f32.mrb[0].mxu0
    %1066 = vdwg.mxu0
    %v1067 = vadd.f32 %v910, %v1061
    %v1068 = vadd.f32 %v911, %v1064
    %v1069 = vld [vmem:[#allocation13] sm:$0x1]
    %v1070 = vld [vmem:[#allocation14] sm:$0x1]
    %v1071 = vsel %vm285, %v1067, 0.0
    %1072 = vadd.xlane.f32.xlu0 %v1071
    %v1073 = vpop.xlane.xlu0 %1072
    %v1074 = vsel %vm285, %v1068, 0.0
    %1075 = vadd.xlane.f32.xlu0 %v1074
    %v1076 = vpop.xlane.xlu0 %1075
    %v1077 = vmul.f32 %v1073, %v875
    %v1078 = vmul.f32 %v1076, %v875
    %v1079 = vsub.f32 %v1067, %v1077
    %v1080 = vsub.f32 %v1068, %v1078
    %v1081 = vmul.f32 %v1079, %v1079
    %v1082 = vmul.f32 %v1080, %v1080
    %v1083 = vsel %vm285, %v1081, 0.0
    %1084 = vadd.xlane.f32.xlu0 %v1083
    %v1085 = vpop.xlane.xlu0 %1084
    %v1086 = vsel %vm285, %v1082, 0.0
    %1087 = vadd.xlane.f32.xlu0 %v1086
    %v1088 = vpop.xlane.xlu0 %1087
    %v1089 = vmul.f32 %v1085, %v875
    %v1090 = vmul.f32 %v1088, %v875
    %v1091 = vadd.f32 %v1089, 1e-05
    %v1092 = vadd.f32 %v1090, 1e-05
    %v1093 = vrsqrt.pop %v1091
    %v1094 = vrsqrt.pop %v1092
    %v1095 = vmul.f32 %v1079, %v1093
    %v1096 = vmul.f32 %v1080, %v1094
    %v1098 = vlaneseq
    %v1099 = vshrl.u32 %v1098, 7
    %v1100 = vsub.s32 0, %v1099
    %v1101 = vrot.slane %v1069, %v1100
    %v1103 = vmul.f32 %v1095, %v1101
    %v1104 = vmul.f32 %v1096, %v1101
    %v1106 = vlaneseq
    %v1107 = vshrl.u32 %v1106, 7
    %v1108 = vsub.s32 0, %v1107
    %v1109 = vrot.slane %v1070, %v1108
    %v1111 = vadd.f32 %v1103, %v1109
    %v1112 = vadd.f32 %v1104, %v1109
    %v1113 = vpack.c.bf16 %v1112, %v1111
    %s1114 = scalar_lea.vmem %s3, 16
    %v1115 = vld [vmem:[%s1114] sm:$0xf]
    %v1116 = vld [vmem:[%s1114 + $0x4] sm:$0xf]
    %v1117 = vld [vmem:[%s1114 + $0x8] sm:$0xf]
    %v1118 = vld [vmem:[%s1114 + $0xc] sm:$0xf]
    %s1119 = scalar_lea.vmem [#allocation2], 1
    %v1120 = vld [vmem:[%s1119] sm:$0x1]
    %v1122 = vlaneseq
    %v1123 = vshrl.u32 %v1122, 7
    %v1124 = vsub.s32 0, %v1123
    %v1125 = vrot.slane %v1120, %v1124
    %v1131 = vunpack.c.l.b16 %v1115
    %v1132 = vunpack.c.l.b16 %v1116
    %v1133 = vunpack.c.l.b16 %v1117
    %v1134 = vunpack.c.l.b16 %v1118
    %v1135 = vpack.c.b16 %v1132, %v1131
    %v1136 = vpack.c.b16 %v1134, %v1133
    %v1140 = vsel %vm285, %v1113, 0
    %1142 = vmatprep.subr.bf16.mxu0 0
    %1143 = vmatpush1.bf16.msra.mxu0 %v1135
    %1144 = vmatprep.subr.bf16.mxu0 0
    %1145 = vmatpush1.bf16.msra.mxu0 %v1136
    %1146 = vmatprep.subr.bf16.mxu0 0
    %1147 = vmatpush1.bf16.msra.mxu0 0
    %1148 = vmatprep.subr.bf16.mxu0 0
    %1149 = vmatpush1.bf16.msra.mxu0 0
    %1150 = vmatprep.subr.bf16.mxu0 0
    %1151 = vmatpush1.bf16.msra.mxu0 0
    %1152 = vmatprep.subr.bf16.mxu0 0
    %1153 = vmatpush1.bf16.msra.mxu0 0
    %1154 = vmatprep.subr.bf16.mxu0 0
    %1155 = vmatpush1.bf16.msra.mxu0 0
    %1156 = vmatprep.subr.bf16.mxu0 0
    %1157 = vmatpush1.bf16.msra.mxu0 0
    %1158 = vmatprep.subr.bf16.mxu0 0
    %1159 = vmatpush1.bf16.msra.mxu0 0
    %1160 = vmatprep.subr.bf16.mxu0 0
    %1161 = vmatpush1.bf16.msra.mxu0 0
    %1162 = vmatprep.subr.bf16.mxu0 0
    %1163 = vmatpush1.bf16.msra.mxu0 0
    %1164 = vmatprep.subr.bf16.mxu0 0
    %1165 = vmatpush1.bf16.msra.mxu0 0
    %1166 = vmatprep.subr.bf16.mxu0 0
    %1167 = vmatpush1.bf16.msra.mxu0 0
    %1168 = vmatprep.subr.bf16.mxu0 0
    %1169 = vmatpush1.bf16.msra.mxu0 0
    %1170 = vmatprep.subr.bf16.mxu0 0
    %1171 = vmatpush1.bf16.msra.mxu0 0
    %1172 = vmatprep.subr.bf16.mxu0 0
    %1173 = vmatpush1.bf16.msra.mxu0 0
    %1174 = vmatprep.mubr.bf16.mxu0 0
    %1175 = vmatmul.mubr.bf16.gmra.mrb[0].mxu0 %v1140
    %v1176 = vpop.f32.mrb[0].mxu0
    %v1177 = vadd.f32 %v1125, %v1176
    %v1178 = vpop.f32.mrb[0].mxu0
    %v1179 = vpop.f32.mrb[0].mxu0
    %v1180 = vadd.f32 %v1125, %v1179
    %v1181 = vpop.f32.mrb[0].mxu0
    %1182 = vdwg.mxu0
    %v1183 = vmul.f32 %v1177, 0.25
    %v1184 = vmul.f32 %v1180, 0.25
    %v1185 = vpack.c.bf16 %v1183, %v1183
    %v1186 = vpack.c.bf16 %v1184, %v1184
    %v1187 = vpack.c.bf16 %v1177, %v1177
    %v1188 = vpack.c.bf16 %v1180, %v1180
    %1190 = vrot.lane.b32.xlu0 %v1187, 96
    %v1191 = vpop.permute.xlu0 %1190
    %v1193 = vsel %vm339, %v1185, 0
    %v1196 = vsel %vm339, %v1191, 0
    %1198 = vmatprep.subr.bf16.mxu0 0
    %1199 = vmatpush1.bf16.xpose.msra.mxu0 %v1196
    %1200 = vmatprep.subr.bf16.mxu0 0
    %1201 = vmatpush1.bf16.xpose.msra.mxu0 0
    %1202 = vmatprep.subr.bf16.mxu0 0
    %1203 = vmatpush1.bf16.xpose.msra.mxu0 0
    %1204 = vmatprep.subr.bf16.mxu0 0
    %1205 = vmatpush1.bf16.xpose.msra.mxu0 0
    %1206 = vmatprep.subr.bf16.mxu0 0
    %1207 = vmatpush1.bf16.xpose.msra.mxu0 0
    %1208 = vmatprep.subr.bf16.mxu0 0
    %1209 = vmatpush1.bf16.xpose.msra.mxu0 0
    %1210 = vmatprep.subr.bf16.mxu0 0
    %1211 = vmatpush1.bf16.xpose.msra.mxu0 0
    %1212 = vmatprep.subr.bf16.mxu0 0
    %1213 = vmatpush1.bf16.xpose.msra.mxu0 0
    %1214 = vmatprep.subr.bf16.mxu0 0
    %1215 = vmatpush1.bf16.xpose.msra.mxu0 0
    %1216 = vmatprep.subr.bf16.mxu0 0
    %1217 = vmatpush1.bf16.xpose.msra.mxu0 0
    %1218 = vmatprep.subr.bf16.mxu0 0
    %1219 = vmatpush1.bf16.xpose.msra.mxu0 0
    %1220 = vmatprep.subr.bf16.mxu0 0
    %1221 = vmatpush1.bf16.xpose.msra.mxu0 0
    %1222 = vmatprep.subr.bf16.mxu0 0
    %1223 = vmatpush1.bf16.xpose.msra.mxu0 0
    %1224 = vmatprep.subr.bf16.mxu0 0
    %1225 = vmatpush1.bf16.xpose.msra.mxu0 0
    %1226 = vmatprep.subr.bf16.mxu0 0
    %1227 = vmatpush1.bf16.xpose.msra.mxu0 0
    %1228 = vmatprep.subr.bf16.mxu0 0
    %1229 = vmatpush1.bf16.xpose.msra.mxu0 0
    %1230 = vmatprep.mubr.bf16.mxu0 0
    %1231 = vmatmul.mubr.bf16.gmra.mrb[0].mxu0 %v1193
    %v1232 = vpop.f32.mrb[0].mxu0
    %v1233 = vadd.f32 0.0, %v1232
    %v1234 = vpop.f32.mrb[0].mxu0
    %v1235 = vpop.f32.mrb[0].mxu0
    %v1236 = vpop.f32.mrb[0].mxu0
    %1237 = vdwg.mxu0
    %1239 = vrot.lane.b32.xlu0 %v1188, 96
    %v1240 = vpop.permute.xlu0 %1239
    %v1242 = vsel %vm339, %v1186, 0
    %v1245 = vsel %vm339, %v1240, 0
    %1247 = vmatprep.subr.bf16.mxu0 0
    %1248 = vmatpush1.bf16.xpose.msra.mxu0 %v1245
    %1249 = vmatprep.subr.bf16.mxu0 0
    %1250 = vmatpush1.bf16.xpose.msra.mxu0 0
    %1251 = vmatprep.subr.bf16.mxu0 0
    %1252 = vmatpush1.bf16.xpose.msra.mxu0 0
    %1253 = vmatprep.subr.bf16.mxu0 0
    %1254 = vmatpush1.bf16.xpose.msra.mxu0 0
    %1255 = vmatprep.subr.bf16.mxu0 0
    %1256 = vmatpush1.bf16.xpose.msra.mxu0 0
    %1257 = vmatprep.subr.bf16.mxu0 0
    %1258 = vmatpush1.bf16.xpose.msra.mxu0 0
    %1259 = vmatprep.subr.bf16.mxu0 0
    %1260 = vmatpush1.bf16.xpose.msra.mxu0 0
    %1261 = vmatprep.subr.bf16.mxu0 0
    %1262 = vmatpush1.bf16.xpose.msra.mxu0 0
    %1263 = vmatprep.subr.bf16.mxu0 0
    %1264 = vmatpush1.bf16.xpose.msra.mxu0 0
    %1265 = vmatprep.subr.bf16.mxu0 0
    %1266 = vmatpush1.bf16.xpose.msra.mxu0 0
    %1267 = vmatprep.subr.bf16.mxu0 0
    %1268 = vmatpush1.bf16.xpose.msra.mxu0 0
    %1269 = vmatprep.subr.bf16.mxu0 0
    %1270 = vmatpush1.bf16.xpose.msra.mxu0 0
    %1271 = vmatprep.subr.bf16.mxu0 0
    %1272 = vmatpush1.bf16.xpose.msra.mxu0 0
    %1273 = vmatprep.subr.bf16.mxu0 0
    %1274 = vmatpush1.bf16.xpose.msra.mxu0 0
    %1275 = vmatprep.subr.bf16.mxu0 0
    %1276 = vmatpush1.bf16.xpose.msra.mxu0 0
    %1277 = vmatprep.subr.bf16.mxu0 0
    %1278 = vmatpush1.bf16.xpose.msra.mxu0 0
    %1279 = vmatprep.mubr.bf16.mxu0 0
    %1280 = vmatmul.mubr.bf16.gmra.mrb[0].mxu0 %v1242
    %v1281 = vpop.f32.mrb[0].mxu0
    %v1282 = vadd.f32 0.0, %v1281
    %v1283 = vpop.f32.mrb[0].mxu0
    %v1284 = vpop.f32.mrb[0].mxu0
    %v1285 = vpop.f32.mrb[0].mxu0
    %1286 = vdwg.mxu0
    %v1287 = vsel %vm437, %v1233, -1000000.0
    %v1288 = vsel %vm438, %v1282, -1000000.0
    %v1289 = vsel %vm441, %v1287, -inf
    %1290 = vmax.xlane.f32.xlu0 %v1289
    %v1291 = vpop.xlane.xlu0 %1290
    %v1292 = vsel %vm441, %v1288, -inf
    %1293 = vmax.xlane.f32.xlu0 %v1292
    %v1294 = vpop.xlane.xlu0 %1293
    %v1295 = vsub.f32 %v1287, %v1291
    %v1296 = vsub.f32 %v1288, %v1294
    %v1297 = vmul.f32 %v1295, 1.442695
    %v1298 = vpow.pop %v1297
    %v1299 = vmul.f32 %v1296, 1.442695
    %v1300 = vpow.pop %v1299
    %v1301 = vsel %vm441, %v1298, 0.0
    %1302 = vadd.xlane.f32.xlu0 %v1301
    %v1303 = vpop.xlane.xlu0 %1302
    %v1304 = vsel %vm441, %v1300, 0.0
    %1305 = vadd.xlane.f32.xlu0 %v1304
    %v1306 = vpop.xlane.xlu0 %1305
    %v1307 = vrcp.pop %v1303
    %v1308 = vrcp.pop %v1306
    %v1309 = vmul.f32 %v1298, %v1307
    %v1310 = vmul.f32 %v1300, %v1308
    %v1311 = vpack.c.bf16 %v1309, %v1309
    %v1312 = vpack.c.bf16 %v1310, %v1310
    %1313 = vrot.lane.b32.xlu0 %v1187, 64
    %v1314 = vpop.permute.xlu0 %1313
    %v1316 = vsel %vm441, %v1311, 0
    %v1319 = vsel %vm471, %v1314, 0
    %1321 = vmatprep.subr.bf16.mxu0 0
    %1322 = vmatpush1.bf16.msra.mxu0 %v1319
    %1323 = vmatprep.subr.bf16.mxu0 0
    %1324 = vmatpush1.bf16.msra.mxu0 0
    %1325 = vmatprep.subr.bf16.mxu0 0
    %1326 = vmatpush1.bf16.msra.mxu0 0
    %1327 = vmatprep.subr.bf16.mxu0 0
    %1328 = vmatpush1.bf16.msra.mxu0 0
    %1329 = vmatprep.subr.bf16.mxu0 0
    %1330 = vmatpush1.bf16.msra.mxu0 0
    %1331 = vmatprep.subr.bf16.mxu0 0
    %1332 = vmatpush1.bf16.msra.mxu0 0
    %1333 = vmatprep.subr.bf16.mxu0 0
    %1334 = vmatpush1.bf16.msra.mxu0 0
    %1335 = vmatprep.subr.bf16.mxu0 0
    %1336 = vmatpush1.bf16.msra.mxu0 0
    %1337 = vmatprep.subr.bf16.mxu0 0
    %1338 = vmatpush1.bf16.msra.mxu0 0
    %1339 = vmatprep.subr.bf16.mxu0 0
    %1340 = vmatpush1.bf16.msra.mxu0 0
    %1341 = vmatprep.subr.bf16.mxu0 0
    %1342 = vmatpush1.bf16.msra.mxu0 0
    %1343 = vmatprep.subr.bf16.mxu0 0
    %1344 = vmatpush1.bf16.msra.mxu0 0
    %1345 = vmatprep.subr.bf16.mxu0 0
    %1346 = vmatpush1.bf16.msra.mxu0 0
    %1347 = vmatprep.subr.bf16.mxu0 0
    %1348 = vmatpush1.bf16.msra.mxu0 0
    %1349 = vmatprep.subr.bf16.mxu0 0
    %1350 = vmatpush1.bf16.msra.mxu0 0
    %1351 = vmatprep.subr.bf16.mxu0 0
    %1352 = vmatpush1.bf16.msra.mxu0 0
    %1353 = vmatprep.mubr.bf16.mxu0 0
    %1354 = vmatmul.mubr.bf16.gmra.mrb[0].mxu0 %v1316
    %v1355 = vpop.f32.mrb[0].mxu0
    %v1356 = vadd.f32 0.0, %v1355
    %v1357 = vpop.f32.mrb[0].mxu0
    %v1358 = vpop.f32.mrb[0].mxu0
    %v1359 = vpop.f32.mrb[0].mxu0
    %1360 = vdwg.mxu0
    %1361 = vrot.lane.b32.xlu0 %v1188, 64
    %v1362 = vpop.permute.xlu0 %1361
    %v1364 = vsel %vm441, %v1312, 0
    %v1367 = vsel %vm471, %v1362, 0
    %1369 = vmatprep.subr.bf16.mxu0 0
    %1370 = vmatpush1.bf16.msra.mxu0 %v1367
    %1371 = vmatprep.subr.bf16.mxu0 0
    %1372 = vmatpush1.bf16.msra.mxu0 0
    %1373 = vmatprep.subr.bf16.mxu0 0
    %1374 = vmatpush1.bf16.msra.mxu0 0
    %1375 = vmatprep.subr.bf16.mxu0 0
    %1376 = vmatpush1.bf16.msra.mxu0 0
    %1377 = vmatprep.subr.bf16.mxu0 0
    %1378 = vmatpush1.bf16.msra.mxu0 0
    %1379 = vmatprep.subr.bf16.mxu0 0
    %1380 = vmatpush1.bf16.msra.mxu0 0
    %1381 = vmatprep.subr.bf16.mxu0 0
    %1382 = vmatpush1.bf16.msra.mxu0 0
    %1383 = vmatprep.subr.bf16.mxu0 0
    %1384 = vmatpush1.bf16.msra.mxu0 0
    %1385 = vmatprep.subr.bf16.mxu0 0
    %1386 = vmatpush1.bf16.msra.mxu0 0
    %1387 = vmatprep.subr.bf16.mxu0 0
    %1388 = vmatpush1.bf16.msra.mxu0 0
    %1389 = vmatprep.subr.bf16.mxu0 0
    %1390 = vmatpush1.bf16.msra.mxu0 0
    %1391 = vmatprep.subr.bf16.mxu0 0
    %1392 = vmatpush1.bf16.msra.mxu0 0
    %1393 = vmatprep.subr.bf16.mxu0 0
    %1394 = vmatpush1.bf16.msra.mxu0 0
    %1395 = vmatprep.subr.bf16.mxu0 0
    %1396 = vmatpush1.bf16.msra.mxu0 0
    %1397 = vmatprep.subr.bf16.mxu0 0
    %1398 = vmatpush1.bf16.msra.mxu0 0
    %1399 = vmatprep.subr.bf16.mxu0 0
    %1400 = vmatpush1.bf16.msra.mxu0 0
    %1401 = vmatprep.mubr.bf16.mxu0 0
    %1402 = vmatmul.mubr.bf16.gmra.mrb[0].mxu0 %v1364
    %v1403 = vpop.f32.mrb[0].mxu0
    %v1404 = vadd.f32 0.0, %v1403
    %v1405 = vpop.f32.mrb[0].mxu0
    %v1406 = vpop.f32.mrb[0].mxu0
    %v1407 = vpop.f32.mrb[0].mxu0
    %1408 = vdwg.mxu0
    %1410 = vrot.lane.b32.xlu0 %v1185, 112
    %v1411 = vpop.permute.xlu0 %1410
    %1412 = vrot.lane.b32.xlu0 %v1187, 80
    %v1413 = vpop.permute.xlu0 %1412
    %v1415 = vsel %vm339, %v1411, 0
    %v1418 = vsel %vm339, %v1413, 0
    %1420 = vmatprep.subr.bf16.mxu0 0
    %1421 = vmatpush1.bf16.xpose.msra.mxu0 %v1418
    %1422 = vmatprep.subr.bf16.mxu0 0
    %1423 = vmatpush1.bf16.xpose.msra.mxu0 0
    %1424 = vmatprep.subr.bf16.mxu0 0
    %1425 = vmatpush1.bf16.xpose.msra.mxu0 0
    %1426 = vmatprep.subr.bf16.mxu0 0
    %1427 = vmatpush1.bf16.xpose.msra.mxu0 0
    %1428 = vmatprep.subr.bf16.mxu0 0
    %1429 = vmatpush1.bf16.xpose.msra.mxu0 0
    %1430 = vmatprep.subr.bf16.mxu0 0
    %1431 = vmatpush1.bf16.xpose.msra.mxu0 0
    %1432 = vmatprep.subr.bf16.mxu0 0
    %1433 = vmatpush1.bf16.xpose.msra.mxu0 0
    %1434 = vmatprep.subr.bf16.mxu0 0
    %1435 = vmatpush1.bf16.xpose.msra.mxu0 0
    %1436 = vmatprep.subr.bf16.mxu0 0
    %1437 = vmatpush1.bf16.xpose.msra.mxu0 0
    %1438 = vmatprep.subr.bf16.mxu0 0
    %1439 = vmatpush1.bf16.xpose.msra.mxu0 0
    %1440 = vmatprep.subr.bf16.mxu0 0
    %1441 = vmatpush1.bf16.xpose.msra.mxu0 0
    %1442 = vmatprep.subr.bf16.mxu0 0
    %1443 = vmatpush1.bf16.xpose.msra.mxu0 0
    %1444 = vmatprep.subr.bf16.mxu0 0
    %1445 = vmatpush1.bf16.xpose.msra.mxu0 0
    %1446 = vmatprep.subr.bf16.mxu0 0
    %1447 = vmatpush1.bf16.xpose.msra.mxu0 0
    %1448 = vmatprep.subr.bf16.mxu0 0
    %1449 = vmatpush1.bf16.xpose.msra.mxu0 0
    %1450 = vmatprep.subr.bf16.mxu0 0
    %1451 = vmatpush1.bf16.xpose.msra.mxu0 0
    %1452 = vmatprep.mubr.bf16.mxu0 0
    %1453 = vmatmul.mubr.bf16.gmra.mrb[0].mxu0 %v1415
    %v1454 = vpop.f32.mrb[0].mxu0
    %v1455 = vadd.f32 0.0, %v1454
    %v1456 = vpop.f32.mrb[0].mxu0
    %v1457 = vpop.f32.mrb[0].mxu0
    %v1458 = vpop.f32.mrb[0].mxu0
    %1459 = vdwg.mxu0
    %1461 = vrot.lane.b32.xlu0 %v1186, 112
    %v1462 = vpop.permute.xlu0 %1461
    %1463 = vrot.lane.b32.xlu0 %v1188, 80
    %v1464 = vpop.permute.xlu0 %1463
    %v1466 = vsel %vm339, %v1462, 0
    %v1469 = vsel %vm339, %v1464, 0
    %1471 = vmatprep.subr.bf16.mxu0 0
    %1472 = vmatpush1.bf16.xpose.msra.mxu0 %v1469
    %1473 = vmatprep.subr.bf16.mxu0 0
    %1474 = vmatpush1.bf16.xpose.msra.mxu0 0
    %1475 = vmatprep.subr.bf16.mxu0 0
    %1476 = vmatpush1.bf16.xpose.msra.mxu0 0
    %1477 = vmatprep.subr.bf16.mxu0 0
    %1478 = vmatpush1.bf16.xpose.msra.mxu0 0
    %1479 = vmatprep.subr.bf16.mxu0 0
    %1480 = vmatpush1.bf16.xpose.msra.mxu0 0
    %1481 = vmatprep.subr.bf16.mxu0 0
    %1482 = vmatpush1.bf16.xpose.msra.mxu0 0
    %1483 = vmatprep.subr.bf16.mxu0 0
    %1484 = vmatpush1.bf16.xpose.msra.mxu0 0
    %1485 = vmatprep.subr.bf16.mxu0 0
    %1486 = vmatpush1.bf16.xpose.msra.mxu0 0
    %1487 = vmatprep.subr.bf16.mxu0 0
    %1488 = vmatpush1.bf16.xpose.msra.mxu0 0
    %1489 = vmatprep.subr.bf16.mxu0 0
    %1490 = vmatpush1.bf16.xpose.msra.mxu0 0
    %1491 = vmatprep.subr.bf16.mxu0 0
    %1492 = vmatpush1.bf16.xpose.msra.mxu0 0
    %1493 = vmatprep.subr.bf16.mxu0 0
    %1494 = vmatpush1.bf16.xpose.msra.mxu0 0
    %1495 = vmatprep.subr.bf16.mxu0 0
    %1496 = vmatpush1.bf16.xpose.msra.mxu0 0
    %1497 = vmatprep.subr.bf16.mxu0 0
    %1498 = vmatpush1.bf16.xpose.msra.mxu0 0
    %1499 = vmatprep.subr.bf16.mxu0 0
    %1500 = vmatpush1.bf16.xpose.msra.mxu0 0
    %1501 = vmatprep.subr.bf16.mxu0 0
    %1502 = vmatpush1.bf16.xpose.msra.mxu0 0
    %1503 = vmatprep.mubr.bf16.mxu0 0
    %1504 = vmatmul.mubr.bf16.gmra.mrb[0].mxu0 %v1466
    %v1505 = vpop.f32.mrb[0].mxu0
    %v1506 = vadd.f32 0.0, %v1505
    %v1507 = vpop.f32.mrb[0].mxu0
    %v1508 = vpop.f32.mrb[0].mxu0
    %v1509 = vpop.f32.mrb[0].mxu0
    %1510 = vdwg.mxu0
    %v1511 = vsel %vm437, %v1455, -1000000.0
    %v1512 = vsel %vm438, %v1506, -1000000.0
    %v1513 = vsel %vm441, %v1511, -inf
    %1514 = vmax.xlane.f32.xlu0 %v1513
    %v1515 = vpop.xlane.xlu0 %1514
    %v1516 = vsel %vm441, %v1512, -inf
    %1517 = vmax.xlane.f32.xlu0 %v1516
    %v1518 = vpop.xlane.xlu0 %1517
    %v1519 = vsub.f32 %v1511, %v1515
    %v1520 = vsub.f32 %v1512, %v1518
    %v1521 = vmul.f32 %v1519, 1.442695
    %v1522 = vpow.pop %v1521
    %v1523 = vmul.f32 %v1520, 1.442695
    %v1524 = vpow.pop %v1523
    %v1525 = vsel %vm441, %v1522, 0.0
    %1526 = vadd.xlane.f32.xlu0 %v1525
    %v1527 = vpop.xlane.xlu0 %1526
    %v1528 = vsel %vm441, %v1524, 0.0
    %1529 = vadd.xlane.f32.xlu0 %v1528
    %v1530 = vpop.xlane.xlu0 %1529
    %v1531 = vrcp.pop %v1527
    %v1532 = vrcp.pop %v1530
    %v1533 = vmul.f32 %v1522, %v1531
    %v1534 = vmul.f32 %v1524, %v1532
    %v1535 = vpack.c.bf16 %v1533, %v1533
    %v1536 = vpack.c.bf16 %v1534, %v1534
    %1537 = vrot.lane.b32.xlu0 %v1187, 48
    %v1538 = vpop.permute.xlu0 %1537
    %v1540 = vsel %vm441, %v1535, 0
    %v1543 = vsel %vm471, %v1538, 0
    %1545 = vmatprep.subr.bf16.mxu0 0
    %1546 = vmatpush1.bf16.msra.mxu0 %v1543
    %1547 = vmatprep.subr.bf16.mxu0 0
    %1548 = vmatpush1.bf16.msra.mxu0 0
    %1549 = vmatprep.subr.bf16.mxu0 0
    %1550 = vmatpush1.bf16.msra.mxu0 0
    %1551 = vmatprep.subr.bf16.mxu0 0
    %1552 = vmatpush1.bf16.msra.mxu0 0
    %1553 = vmatprep.subr.bf16.mxu0 0
    %1554 = vmatpush1.bf16.msra.mxu0 0
    %1555 = vmatprep.subr.bf16.mxu0 0
    %1556 = vmatpush1.bf16.msra.mxu0 0
    %1557 = vmatprep.subr.bf16.mxu0 0
    %1558 = vmatpush1.bf16.msra.mxu0 0
    %1559 = vmatprep.subr.bf16.mxu0 0
    %1560 = vmatpush1.bf16.msra.mxu0 0
    %1561 = vmatprep.subr.bf16.mxu0 0
    %1562 = vmatpush1.bf16.msra.mxu0 0
    %1563 = vmatprep.subr.bf16.mxu0 0
    %1564 = vmatpush1.bf16.msra.mxu0 0
    %1565 = vmatprep.subr.bf16.mxu0 0
    %1566 = vmatpush1.bf16.msra.mxu0 0
    %1567 = vmatprep.subr.bf16.mxu0 0
    %1568 = vmatpush1.bf16.msra.mxu0 0
    %1569 = vmatprep.subr.bf16.mxu0 0
    %1570 = vmatpush1.bf16.msra.mxu0 0
    %1571 = vmatprep.subr.bf16.mxu0 0
    %1572 = vmatpush1.bf16.msra.mxu0 0
    %1573 = vmatprep.subr.bf16.mxu0 0
    %1574 = vmatpush1.bf16.msra.mxu0 0
    %1575 = vmatprep.subr.bf16.mxu0 0
    %1576 = vmatpush1.bf16.msra.mxu0 0
    %1577 = vmatprep.mubr.bf16.mxu0 0
    %1578 = vmatmul.mubr.bf16.gmra.mrb[0].mxu0 %v1540
    %v1579 = vpop.f32.mrb[0].mxu0
    %v1580 = vadd.f32 0.0, %v1579
    %v1581 = vpop.f32.mrb[0].mxu0
    %v1582 = vpop.f32.mrb[0].mxu0
    %v1583 = vpop.f32.mrb[0].mxu0
    %1584 = vdwg.mxu0
    %1585 = vrot.lane.b32.xlu0 %v1188, 48
    %v1586 = vpop.permute.xlu0 %1585
    %v1588 = vsel %vm441, %v1536, 0
    %v1591 = vsel %vm471, %v1586, 0
    %1593 = vmatprep.subr.bf16.mxu0 0
    %1594 = vmatpush1.bf16.msra.mxu0 %v1591
    %1595 = vmatprep.subr.bf16.mxu0 0
    %1596 = vmatpush1.bf16.msra.mxu0 0
    %1597 = vmatprep.subr.bf16.mxu0 0
    %1598 = vmatpush1.bf16.msra.mxu0 0
    %1599 = vmatprep.subr.bf16.mxu0 0
    %1600 = vmatpush1.bf16.msra.mxu0 0
    %1601 = vmatprep.subr.bf16.mxu0 0
    %1602 = vmatpush1.bf16.msra.mxu0 0
    %1603 = vmatprep.subr.bf16.mxu0 0
    %1604 = vmatpush1.bf16.msra.mxu0 0
    %1605 = vmatprep.subr.bf16.mxu0 0
    %1606 = vmatpush1.bf16.msra.mxu0 0
    %1607 = vmatprep.subr.bf16.mxu0 0
    %1608 = vmatpush1.bf16.msra.mxu0 0
    %1609 = vmatprep.subr.bf16.mxu0 0
    %1610 = vmatpush1.bf16.msra.mxu0 0
    %1611 = vmatprep.subr.bf16.mxu0 0
    %1612 = vmatpush1.bf16.msra.mxu0 0
    %1613 = vmatprep.subr.bf16.mxu0 0
    %1614 = vmatpush1.bf16.msra.mxu0 0
    %1615 = vmatprep.subr.bf16.mxu0 0
    %1616 = vmatpush1.bf16.msra.mxu0 0
    %1617 = vmatprep.subr.bf16.mxu0 0
    %1618 = vmatpush1.bf16.msra.mxu0 0
    %1619 = vmatprep.subr.bf16.mxu0 0
    %1620 = vmatpush1.bf16.msra.mxu0 0
    %1621 = vmatprep.subr.bf16.mxu0 0
    %1622 = vmatpush1.bf16.msra.mxu0 0
    %1623 = vmatprep.subr.bf16.mxu0 0
    %1624 = vmatpush1.bf16.msra.mxu0 0
    %1625 = vmatprep.mubr.bf16.mxu0 0
    %1626 = vmatmul.mubr.bf16.gmra.mrb[0].mxu0 %v1588
    %v1627 = vpop.f32.mrb[0].mxu0
    %v1628 = vadd.f32 0.0, %v1627
    %v1629 = vpop.f32.mrb[0].mxu0
    %v1630 = vpop.f32.mrb[0].mxu0
    %v1631 = vpop.f32.mrb[0].mxu0
    %1632 = vdwg.mxu0
    %1635 = vrot.lane.b32.xlu0 %v1580, 16
    %v1636 = vpop.permute.xlu0 %1635
    %1637 = vrot.lane.b32.xlu0 %v1628, 16
    %v1638 = vpop.permute.xlu0 %1637
    %v1641 = vsel %vm339, %v1356, %v1636
    %v1642 = vsel %vm339, %v1404, %v1638
    %v1643 = vpack.c.bf16 %v1642, %v1641
    %s1644 = scalar_lea.vmem %s5, 16
    %v1645 = vld [vmem:[%s1644] sm:$0xf]
    %v1646 = vld [vmem:[%s1644 + $0x4] sm:$0xf]
    %v1647 = vld [vmem:[%s1644 + $0x8] sm:$0xf]
    %v1648 = vld [vmem:[%s1644 + $0xc] sm:$0xf]
    %s1649 = scalar_lea.vmem [#allocation5], 1
    %v1650 = vld [vmem:[%s1649] sm:$0x1]
    %v1652 = vlaneseq
    %v1653 = vshrl.u32 %v1652, 7
    %v1654 = vsub.s32 0, %v1653
    %v1655 = vrot.slane %v1650, %v1654
    %v1661 = vunpack.c.l.b16 %v1645
    %v1662 = vunpack.c.l.b16 %v1646
    %v1663 = vunpack.c.l.b16 %v1647
    %v1664 = vunpack.c.l.b16 %v1648
    %v1665 = vpack.c.b16 %v1662, %v1661
    %v1666 = vpack.c.b16 %v1664, %v1663
    %v1670 = vsel %vm285, %v1643, 0
    %1672 = vmatprep.subr.bf16.mxu0 0
    %1673 = vmatpush1.bf16.msra.mxu0 %v1665
    %1674 = vmatprep.subr.bf16.mxu0 0
    %1675 = vmatpush1.bf16.msra.mxu0 %v1666
    %1676 = vmatprep.subr.bf16.mxu0 0
    %1677 = vmatpush1.bf16.msra.mxu0 0
    %1678 = vmatprep.subr.bf16.mxu0 0
    %1679 = vmatpush1.bf16.msra.mxu0 0
    %1680 = vmatprep.subr.bf16.mxu0 0
    %1681 = vmatpush1.bf16.msra.mxu0 0
    %1682 = vmatprep.subr.bf16.mxu0 0
    %1683 = vmatpush1.bf16.msra.mxu0 0
    %1684 = vmatprep.subr.bf16.mxu0 0
    %1685 = vmatpush1.bf16.msra.mxu0 0
    %1686 = vmatprep.subr.bf16.mxu0 0
    %1687 = vmatpush1.bf16.msra.mxu0 0
    %1688 = vmatprep.subr.bf16.mxu0 0
    %1689 = vmatpush1.bf16.msra.mxu0 0
    %1690 = vmatprep.subr.bf16.mxu0 0
    %1691 = vmatpush1.bf16.msra.mxu0 0
    %1692 = vmatprep.subr.bf16.mxu0 0
    %1693 = vmatpush1.bf16.msra.mxu0 0
    %1694 = vmatprep.subr.bf16.mxu0 0
    %1695 = vmatpush1.bf16.msra.mxu0 0
    %1696 = vmatprep.subr.bf16.mxu0 0
    %1697 = vmatpush1.bf16.msra.mxu0 0
    %1698 = vmatprep.subr.bf16.mxu0 0
    %1699 = vmatpush1.bf16.msra.mxu0 0
    %1700 = vmatprep.subr.bf16.mxu0 0
    %1701 = vmatpush1.bf16.msra.mxu0 0
    %1702 = vmatprep.subr.bf16.mxu0 0
    %1703 = vmatpush1.bf16.msra.mxu0 0
    %1704 = vmatprep.mubr.bf16.mxu0 0
    %1705 = vmatmul.mubr.bf16.gmra.mrb[0].mxu0 %v1670
    %v1706 = vpop.f32.mrb[0].mxu0
    %v1707 = vadd.f32 %v1655, %v1706
    %v1708 = vpop.f32.mrb[0].mxu0
    %v1709 = vpop.f32.mrb[0].mxu0
    %v1710 = vadd.f32 %v1655, %v1709
    %v1711 = vpop.f32.mrb[0].mxu0
    %1712 = vdwg.mxu0
    %v1713 = vadd.f32 %v1111, %v1707
    %v1714 = vadd.f32 %v1112, %v1710
    %s1715 = scalar_lea.vmem [#allocation7], 1
    %v1716 = vld [vmem:[%s1715] sm:$0x1]
    %s1717 = scalar_lea.vmem [#allocation8], 1
    %v1718 = vld [vmem:[%s1717] sm:$0x1]
    %v1719 = vsel %vm285, %v1713, 0.0
    %1720 = vadd.xlane.f32.xlu0 %v1719
    %v1721 = vpop.xlane.xlu0 %1720
    %v1722 = vsel %vm285, %v1714, 0.0
    %1723 = vadd.xlane.f32.xlu0 %v1722
    %v1724 = vpop.xlane.xlu0 %1723
    %v1725 = vmul.f32 %v1721, %v875
    %v1726 = vmul.f32 %v1724, %v875
    %v1727 = vsub.f32 %v1713, %v1725
    %v1728 = vsub.f32 %v1714, %v1726
    %v1729 = vmul.f32 %v1727, %v1727
    %v1730 = vmul.f32 %v1728, %v1728
    %v1731 = vsel %vm285, %v1729, 0.0
    %1732 = vadd.xlane.f32.xlu0 %v1731
    %v1733 = vpop.xlane.xlu0 %1732
    %v1734 = vsel %vm285, %v1730, 0.0
    %1735 = vadd.xlane.f32.xlu0 %v1734
    %v1736 = vpop.xlane.xlu0 %1735
    %v1737 = vmul.f32 %v1733, %v875
    %v1738 = vmul.f32 %v1736, %v875
    %v1739 = vadd.f32 %v1737, 1e-05
    %v1740 = vadd.f32 %v1738, 1e-05
    %v1741 = vrsqrt.pop %v1739
    %v1742 = vrsqrt.pop %v1740
    %v1743 = vmul.f32 %v1727, %v1741
    %v1744 = vmul.f32 %v1728, %v1742
    %v1746 = vlaneseq
    %v1747 = vshrl.u32 %v1746, 7
    %v1748 = vsub.s32 0, %v1747
    %v1749 = vrot.slane %v1716, %v1748
    %v1751 = vmul.f32 %v1743, %v1749
    %v1752 = vmul.f32 %v1744, %v1749
    %v1754 = vlaneseq
    %v1755 = vshrl.u32 %v1754, 7
    %v1756 = vsub.s32 0, %v1755
    %v1757 = vrot.slane %v1718, %v1756
    %v1759 = vadd.f32 %v1751, %v1757
    %v1760 = vadd.f32 %v1752, %v1757
    %v1761 = vpack.c.bf16 %v1760, %v1759
    %s1762 = scalar_lea.vmem %s9, 16
    %v1763 = vld [vmem:[%s1762] sm:$0xf]
    %v1764 = vld [vmem:[%s1762 + $0x4] sm:$0xf]
    %v1765 = vld [vmem:[%s1762 + $0x8] sm:$0xf]
    %v1766 = vld [vmem:[%s1762 + $0xc] sm:$0xf]
    %s1767 = scalar_lea.vmem [#allocation10], 1
    %v1768 = vld [vmem:[%s1767] sm:$0x1]
    %v1770 = vlaneseq
    %v1771 = vshrl.u32 %v1770, 7
    %v1772 = vsub.s32 0, %v1771
    %v1773 = vrot.slane %v1768, %v1772
    %v1779 = vunpack.c.l.b16 %v1763
    %v1780 = vunpack.c.l.b16 %v1764
    %v1781 = vunpack.c.l.b16 %v1765
    %v1782 = vunpack.c.l.b16 %v1766
    %v1783 = vpack.c.b16 %v1780, %v1779
    %v1784 = vpack.c.b16 %v1782, %v1781
    %v1788 = vsel %vm285, %v1761, 0
    %1790 = vmatprep.subr.bf16.mxu0 0
    %1791 = vmatpush1.bf16.msra.mxu0 %v1783
    %1792 = vmatprep.subr.bf16.mxu0 0
    %1793 = vmatpush1.bf16.msra.mxu0 %v1784
    %1794 = vmatprep.subr.bf16.mxu0 0
    %1795 = vmatpush1.bf16.msra.mxu0 0
    %1796 = vmatprep.subr.bf16.mxu0 0
    %1797 = vmatpush1.bf16.msra.mxu0 0
    %1798 = vmatprep.subr.bf16.mxu0 0
    %1799 = vmatpush1.bf16.msra.mxu0 0
    %1800 = vmatprep.subr.bf16.mxu0 0
    %1801 = vmatpush1.bf16.msra.mxu0 0
    %1802 = vmatprep.subr.bf16.mxu0 0
    %1803 = vmatpush1.bf16.msra.mxu0 0
    %1804 = vmatprep.subr.bf16.mxu0 0
    %1805 = vmatpush1.bf16.msra.mxu0 0
    %1806 = vmatprep.subr.bf16.mxu0 0
    %1807 = vmatpush1.bf16.msra.mxu0 0
    %1808 = vmatprep.subr.bf16.mxu0 0
    %1809 = vmatpush1.bf16.msra.mxu0 0
    %1810 = vmatprep.subr.bf16.mxu0 0
    %1811 = vmatpush1.bf16.msra.mxu0 0
    %1812 = vmatprep.subr.bf16.mxu0 0
    %1813 = vmatpush1.bf16.msra.mxu0 0
    %1814 = vmatprep.subr.bf16.mxu0 0
    %1815 = vmatpush1.bf16.msra.mxu0 0
    %1816 = vmatprep.subr.bf16.mxu0 0
    %1817 = vmatpush1.bf16.msra.mxu0 0
    %1818 = vmatprep.subr.bf16.mxu0 0
    %1819 = vmatpush1.bf16.msra.mxu0 0
    %1820 = vmatprep.subr.bf16.mxu0 0
    %1821 = vmatpush1.bf16.msra.mxu0 0
    %1822 = vmatprep.mubr.bf16.mxu0 0
    %1823 = vmatmul.mubr.bf16.gmra.mrb[0].mxu0 %v1788
    %v1824 = vpop.f32.mrb[0].mxu0
    %v1825 = vadd.f32 %v1773, %v1824
    %v1826 = vpop.f32.mrb[0].mxu0
    %v1827 = vpop.f32.mrb[0].mxu0
    %v1828 = vadd.f32 %v1773, %v1827
    %v1829 = vpop.f32.mrb[0].mxu0
    %1830 = vdwg.mxu0
    %v1831 = vmax.f32 %v1825, 0.0
    %v1832 = vmax.f32 %v1828, 0.0
    %v1833 = vpack.c.bf16 %v1832, %v1831
    %s1834 = scalar_lea.vmem %s11, 32
    %v1835 = vld [vmem:[%s1834] sm:$0xf]
    %v1836 = vld [vmem:[%s1834 + $0x4] sm:$0xf]
    %v1837 = vld [vmem:[%s1834 + $0x8] sm:$0xf]
    %v1838 = vld [vmem:[%s1834 + $0xc] sm:$0xf]
    %v1839 = vld [vmem:[%s1834 + $0x10] sm:$0xf]
    %v1840 = vld [vmem:[%s1834 + $0x14] sm:$0xf]
    %v1841 = vld [vmem:[%s1834 + $0x18] sm:$0xf]
    %v1842 = vld [vmem:[%s1834 + $0x1c] sm:$0xf]
    %s1843 = scalar_lea.vmem [#allocation11], 1
    %v1844 = vld [vmem:[%s1843] sm:$0x1]
    %v1846 = vlaneseq
    %v1847 = vshrl.u32 %v1846, 7
    %v1848 = vsub.s32 0, %v1847
    %v1849 = vrot.slane %v1844, %v1848
    %v1859 = vunpack.c.l.b16 %v1835
    %v1860 = vunpack.c.l.b16 %v1836
    %v1861 = vunpack.c.l.b16 %v1837
    %v1862 = vunpack.c.l.b16 %v1838
    %v1863 = vunpack.c.l.b16 %v1839
    %v1864 = vunpack.c.l.b16 %v1840
    %v1865 = vunpack.c.l.b16 %v1841
    %v1866 = vunpack.c.l.b16 %v1842
    %v1867 = vpack.c.b16 %v1860, %v1859
    %v1868 = vpack.c.b16 %v1862, %v1861
    %v1869 = vpack.c.b16 %v1864, %v1863
    %v1870 = vpack.c.b16 %v1866, %v1865
    %v1876 = vsel %vm1022, %v1833, 0
    %1878 = vmatprep.subr.bf16.mxu0 0
    %1879 = vmatpush1.bf16.msra.mxu0 %v1867
    %1880 = vmatprep.subr.bf16.mxu0 0
    %1881 = vmatpush1.bf16.msra.mxu0 %v1868
    %1882 = vmatprep.subr.bf16.mxu0 0
    %1883 = vmatpush1.bf16.msra.mxu0 %v1869
    %1884 = vmatprep.subr.bf16.mxu0 0
    %1885 = vmatpush1.bf16.msra.mxu0 %v1870
    %1886 = vmatprep.subr.bf16.mxu0 0
    %1887 = vmatpush1.bf16.msra.mxu0 0
    %1888 = vmatprep.subr.bf16.mxu0 0
    %1889 = vmatpush1.bf16.msra.mxu0 0
    %1890 = vmatprep.subr.bf16.mxu0 0
    %1891 = vmatpush1.bf16.msra.mxu0 0
    %1892 = vmatprep.subr.bf16.mxu0 0
    %1893 = vmatpush1.bf16.msra.mxu0 0
    %1894 = vmatprep.subr.bf16.mxu0 0
    %1895 = vmatpush1.bf16.msra.mxu0 0
    %1896 = vmatprep.subr.bf16.mxu0 0
    %1897 = vmatpush1.bf16.msra.mxu0 0
    %1898 = vmatprep.subr.bf16.mxu0 0
    %1899 = vmatpush1.bf16.msra.mxu0 0
    %1900 = vmatprep.subr.bf16.mxu0 0
    %1901 = vmatpush1.bf16.msra.mxu0 0
    %1902 = vmatprep.subr.bf16.mxu0 0
    %1903 = vmatpush1.bf16.msra.mxu0 0
    %1904 = vmatprep.subr.bf16.mxu0 0
    %1905 = vmatpush1.bf16.msra.mxu0 0
    %1906 = vmatprep.subr.bf16.mxu0 0
    %1907 = vmatpush1.bf16.msra.mxu0 0
    %1908 = vmatprep.subr.bf16.mxu0 0
    %1909 = vmatpush1.bf16.msra.mxu0 0
    %1910 = vmatprep.mubr.bf16.mxu0 0
    %1911 = vmatmul.mubr.bf16.gmra.mrb[0].mxu0 %v1876
    %v1912 = vpop.f32.mrb[0].mxu0
    %v1913 = vadd.f32 %v1849, %v1912
    %v1914 = vpop.f32.mrb[0].mxu0
    %v1915 = vpop.f32.mrb[0].mxu0
    %v1916 = vadd.f32 %v1849, %v1915
    %v1917 = vpop.f32.mrb[0].mxu0
    %1918 = vdwg.mxu0
    %v1919 = vadd.f32 %v1759, %v1913
    %v1920 = vadd.f32 %v1760, %v1916
    %s1921 = scalar_lea.vmem [#allocation13], 1
    %v1922 = vld [vmem:[%s1921] sm:$0x1]
    %s1923 = scalar_lea.vmem [#allocation14], 1
    %v1924 = vld [vmem:[%s1923] sm:$0x1]
    %v1925 = vsel %vm285, %v1919, 0.0
    %1926 = vadd.xlane.f32.xlu0 %v1925
    %v1927 = vpop.xlane.xlu0 %1926
    %v1928 = vsel %vm285, %v1920, 0.0
    %1929 = vadd.xlane.f32.xlu0 %v1928
    %v1930 = vpop.xlane.xlu0 %1929
    %v1931 = vmul.f32 %v1927, %v875
    %v1932 = vmul.f32 %v1930, %v875
    %v1933 = vsub.f32 %v1919, %v1931
    %v1934 = vsub.f32 %v1920, %v1932
    %v1935 = vmul.f32 %v1933, %v1933
    %v1936 = vmul.f32 %v1934, %v1934
    %v1937 = vsel %vm285, %v1935, 0.0
    %1938 = vadd.xlane.f32.xlu0 %v1937
    %v1939 = vpop.xlane.xlu0 %1938
    %v1940 = vsel %vm285, %v1936, 0.0
    %1941 = vadd.xlane.f32.xlu0 %v1940
    %v1942 = vpop.xlane.xlu0 %1941
    %v1943 = vmul.f32 %v1939, %v875
    %v1944 = vmul.f32 %v1942, %v875
    %v1945 = vadd.f32 %v1943, 1e-05
    %v1946 = vadd.f32 %v1944, 1e-05
    %v1947 = vrsqrt.pop %v1945
    %v1948 = vrsqrt.pop %v1946
    %v1949 = vmul.f32 %v1933, %v1947
    %v1950 = vmul.f32 %v1934, %v1948
    %v1952 = vlaneseq
    %v1953 = vshrl.u32 %v1952, 7
    %v1954 = vsub.s32 0, %v1953
    %v1955 = vrot.slane %v1922, %v1954
    %v1957 = vmul.f32 %v1949, %v1955
    %v1958 = vmul.f32 %v1950, %v1955
    %v1960 = vlaneseq
    %v1961 = vshrl.u32 %v1960, 7
    %v1962 = vsub.s32 0, %v1961
    %v1963 = vrot.slane %v1924, %v1962
    %v1965 = vadd.f32 %v1957, %v1963
    %v1966 = vadd.f32 %v1958, %v1963
    %1967 = vst.msk [vmem:[#allocation19] sm:$0xff] %vm285, %v1965
    %1968 = vst.msk [vmem:[#allocation19 + $0x8] sm:$0xff] %vm285, %v1966
    %v1969 = vld [vmem:[%s2] sm:$0x3f]
    %1970 = vset.pattern.permute.xlu0 0
    %1971 = vperm.xlu0 %1970, %v1969
    %v1972 = vpop.permute.xlu0 %1971
    %vm1973 = vcmp.eq.s32.totalorder %v244, %v1972
    %v1974 = vsel %vm1973, 1, 0
    %v1975 = vcvt.s32.f32 %v1974
    %v1977 = vsel %vm339, %v1975, 0
    %1979 = vmatprep.subr.mxu0 0.0
    %1980 = vmatpush1.msra.mxu0 %v1965
    %1981 = vmatprep.subr.mxu0 0.0
    %1982 = vmatpush1.msra.mxu0 %v1966
    %1983 = vmatprep.subr.mxu0 0.0
    %1984 = vmatpush1.msra.mxu0 0.0
    %1985 = vmatprep.subr.mxu0 0.0
    %1986 = vmatpush1.msra.mxu0 0.0
    %1987 = vmatprep.subr.mxu0 0.0
    %1988 = vmatpush1.msra.mxu0 0.0
    %1989 = vmatprep.subr.mxu0 0.0
    %1990 = vmatpush1.msra.mxu0 0.0
    %1991 = vmatprep.subr.mxu0 0.0
    %1992 = vmatpush1.msra.mxu0 0.0
    %1993 = vmatprep.subr.mxu0 0.0
    %1994 = vmatpush1.msra.mxu0 0.0
    %1995 = vmatprep.subr.mxu0 0.0
    %1996 = vmatpush1.msra.mxu0 0.0
    %1997 = vmatprep.subr.mxu0 0.0
    %1998 = vmatpush1.msra.mxu0 0.0
    %1999 = vmatprep.subr.mxu0 0.0
    %2000 = vmatpush1.msra.mxu0 0.0
    %2001 = vmatprep.subr.mxu0 0.0
    %2002 = vmatpush1.msra.mxu0 0.0
    %2003 = vmatprep.subr.mxu0 0.0
    %2004 = vmatpush1.msra.mxu0 0.0
    %2005 = vmatprep.subr.mxu0 0.0
    %2006 = vmatpush1.msra.mxu0 0.0
    %2007 = vmatprep.subr.mxu0 0.0
    %2008 = vmatpush1.msra.mxu0 0.0
    %2009 = vmatprep.subr.mxu0 0.0
    %2010 = vmatpush1.msra.mxu0 0.0
    %2011 = vmatprep.subr.mxu0 0.0
    %2012 = vmatpush1.msra.mxu0 0.0
    %2013 = vmatprep.subr.mxu0 0.0
    %2014 = vmatpush1.msra.mxu0 0.0
    %2015 = vmatprep.subr.mxu0 0.0
    %2016 = vmatpush1.msra.mxu0 0.0
    %2017 = vmatprep.subr.mxu0 0.0
    %2018 = vmatpush1.msra.mxu0 0.0
    %2019 = vmatprep.subr.mxu0 0.0
    %2020 = vmatpush1.msra.mxu0 0.0
    %2021 = vmatprep.subr.mxu0 0.0
    %2022 = vmatpush1.msra.mxu0 0.0
    %2023 = vmatprep.subr.mxu0 0.0
    %2024 = vmatpush1.msra.mxu0 0.0
    %2025 = vmatprep.subr.mxu0 0.0
    %2026 = vmatpush1.msra.mxu0 0.0
    %2027 = vmatprep.subr.mxu0 0.0
    %2028 = vmatpush1.msra.mxu0 0.0
    %2029 = vmatprep.subr.mxu0 0.0
    %2030 = vmatpush1.msra.mxu0 0.0
    %2031 = vmatprep.subr.mxu0 0.0
    %2032 = vmatpush1.msra.mxu0 0.0
    %2033 = vmatprep.subr.mxu0 0.0
    %2034 = vmatpush1.msra.mxu0 0.0
    %2035 = vmatprep.subr.mxu0 0.0
    %2036 = vmatpush1.msra.mxu0 0.0
    %2037 = vmatprep.subr.mxu0 0.0
    %2038 = vmatpush1.msra.mxu0 0.0
    %2039 = vmatprep.subr.mxu0 0.0
    %2040 = vmatpush1.msra.mxu0 0.0
    %2041 = vmatprep.subr.mxu0 0.0
    %2042 = vmatpush1.msra.mxu0 0.0
    %2043 = vmatprep.mubr.f32.mxu0 0.0
    %2044 = vmatmul.mubr.f32.gmra.mrb[0].mxu0 %v1977
    %v2045 = vpop.f32.mrb[0].mxu0
    %v2046 = vadd.f32 0.0, %v2045
    %v2047 = vpop.f32.mrb[0].mxu0
    %2048 = vdwg.mxu0
    %v2049 = vpack.c.bf16 %v2046, %v2046
    %v2050 = vld [vmem:[%s15] sm:$0xf]
    %v2051 = vld [vmem:[%s15 + $0x4] sm:$0xf]
    %v2052 = vld [vmem:[%s15 + $0x8] sm:$0xf]
    %v2053 = vld [vmem:[%s15 + $0xc] sm:$0xf]
    %v2054 = vld [vmem:[%s16] sm:$0x1]
    %v2056 = vlaneseq
    %v2057 = vshrl.u32 %v2056, 7
    %v2058 = vsub.s32 0, %v2057
    %v2059 = vrot.slane %v2054, %v2058
    %v2065 = vunpack.c.l.b16 %v2050
    %v2066 = vunpack.c.l.b16 %v2051
    %v2067 = vunpack.c.l.b16 %v2052
    %v2068 = vunpack.c.l.b16 %v2053
    %v2069 = vpack.c.b16 %v2066, %v2065
    %v2070 = vpack.c.b16 %v2068, %v2067
    %v2074 = vsel %vm285, %v2049, 0
    %2076 = vmatprep.subr.bf16.mxu0 0
    %2077 = vmatpush1.bf16.msra.mxu0 %v2069
    %2078 = vmatprep.subr.bf16.mxu0 0
    %2079 = vmatpush1.bf16.msra.mxu0 %v2070
    %2080 = vmatprep.subr.bf16.mxu0 0
    %2081 = vmatpush1.bf16.msra.mxu0 0
    %2082 = vmatprep.subr.bf16.mxu0 0
    %2083 = vmatpush1.bf16.msra.mxu0 0
    %2084 = vmatprep.subr.bf16.mxu0 0
    %2085 = vmatpush1.bf16.msra.mxu0 0
    %2086 = vmatprep.subr.bf16.mxu0 0
    %2087 = vmatpush1.bf16.msra.mxu0 0
    %2088 = vmatprep.subr.bf16.mxu0 0
    %2089 = vmatpush1.bf16.msra.mxu0 0
    %2090 = vmatprep.subr.bf16.mxu0 0
    %2091 = vmatpush1.bf16.msra.mxu0 0
    %2092 = vmatprep.subr.bf16.mxu0 0
    %2093 = vmatpush1.bf16.msra.mxu0 0
    %2094 = vmatprep.subr.bf16.mxu0 0
    %2095 = vmatpush1.bf16.msra.mxu0 0
    %2096 = vmatprep.subr.bf16.mxu0 0
    %2097 = vmatpush1.bf16.msra.mxu0 0
    %2098 = vmatprep.subr.bf16.mxu0 0
    %2099 = vmatpush1.bf16.msra.mxu0 0
    %2100 = vmatprep.subr.bf16.mxu0 0
    %2101 = vmatpush1.bf16.msra.mxu0 0
    %2102 = vmatprep.subr.bf16.mxu0 0
    %2103 = vmatpush1.bf16.msra.mxu0 0
    %2104 = vmatprep.subr.bf16.mxu0 0
    %2105 = vmatpush1.bf16.msra.mxu0 0
    %2106 = vmatprep.subr.bf16.mxu0 0
    %2107 = vmatpush1.bf16.msra.mxu0 0
    %2108 = vmatprep.mubr.bf16.mxu0 0
    %2109 = vmatmul.mubr.bf16.gmra.mrb[0].mxu0 %v2074
    %v2110 = vpop.f32.mrb[0].mxu0
    %v2111 = vadd.f32 %v2059, %v2110
    %v2112 = vpop.f32.mrb[0].mxu0
    %v2113 = vpop.f32.mrb[0].mxu0
    %v2114 = vpop.f32.mrb[0].mxu0
    %2115 = vdwg.mxu0
    %v2116 = vmax.f32 %v2111, 0.0
    %v2117 = vld [vmem:[#allocation16] sm:$0x1]
    %v2118 = vld [vmem:[#allocation17] sm:$0x1]
    %vm2119 = vcmask 259072
    %v2120 = vsel %vm2119, %v2116, 0.0
    %2121 = vadd.xlane.f32.xlu0 %v2120
    %v2122 = vpop.xlane.xlu0 %2121
    %v2123 = vmul.f32 %v2122, %v875
    %v2124 = vsub.f32 %v2116, %v2123
    %v2125 = vmul.f32 %v2124, %v2124
    %v2126 = vsel %vm2119, %v2125, 0.0
    %2127 = vadd.xlane.f32.xlu0 %v2126
    %v2128 = vpop.xlane.xlu0 %2127
    %v2129 = vmul.f32 %v2128, %v875
    %v2130 = vadd.f32 %v2129, 1e-05
    %v2131 = vrsqrt.pop %v2130
    %v2132 = vmul.f32 %v2124, %v2131
    %v2134 = vlaneseq
    %v2135 = vshrl.u32 %v2134, 7
    %v2136 = vsub.s32 0, %v2135
    %v2137 = vrot.slane %v2117, %v2136
    %v2139 = vmul.f32 %v2132, %v2137
    %v2141 = vlaneseq
    %v2142 = vshrl.u32 %v2141, 7
    %v2143 = vsub.s32 0, %v2142
    %v2144 = vrot.slane %v2118, %v2143
    %v2146 = vadd.f32 %v2139, %v2144
    %v2147 = vpack.c.bf16 %v2146, %v2146
    %v2148 = vld [vmem:[%s19] sm:$0xf]
    %v2149 = vld [vmem:[%s19 + $0x4] sm:$0xf]
    %v2150 = vld [vmem:[%s19 + $0x8] sm:$0xf]
    %v2151 = vld [vmem:[%s19 + $0xc] sm:$0xf]
    %v2152 = vld [vmem:[%s20] sm:$0x1]
    %v2154 = vlaneseq
    %v2155 = vshrl.u32 %v2154, 7
    %v2156 = vsub.s32 0, %v2155
    %v2157 = vrot.slane %v2152, %v2156
    %v2163 = vunpack.c.l.b16 %v2148
    %v2164 = vunpack.c.l.b16 %v2149
    %v2165 = vunpack.c.l.b16 %v2150
    %v2166 = vunpack.c.l.b16 %v2151
    %v2167 = vpack.c.b16 %v2164, %v2163
    %v2168 = vpack.c.b16 %v2166, %v2165
    %v2172 = vsel %vm285, %v2147, 0
    %2174 = vmatprep.subr.bf16.mxu0 0
    %2175 = vmatpush1.bf16.msra.mxu0 %v2167
    %2176 = vmatprep.subr.bf16.mxu0 0
    %2177 = vmatpush1.bf16.msra.mxu0 %v2168
    %2178 = vmatprep.subr.bf16.mxu0 0
    %2179 = vmatpush1.bf16.msra.mxu0 0
    %2180 = vmatprep.subr.bf16.mxu0 0
    %2181 = vmatpush1.bf16.msra.mxu0 0
    %2182 = vmatprep.subr.bf16.mxu0 0
    %2183 = vmatpush1.bf16.msra.mxu0 0
    %2184 = vmatprep.subr.bf16.mxu0 0
    %2185 = vmatpush1.bf16.msra.mxu0 0
    %2186 = vmatprep.subr.bf16.mxu0 0
    %2187 = vmatpush1.bf16.msra.mxu0 0
    %2188 = vmatprep.subr.bf16.mxu0 0
    %2189 = vmatpush1.bf16.msra.mxu0 0
    %2190 = vmatprep.subr.bf16.mxu0 0
    %2191 = vmatpush1.bf16.msra.mxu0 0
    %2192 = vmatprep.subr.bf16.mxu0 0
    %2193 = vmatpush1.bf16.msra.mxu0 0
    %2194 = vmatprep.subr.bf16.mxu0 0
    %2195 = vmatpush1.bf16.msra.mxu0 0
    %2196 = vmatprep.subr.bf16.mxu0 0
    %2197 = vmatpush1.bf16.msra.mxu0 0
    %2198 = vmatprep.subr.bf16.mxu0 0
    %2199 = vmatpush1.bf16.msra.mxu0 0
    %2200 = vmatprep.subr.bf16.mxu0 0
    %2201 = vmatpush1.bf16.msra.mxu0 0
    %2202 = vmatprep.subr.bf16.mxu0 0
    %2203 = vmatpush1.bf16.msra.mxu0 0
    %2204 = vmatprep.subr.bf16.mxu0 0
    %2205 = vmatpush1.bf16.msra.mxu0 0
    %2206 = vmatprep.mubr.bf16.mxu0 0
    %2207 = vmatmul.mubr.bf16.gmra.mrb[0].mxu0 %v2172
    %v2208 = vpop.f32.mrb[0].mxu0
    %v2209 = vadd.f32 %v2157, %v2208
    %v2210 = vpop.f32.mrb[0].mxu0
    %v2211 = vpop.f32.mrb[0].mxu0
    %v2212 = vpop.f32.mrb[0].mxu0
    %2213 = vdwg.mxu0
    %2214 = vst [vmem:[#allocation20] sm:$0x3f] %v2209
    %v2215 = vlaneseq
    %v2216 = vshrl.u32 %v2215, 7
    %v2217 = vmul.u32 %v2216, 8
    %vm2218 = vcmp.eq.s32.totalorder %v244, %v2217
    %v2219 = vsel %vm2218, 1, 0
    %v2220 = vcvt.s32.f32 %v2219
    %v2222 = vsel %vm339, %v2220, 0
    %2224 = vmatprep.subr.mxu0 0.0
    %2225 = vmatpush1.msra.mxu0 %v1965
    %2226 = vmatprep.subr.mxu0 0.0
    %2227 = vmatpush1.msra.mxu0 %v1966
    %2228 = vmatprep.subr.mxu0 0.0
    %2229 = vmatpush1.msra.mxu0 0.0
    %2230 = vmatprep.subr.mxu0 0.0
    %2231 = vmatpush1.msra.mxu0 0.0
    %2232 = vmatprep.subr.mxu0 0.0
    %2233 = vmatpush1.msra.mxu0 0.0
    %2234 = vmatprep.subr.mxu0 0.0
    %2235 = vmatpush1.msra.mxu0 0.0
    %2236 = vmatprep.subr.mxu0 0.0
    %2237 = vmatpush1.msra.mxu0 0.0
    %2238 = vmatprep.subr.mxu0 0.0
    %2239 = vmatpush1.msra.mxu0 0.0
    %2240 = vmatprep.subr.mxu0 0.0
    %2241 = vmatpush1.msra.mxu0 0.0
    %2242 = vmatprep.subr.mxu0 0.0
    %2243 = vmatpush1.msra.mxu0 0.0
    %2244 = vmatprep.subr.mxu0 0.0
    %2245 = vmatpush1.msra.mxu0 0.0
    %2246 = vmatprep.subr.mxu0 0.0
    %2247 = vmatpush1.msra.mxu0 0.0
    %2248 = vmatprep.subr.mxu0 0.0
    %2249 = vmatpush1.msra.mxu0 0.0
    %2250 = vmatprep.subr.mxu0 0.0
    %2251 = vmatpush1.msra.mxu0 0.0
    %2252 = vmatprep.subr.mxu0 0.0
    %2253 = vmatpush1.msra.mxu0 0.0
    %2254 = vmatprep.subr.mxu0 0.0
    %2255 = vmatpush1.msra.mxu0 0.0
    %2256 = vmatprep.subr.mxu0 0.0
    %2257 = vmatpush1.msra.mxu0 0.0
    %2258 = vmatprep.subr.mxu0 0.0
    %2259 = vmatpush1.msra.mxu0 0.0
    %2260 = vmatprep.subr.mxu0 0.0
    %2261 = vmatpush1.msra.mxu0 0.0
    %2262 = vmatprep.subr.mxu0 0.0
    %2263 = vmatpush1.msra.mxu0 0.0
    %2264 = vmatprep.subr.mxu0 0.0
    %2265 = vmatpush1.msra.mxu0 0.0
    %2266 = vmatprep.subr.mxu0 0.0
    %2267 = vmatpush1.msra.mxu0 0.0
    %2268 = vmatprep.subr.mxu0 0.0
    %2269 = vmatpush1.msra.mxu0 0.0
    %2270 = vmatprep.subr.mxu0 0.0
    %2271 = vmatpush1.msra.mxu0 0.0
    %2272 = vmatprep.subr.mxu0 0.0
    %2273 = vmatpush1.msra.mxu0 0.0
    %2274 = vmatprep.subr.mxu0 0.0
    %2275 = vmatpush1.msra.mxu0 0.0
    %2276 = vmatprep.subr.mxu0 0.0
    %2277 = vmatpush1.msra.mxu0 0.0
    %2278 = vmatprep.subr.mxu0 0.0
    %2279 = vmatpush1.msra.mxu0 0.0
    %2280 = vmatprep.subr.mxu0 0.0
    %2281 = vmatpush1.msra.mxu0 0.0
    %2282 = vmatprep.subr.mxu0 0.0
    %2283 = vmatpush1.msra.mxu0 0.0
    %2284 = vmatprep.subr.mxu0 0.0
    %2285 = vmatpush1.msra.mxu0 0.0
    %2286 = vmatprep.subr.mxu0 0.0
    %2287 = vmatpush1.msra.mxu0 0.0
    %2288 = vmatprep.mubr.f32.mxu0 0.0
    %2289 = vmatmul.mubr.f32.gmra.mrb[0].mxu0 %v2222
    %v2290 = vpop.f32.mrb[0].mxu0
    %v2291 = vadd.f32 0.0, %v2290
    %v2292 = vpop.f32.mrb[0].mxu0
    %2293 = vdwg.mxu0
    %v2294 = vpack.c.bf16 %v2291, %v2291
    %v2295 = vld [vmem:[%s21] sm:$0xf]
    %v2296 = vld [vmem:[%s21 + $0x4] sm:$0xf]
    %v2297 = vld [vmem:[%s21 + $0x8] sm:$0xf]
    %v2298 = vld [vmem:[%s21 + $0xc] sm:$0xf]
    %v2299 = vld [vmem:[%s22] sm:$0x1]
    %v2301 = vlaneseq
    %v2302 = vshrl.u32 %v2301, 7
    %v2303 = vsub.s32 0, %v2302
    %v2304 = vrot.slane %v2299, %v2303
    %v2310 = vunpack.c.l.b16 %v2295
    %v2311 = vunpack.c.l.b16 %v2296
    %v2312 = vunpack.c.l.b16 %v2297
    %v2313 = vunpack.c.l.b16 %v2298
    %v2314 = vpack.c.b16 %v2311, %v2310
    %v2315 = vpack.c.b16 %v2313, %v2312
    %v2319 = vsel %vm285, %v2294, 0
    %2321 = vmatprep.subr.bf16.mxu0 0
    %2322 = vmatpush1.bf16.msra.mxu0 %v2314
    %2323 = vmatprep.subr.bf16.mxu0 0
    %2324 = vmatpush1.bf16.msra.mxu0 %v2315
    %2325 = vmatprep.subr.bf16.mxu0 0
    %2326 = vmatpush1.bf16.msra.mxu0 0
    %2327 = vmatprep.subr.bf16.mxu0 0
    %2328 = vmatpush1.bf16.msra.mxu0 0
    %2329 = vmatprep.subr.bf16.mxu0 0
    %2330 = vmatpush1.bf16.msra.mxu0 0
    %2331 = vmatprep.subr.bf16.mxu0 0
    %2332 = vmatpush1.bf16.msra.mxu0 0
    %2333 = vmatprep.subr.bf16.mxu0 0
    %2334 = vmatpush1.bf16.msra.mxu0 0
    %2335 = vmatprep.subr.bf16.mxu0 0
    %2336 = vmatpush1.bf16.msra.mxu0 0
    %2337 = vmatprep.subr.bf16.mxu0 0
    %2338 = vmatpush1.bf16.msra.mxu0 0
    %2339 = vmatprep.subr.bf16.mxu0 0
    %2340 = vmatpush1.bf16.msra.mxu0 0
    %2341 = vmatprep.subr.bf16.mxu0 0
    %2342 = vmatpush1.bf16.msra.mxu0 0
    %2343 = vmatprep.subr.bf16.mxu0 0
    %2344 = vmatpush1.bf16.msra.mxu0 0
    %2345 = vmatprep.subr.bf16.mxu0 0
    %2346 = vmatpush1.bf16.msra.mxu0 0
    %2347 = vmatprep.subr.bf16.mxu0 0
    %2348 = vmatpush1.bf16.msra.mxu0 0
    %2349 = vmatprep.subr.bf16.mxu0 0
    %2350 = vmatpush1.bf16.msra.mxu0 0
    %2351 = vmatprep.subr.bf16.mxu0 0
    %2352 = vmatpush1.bf16.msra.mxu0 0
    %2353 = vmatprep.mubr.bf16.mxu0 0
    %2354 = vmatmul.mubr.bf16.gmra.mrb[0].mxu0 %v2319
    %v2355 = vpop.f32.mrb[0].mxu0
    %v2356 = vadd.f32 %v2304, %v2355
    %v2357 = vpop.f32.mrb[0].mxu0
    %v2358 = vpop.f32.mrb[0].mxu0
    %v2359 = vpop.f32.mrb[0].mxu0
    %2360 = vdwg.mxu0
    %v2361 = vtanh.pop %v2356
    %v2362 = vpack.c.bf16 %v2361, %v2361
    %v2363 = vld [vmem:[%s23] sm:$0xf]
    %v2364 = vld [vmem:[%s23 + $0x4] sm:$0xf]
    %v2365 = vld [vmem:[%s23 + $0x8] sm:$0xf]
    %v2366 = vld [vmem:[%s23 + $0xc] sm:$0xf]
    %v2367 = vld [vmem:[%s24] sm:$0x1]
    %v2369 = vlaneseq
    %v2370 = vshrl.u32 %v2369, 7
    %v2371 = vsub.s32 0, %v2370
    %v2372 = vrot.slane %v2367, %v2371
    %v2378 = vunpack.c.l.b16 %v2363
    %v2379 = vunpack.c.l.b16 %v2364
    %v2380 = vunpack.c.l.b16 %v2365
    %v2381 = vunpack.c.l.b16 %v2366
    %v2382 = vpack.c.b16 %v2379, %v2378
    %v2383 = vpack.c.b16 %v2381, %v2380
    %v2387 = vsel %vm285, %v2362, 0
    %2389 = vmatprep.subr.bf16.mxu0 0
    %2390 = vmatpush1.bf16.msra.mxu0 %v2382
    %2391 = vmatprep.subr.bf16.mxu0 0
    %2392 = vmatpush1.bf16.msra.mxu0 %v2383
    %2393 = vmatprep.subr.bf16.mxu0 0
    %2394 = vmatpush1.bf16.msra.mxu0 0
    %2395 = vmatprep.subr.bf16.mxu0 0
    %2396 = vmatpush1.bf16.msra.mxu0 0
    %2397 = vmatprep.subr.bf16.mxu0 0
    %2398 = vmatpush1.bf16.msra.mxu0 0
    %2399 = vmatprep.subr.bf16.mxu0 0
    %2400 = vmatpush1.bf16.msra.mxu0 0
    %2401 = vmatprep.subr.bf16.mxu0 0
    %2402 = vmatpush1.bf16.msra.mxu0 0
    %2403 = vmatprep.subr.bf16.mxu0 0
    %2404 = vmatpush1.bf16.msra.mxu0 0
    %2405 = vmatprep.subr.bf16.mxu0 0
    %2406 = vmatpush1.bf16.msra.mxu0 0
    %2407 = vmatprep.subr.bf16.mxu0 0
    %2408 = vmatpush1.bf16.msra.mxu0 0
    %2409 = vmatprep.subr.bf16.mxu0 0
    %2410 = vmatpush1.bf16.msra.mxu0 0
    %2411 = vmatprep.subr.bf16.mxu0 0
    %2412 = vmatpush1.bf16.msra.mxu0 0
    %2413 = vmatprep.subr.bf16.mxu0 0
    %2414 = vmatpush1.bf16.msra.mxu0 0
    %2415 = vmatprep.subr.bf16.mxu0 0
    %2416 = vmatpush1.bf16.msra.mxu0 0
    %2417 = vmatprep.subr.bf16.mxu0 0
    %2418 = vmatpush1.bf16.msra.mxu0 0
    %2419 = vmatprep.subr.bf16.mxu0 0
    %2420 = vmatpush1.bf16.msra.mxu0 0
    %2421 = vmatprep.mubr.bf16.mxu0 0
    %2422 = vmatmul.mubr.bf16.gmra.mrb[0].mxu0 %v2387
    %v2423 = vpop.f32.mrb[0].mxu0
    %v2424 = vadd.f32 %v2372, %v2423
    %v2425 = vpop.f32.mrb[0].mxu0
    %v2426 = vpop.f32.mrb[0].mxu0
    %v2427 = vpop.f32.mrb[0].mxu0
    %2428 = vdwg.mxu0
    %vm2429 = vcmask 9216
    %2430 = vst.msk [vmem:[#allocation22] sm:$0x3] %vm2429, %v2424
    // Predicated region
    $region142: #{tpu_custom_call.1} parent=1 // pred_check
      _
    $region143: #{tpu_custom_call.1} parent=1 // pred_check_branch
      %2432 = sbr.rel (0) target = $region145
    $region144: #{tpu_custom_call.1} parent=1 // pred_region
      %s2434 = ssub.s32 256, 256
      %2435 = vsyncadd [#allocation4], %s2434
      %s2436 = sshll.u32 [#allocation19], 4
      %s2437 = int_to_ptr.vmem [resolvable:$true] %s2436
      %2442 = dma.vmem_to_hbm [thread:$0]  %s2437, 256, %s25, [#allocation4], 128, 128, 8
    $region145: #{tpu_custom_call.1} parent=1 // pred_fallthru
      _
    // Predicated region
    $region146: #{tpu_custom_call.1} parent=1 // pred_check
      _
    $region147: #{tpu_custom_call.1} parent=1 // pred_check_branch
      %2444 = sbr.rel (0) target = $region149
    $region148: #{tpu_custom_call.1} parent=1 // pred_region
      %s2446 = ssub.s32 128, 128
      %2447 = vsyncadd [#allocation21], %s2446
      %s2449 = sshll.u32 [#allocation20], 4
      %s2450 = int_to_ptr.vmem [resolvable:$true] %s2449
      %2452 = dma.vmem_to_hbm [thread:$0]  %s2450, 128, %s26, [#allocation21]
    $region149: #{tpu_custom_call.1} parent=1 // pred_fallthru
      _
    // Predicated region
    $region150: #{tpu_custom_call.1} parent=1 // pred_check
      _
    $region151: #{tpu_custom_call.1} parent=1 // pred_check_branch
      %2454 = sbr.rel (0) target = $region153
    $region152: #{tpu_custom_call.1} parent=1 // pred_region
      %s2456 = ssub.s32 32, 32
      %2457 = vsyncadd [#allocation21], %s2456
      %s2459 = sshll.u32 [#allocation22], 4
      %s2460 = int_to_ptr.vmem [resolvable:$true] %s2459
      %2462 = dma.vmem_to_hbm [thread:$0]  %s2460, 32, %s27, [#allocation21]
    $region153: #{tpu_custom_call.1} parent=1 // pred_fallthru
      _
    // Predicated region
    $region154: #{tpu_custom_call.1} parent=1 // pred_check
      _
    $region155: #{tpu_custom_call.1} parent=1 // pred_check_branch
      %2464 = sbr.rel (0) target = $region157
    $region156: #{tpu_custom_call.1} parent=1 // pred_region
      %2465 = dma.done [#allocation4], 256
    $region157: #{tpu_custom_call.1} parent=1 // pred_fallthru
      _
    // Predicated region
    $region158: #{tpu_custom_call.1} parent=1 // pred_check
      _
    $region159: #{tpu_custom_call.1} parent=1 // pred_check_branch
      %2467 = sbr.rel (0) target = $region161
    $region160: #{tpu_custom_call.1} parent=1 // pred_region
      %2468 = dma.done [#allocation21], 128
    $region161: #{tpu_custom_call.1} parent=1 // pred_fallthru
      _
    // Predicated region
    $region162: #{tpu_custom_call.1} parent=1 // pred_check
      _
    $region163: #{tpu_custom_call.1} parent=1 // pred_check_branch
      %2470 = sbr.rel (0) target = $region165
    $region164: #{tpu_custom_call.1} parent=1 // pred_region
      %2471 = dma.done [#allocation21], 32
    $region165: #{tpu_custom_call.1} parent=1 // pred_fallthru
      _
    %2472 = vsyncpa [#allocation3], 1
    %2473 = vsyncpa [#allocation6], 1
    %2474 = vsyncpa [#allocation9], 1
    %2475 = vsyncpa [#allocation12], 1
    %2476 = vsyncpa [#allocation15], 1
    %2477 = vsyncpa [#allocation18], 1
    %2478 = vsyncpa [#allocation4], 1
    %2479 = vsyncpa [#allocation21], 1

</llo_original>
